<compile_context>
chip_gen: v5e
topology: v5e:2x2
jax: 0.10.0
libtpu: 0.0.40
codegen_flags: <defaults>
</compile_context>

<pallas_src>
import numpy as np
import jax
import jax.numpy as jnp
from jax import lax
from jax.experimental import pallas as pl
from jax.experimental.pallas import tpu as pltpu


# ----------------------------------------------------------------------------
# Fused forward kernel
# ----------------------------------------------------------------------------
def _fused_kernel(x_ref,
                  wih1_ref, whh1_ref, b1_ref,
                  wih2_ref, whh2_ref, b2_ref,
                  wq_ref, wk_ref, wv_ref, bq_ref, bk_ref, bv_ref,
                  wo_ref, bo_ref, hm_ref, hmt_ref,
                  mw1_ref, mb1_ref, mw2_ref, mb2_ref, mw3_ref, mb3_ref,
                  o_ref,
                  h2seq_ref):
    TB = x_ref.shape[0]                  # T * B (time-major rows)
    H = whh1_ref.shape[0]                # lstm1 hidden
    E = whh2_ref.shape[0]                # lstm2 hidden == embed dim
    nh = hm_ref.shape[1]                 # num heads
    hd = E // nh
    B = o_ref.shape[0]
    T = TB // B
    scale = 1.0 / float(np.sqrt(hd))

    whh1 = whh1_ref[...]
    wih2 = wih2_ref[...]; whh2 = whh2_ref[...]; b2 = b2_ref[...]
    hm = hm_ref[...]                     # (E, nh) head-membership mask
    hmt = hmt_ref[...]                   # (nh, E)

    # ---- Layer-1 input projections for ALL timesteps in one MXU pass ----
    xg1 = (jnp.dot(x_ref[...], wih1_ref[...], preferred_element_type=jnp.float32)
           + b1_ref[...])                                        # (T*B, 4H)

    def gates_to_hc(g, c, n):
        # PyTorch gate order: input, forget, cell(g), output
        i = jax.nn.sigmoid(g[:, 0 * n:1 * n])
        f = jax.nn.sigmoid(g[:, 1 * n:2 * n])
        gg = jnp.tanh(g[:, 2 * n:3 * n])
        o = jax.nn.sigmoid(g[:, 3 * n:4 * n])
        c_new = f * c + i * gg
        h_new = o * jnp.tanh(c_new)
        return h_new, c_new

    h1 = jnp.zeros((B, H), jnp.float32); c1 = jnp.zeros((B, H), jnp.float32)
    h2 = jnp.zeros((B, E), jnp.float32); c2 = jnp.zeros((B, E), jnp.float32)

    # Static (trace-time) unrolled loop over time; both LSTM layers in lock-step.
    for t in range(T):
        g1 = xg1[t * B:(t + 1) * B, :] + jnp.dot(h1, whh1,
                                                 preferred_element_type=jnp.float32)
        h1, c1 = gates_to_hc(g1, c1, H)
        g2 = (jnp.dot(h1, wih2, preferred_element_type=jnp.float32)
              + jnp.dot(h2, whh2, preferred_element_type=jnp.float32) + b2)
        h2, c2 = gates_to_hc(g2, c2, E)
        h2seq_ref[t * B:(t + 1) * B, :] = h2                     # stash layer-2 sequence

    # ---- Multi-head self-attention, LAST query position only ----
    h2_seq = h2seq_ref[...]                                       # (T*B, E), time-major
    k_all = jnp.dot(h2_seq, wk_ref[...], preferred_element_type=jnp.float32) + bk_ref[...]
    v_all = jnp.dot(h2_seq, wv_ref[...], preferred_element_type=jnp.float32) + bv_ref[...]
    q = (jnp.dot(h2, wq_ref[...], preferred_element_type=jnp.float32)
         + bq_ref[...]) * scale                                   # (B, E), last step

    # Per-head scores: s_t[b, h] = sum_{e in head h} q[b, e] * k_t[b, e]
    s_list = [jnp.dot(q * k_all[t * B:(t + 1) * B, :], hm,
                      preferred_element_type=jnp.float32)         # (B, nh)
              for t in range(T)]

    m = s_list[0]
    for s_t in s_list[1:]:
        m = jnp.maximum(m, s_t)
    e_list = [jnp.exp(s_t - m) for s_t in s_list]
    denom = e_list[0]
    for e_t in e_list[1:]:
        denom = denom + e_t
    inv = pl.reciprocal(denom, approx=True)                       # (B, nh), EUP slot

    # Weighted sum of values; expand per-head weights to lanes with hm^T.
    ctx = jnp.zeros((B, E), jnp.float32)
    for t, e_t in enumerate(e_list):
        ctx = ctx + (jnp.dot(e_t, hmt, preferred_element_type=jnp.float32)
                     * v_all[t * B:(t + 1) * B, :])
    ctx = ctx * jnp.dot(inv, hmt, preferred_element_type=jnp.float32)

    attn = jnp.dot(ctx, wo_ref[...], preferred_element_type=jnp.float32) + bo_ref[...]

    # ---- MLP head (dropout = identity at inference) ----
    z = jnp.maximum(jnp.dot(attn, mw1_ref[...], preferred_element_type=jnp.float32)
                    + mb1_ref[...], 0.0)
    z = jnp.maximum(jnp.dot(z, mw2_ref[...], preferred_element_type=jnp.float32)
                    + mb2_ref[...], 0.0)
    o_ref[...] = jnp.dot(z, mw3_ref[...], preferred_element_type=jnp.float32) + mb3_ref[...]


_PARAM_ORDER = ['wih1', 'whh1', 'b1', 'wih2', 'whh2', 'b2',
                'wq', 'wk', 'wv', 'bq', 'bk', 'bv', 'wo', 'bo', 'hm', 'hmt',
                'mw1', 'mb1', 'mw2', 'mb2', 'mw3', 'mb3']


def pack_params(params, num_heads=8):
    """One-time pre-transpose / pre-pack of PyTorch-layout parameters."""
    w_ih1, w_hh1, b_ih1, b_hh1 = params['lstm1']
    w_ih2, w_hh2, b_ih2, b_hh2 = params['lstm2']
    in_w, in_b, out_w, out_b = params['attn']
    w1, b1, w2, b2, w3, b3 = params['mlp']
    E = w_hh2.shape[1]
    hd = E // num_heads
    head_mask = jnp.repeat(jnp.eye(num_heads, dtype=jnp.float32), hd, axis=0)  # (E, nh)
    return dict(
        wih1=jnp.transpose(w_ih1), whh1=jnp.transpose(w_hh1),
        b1=(b_ih1 + b_hh1).reshape(1, -1),
        wih2=jnp.transpose(w_ih2), whh2=jnp.transpose(w_hh2),
        b2=(b_ih2 + b_hh2).reshape(1, -1),
        wq=jnp.transpose(in_w[:E]), wk=jnp.transpose(in_w[E:2 * E]),
        wv=jnp.transpose(in_w[2 * E:]),
        bq=in_b[:E].reshape(1, E), bk=in_b[E:2 * E].reshape(1, E),
        bv=in_b[2 * E:].reshape(1, E),
        wo=jnp.transpose(out_w), bo=out_b.reshape(1, E),
        hm=head_mask, hmt=jnp.transpose(head_mask),
        mw1=jnp.transpose(w1), mb1=b1.reshape(1, -1),
        mw2=jnp.transpose(w2), mb2=b2.reshape(1, -1),
        mw3=jnp.transpose(w3), mb3=b3.reshape(1, -1),
    )


def price_predictor_forward(x, packed):
    """x: (B, T, input_size) float32; packed: output of pack_params."""
    B, T, D = x.shape
    E = packed['whh2'].shape[0]
    out_size = packed['mw3'].shape[1]
    # Time-major (T*B, D) layout so the in-kernel batched input projection can
    # use contiguous static row-slices per timestep (wrapper-side layout only).
    x_tm = jnp.transpose(x, (1, 0, 2)).reshape(T * B, D)
    return pl.pallas_call(
        _fused_kernel,
        out_shape=jax.ShapeDtypeStruct((B, out_size), jnp.float32),
        scratch_shapes=[pltpu.VMEM((T * B, E), jnp.float32)],
    )(x_tm, *[packed[n] for n in _PARAM_ORDER])


# ----------------------------------------------------------------------------
# Deterministic parameter init (PyTorch-style uniform(-1/sqrt(fan), 1/sqrt(fan)))
# ----------------------------------------------------------------------------
def init_params(key, input_size, hidden_size=32, output_size=1):
    E = hidden_size // 2
    keys = jax.random.split(key, 16)

    def u(k, shape, fan):
        bound = 1.0 / np.sqrt(fan)
        return jax.random.uniform(k, shape, jnp.float32, -bound, bound)

    lstm1 = (u(keys[0], (4 * hidden_size, input_size), hidden_size),
             u(keys[1], (4 * hidden_size, hidden_size), hidden_size),
             u(keys[2], (4 * hidden_size,), hidden_size),
             u(keys[3], (4 * hidden_size,), hidden_size))
    lstm2 = (u(keys[4], (4 * E, hidden_size), E),
             u(keys[5], (4 * E, E), E),
             u(keys[6], (4 * E,), E),
             u(keys[7], (4 * E,), E))
    attn = (u(keys[8], (3 * E, E), E),
            jnp.zeros((3 * E,), jnp.float32),
            u(keys[9], (E, E), E),
            jnp.zeros((E,), jnp.float32))
    mlp = (u(keys[10], (64, E), E), u(keys[11], (64,), E),
           u(keys[12], (32, 64), 64), u(keys[13], (32,), 64),
           u(keys[14], (output_size, 32), 32), u(keys[15], (output_size,), 32))
    return dict(lstm1=lstm1, lstm2=lstm2, attn=attn, mlp=mlp)


# ----------------------------------------------------------------------------
# Pure-JAX reference (mirrors PyTorch semantics) for a sanity check.
# ----------------------------------------------------------------------------
def _ref_lstm(x, w_ih, w_hh, b_ih, b_hh):
    B, T, _ = x.shape
    H = w_hh.shape[1]

    def step(carry, x_t):
        h, c = carry
        gates = x_t @ w_ih.T + b_ih + h @ w_hh.T + b_hh
        i, f, g, o = jnp.split(gates, 4, axis=-1)
        i, f, o = jax.nn.sigmoid(i), jax.nn.sigmoid(f), jax.nn.sigmoid(o)
        g = jnp.tanh(g)
        c = f * c + i * g
        h = o * jnp.tanh(c)
        return (h, c), h

    init = (jnp.zeros((B, H), jnp.float32), jnp.zeros((B, H), jnp.float32))
    _, hs = lax.scan(step, init, jnp.transpose(x, (1, 0, 2)))
    return jnp.transpose(hs, (1, 0, 2))


def _ref_mha(y, wi, bi, wo, bo, nh):
    B, T, E = y.shape
    hd = E // nh
    qkv = y @ wi.T + bi
    q, k, v = jnp.split(qkv, 3, axis=-1)
    q = q.reshape(B, T, nh, hd).transpose(0, 2, 1, 3) / np.sqrt(hd)
    k = k.reshape(B, T, nh, hd).transpose(0, 2, 1, 3)
    v = v.reshape(B, T, nh, hd).transpose(0, 2, 1, 3)
    s = jnp.einsum('bhqd,bhkd->bhqk', q, k)
    p = jax.nn.softmax(s, axis=-1)
    ctx = jnp.einsum('bhqk,bhkd->bhqd', p, v).transpose(0, 2, 1, 3).reshape(B, T, E)
    return ctx @ wo.T + bo


def _ref_forward(x, params):
    h1 = _ref_lstm(x, *params['lstm1'])
    h2 = _ref_lstm(h1, *params['lstm2'])
    a = _ref_mha(h2, *params['attn'], 8)
    w1, b1, w2, b2, w3, b3 = params['mlp']
    z = a[:, -1, :]
    z = jax.nn.relu(z @ w1.T + b1)
    z = jax.nn.relu(z @ w2.T + b2)
    return z @ w3.T + b3


if __name__ == "__main__":
    B, T, input_size, hidden_size = 2, 8, 8, 32
    key = jax.random.PRNGKey(0)
    x_key, p_key = jax.random.split(key)
    x = jax.random.normal(x_key, (B, T, input_size), dtype=jnp.float32)
    params = init_params(p_key, input_size, hidden_size, output_size=1)

    packed = jax.tree_util.tree_map(jax.block_until_ready, pack_params(params, num_heads=8))

    out = jax.jit(price_predictor_forward)(x, packed)
    out = jax.block_until_ready(out)

    ref = jax.block_until_ready(_ref_forward(x, params))
    assert out.shape == (B, 1), out.shape
    np.testing.assert_allclose(np.asarray(out), np.asarray(ref), atol=2e-2, rtol=2e-2)

    print("KERNEL_OK")
</pallas_src>

<mosaic_0001>
module attributes {stable_mosaic.version = 11 : i64} {
  func.func @_fused_kernel(%arg0: memref<16x8xf32, #tpu.memory_space<vmem>>, %arg1: memref<8x128xf32, #tpu.memory_space<vmem>>, %arg2: memref<32x128xf32, #tpu.memory_space<vmem>>, %arg3: memref<1x128xf32, #tpu.memory_space<vmem>>, %arg4: memref<32x64xf32, #tpu.memory_space<vmem>>, %arg5: memref<16x64xf32, #tpu.memory_space<vmem>>, %arg6: memref<1x64xf32, #tpu.memory_space<vmem>>, %arg7: memref<16x16xf32, #tpu.memory_space<vmem>>, %arg8: memref<16x16xf32, #tpu.memory_space<vmem>>, %arg9: memref<16x16xf32, #tpu.memory_space<vmem>>, %arg10: memref<1x16xf32, #tpu.memory_space<vmem>>, %arg11: memref<1x16xf32, #tpu.memory_space<vmem>>, %arg12: memref<1x16xf32, #tpu.memory_space<vmem>>, %arg13: memref<16x16xf32, #tpu.memory_space<vmem>>, %arg14: memref<1x16xf32, #tpu.memory_space<vmem>>, %arg15: memref<16x8xf32, #tpu.memory_space<vmem>>, %arg16: memref<8x16xf32, #tpu.memory_space<vmem>>, %arg17: memref<16x64xf32, #tpu.memory_space<vmem>>, %arg18: memref<1x64xf32, #tpu.memory_space<vmem>>, %arg19: memref<64x32xf32, #tpu.memory_space<vmem>>, %arg20: memref<1x32xf32, #tpu.memory_space<vmem>>, %arg21: memref<32x1xf32, #tpu.memory_space<vmem>>, %arg22: memref<1x1xf32, #tpu.memory_space<vmem>>, %arg23: memref<2x1xf32, #tpu.memory_space<vmem>>, %arg24: memref<16x16xf32, #tpu.memory_space<vmem>>) attributes {dimension_semantics = [], scalar_prefetch = 0 : i64, scratch_operands = 1 : i64, tpu.core_type = #tpu.core_type<tc>} {
    %c0 = arith.constant 0 : index
    %c0_0 = arith.constant 0 : index
    %0 = vector.load %arg2[%c0, %c0_0] : memref<32x128xf32, #tpu.memory_space<vmem>>, vector<32x128xf32>
    %c0_1 = arith.constant 0 : index
    %c0_2 = arith.constant 0 : index
    %1 = vector.load %arg4[%c0_1, %c0_2] : memref<32x64xf32, #tpu.memory_space<vmem>>, vector<32x64xf32>
    %c0_3 = arith.constant 0 : index
    %c0_4 = arith.constant 0 : index
    %2 = vector.load %arg5[%c0_3, %c0_4] : memref<16x64xf32, #tpu.memory_space<vmem>>, vector<16x64xf32>
    %c0_5 = arith.constant 0 : index
    %c0_6 = arith.constant 0 : index
    %3 = vector.load %arg6[%c0_5, %c0_6] : memref<1x64xf32, #tpu.memory_space<vmem>>, vector<1x64xf32>
    %c0_7 = arith.constant 0 : index
    %c0_8 = arith.constant 0 : index
    %4 = vector.load %arg15[%c0_7, %c0_8] : memref<16x8xf32, #tpu.memory_space<vmem>>, vector<16x8xf32>
    %c0_9 = arith.constant 0 : index
    %c0_10 = arith.constant 0 : index
    %5 = vector.load %arg16[%c0_9, %c0_10] : memref<8x16xf32, #tpu.memory_space<vmem>>, vector<8x16xf32>
    %c0_11 = arith.constant 0 : index
    %c0_12 = arith.constant 0 : index
    %6 = vector.load %arg0[%c0_11, %c0_12] : memref<16x8xf32, #tpu.memory_space<vmem>>, vector<16x8xf32>
    %c0_13 = arith.constant 0 : index
    %c0_14 = arith.constant 0 : index
    %7 = vector.load %arg1[%c0_13, %c0_14] : memref<8x128xf32, #tpu.memory_space<vmem>>, vector<8x128xf32>
    %cst = arith.constant dense<0.000000e+00> : vector<16x128xf32>
    %8 = tpu.matmul %6, %7, %cst {dimension_numbers = #tpu.dot_dimension_numbers<[1], [0], [0], [1], [0, 0, 1, 1], [], []>} : vector<16x8xf32>, vector<8x128xf32>, vector<16x128xf32> -> vector<16x128xf32>
    %c0_15 = arith.constant 0 : index
    %c0_16 = arith.constant 0 : index
    %9 = vector.load %arg3[%c0_15, %c0_16] : memref<1x128xf32, #tpu.memory_space<vmem>>, vector<1x128xf32>
    %10 = vector.broadcast %9 : vector<1x128xf32> to vector<16x128xf32>
    %11 = arith.addf %8, %10 : vector<16x128xf32>
    %cst_17 = arith.constant 0.000000e+00 : f32
    %12 = vector.broadcast %cst_17 : f32 to vector<2x32xf32>
    %cst_18 = arith.constant 0.000000e+00 : f32
    %13 = vector.broadcast %cst_18 : f32 to vector<2x32xf32>
    %cst_19 = arith.constant 0.000000e+00 : f32
    %14 = vector.broadcast %cst_19 : f32 to vector<2x16xf32>
    %cst_20 = arith.constant 0.000000e+00 : f32
    %15 = vector.broadcast %cst_20 : f32 to vector<2x16xf32>
    %16 = vector.extract_strided_slice %11 {offsets = [0, 0], sizes = [2, 128], strides = [1, 1]} : vector<16x128xf32> to vector<2x128xf32>
    %cst_21 = arith.constant dense<0.000000e+00> : vector<2x128xf32>
    %17 = tpu.matmul %12, %0, %cst_21 {dimension_numbers = #tpu.dot_dimension_numbers<[1], [0], [0], [1], [0, 0, 1, 1], [], []>} : vector<2x32xf32>, vector<32x128xf32>, vector<2x128xf32> -> vector<2x128xf32>
    %18 = arith.addf %16, %17 : vector<2x128xf32>
    %19 = vector.extract_strided_slice %18 {offsets = [0, 0], sizes = [2, 32], strides = [1, 1]} : vector<2x128xf32> to vector<2x32xf32>
    %20 = arith.negf %19 : vector<2x32xf32>
    %21 = math.exp %20 : vector<2x32xf32>
    %cst_22 = arith.constant 1.000000e+00 : f32
    %22 = vector.broadcast %cst_22 : f32 to vector<2x32xf32>
    %23 = arith.addf %22, %21 : vector<2x32xf32>
    %24 = arith.divf %22, %23 : vector<2x32xf32>
    %25 = vector.extract_strided_slice %18 {offsets = [0, 32], sizes = [2, 32], strides = [1, 1]} : vector<2x128xf32> to vector<2x32xf32>
    %26 = arith.negf %25 : vector<2x32xf32>
    %27 = math.exp %26 : vector<2x32xf32>
    %cst_23 = arith.constant 1.000000e+00 : f32
    %28 = vector.broadcast %cst_23 : f32 to vector<2x32xf32>
    %29 = arith.addf %28, %27 : vector<2x32xf32>
    %30 = arith.divf %28, %29 : vector<2x32xf32>
    %31 = vector.extract_strided_slice %18 {offsets = [0, 64], sizes = [2, 32], strides = [1, 1]} : vector<2x128xf32> to vector<2x32xf32>
    %32 = math.tanh %31 : vector<2x32xf32>
    %33 = vector.extract_strided_slice %18 {offsets = [0, 96], sizes = [2, 32], strides = [1, 1]} : vector<2x128xf32> to vector<2x32xf32>
    %34 = arith.negf %33 : vector<2x32xf32>
    %35 = math.exp %34 : vector<2x32xf32>
    %cst_24 = arith.constant 1.000000e+00 : f32
    %36 = vector.broadcast %cst_24 : f32 to vector<2x32xf32>
    %37 = arith.addf %36, %35 : vector<2x32xf32>
    %38 = arith.divf %36, %37 : vector<2x32xf32>
    %39 = arith.mulf %30, %13 : vector<2x32xf32>
    %40 = arith.mulf %24, %32 : vector<2x32xf32>
    %41 = arith.addf %39, %40 : vector<2x32xf32>
    %42 = math.tanh %41 : vector<2x32xf32>
    %43 = arith.mulf %38, %42 : vector<2x32xf32>
    %cst_25 = arith.constant dense<0.000000e+00> : vector<2x64xf32>
    %44 = tpu.matmul %43, %1, %cst_25 {dimension_numbers = #tpu.dot_dimension_numbers<[1], [0], [0], [1], [0, 0, 1, 1], [], []>} : vector<2x32xf32>, vector<32x64xf32>, vector<2x64xf32> -> vector<2x64xf32>
    %cst_26 = arith.constant dense<0.000000e+00> : vector<2x64xf32>
    %45 = tpu.matmul %14, %2, %cst_26 {dimension_numbers = #tpu.dot_dimension_numbers<[1], [0], [0], [1], [0, 0, 1, 1], [], []>} : vector<2x16xf32>, vector<16x64xf32>, vector<2x64xf32> -> vector<2x64xf32>
    %46 = arith.addf %44, %45 : vector<2x64xf32>
    %47 = vector.broadcast %3 : vector<1x64xf32> to vector<2x64xf32>
    %48 = arith.addf %46, %47 : vector<2x64xf32>
    %49 = vector.extract_strided_slice %48 {offsets = [0, 0], sizes = [2, 16], strides = [1, 1]} : vector<2x64xf32> to vector<2x16xf32>
    %50 = arith.negf %49 : vector<2x16xf32>
    %51 = math.exp %50 : vector<2x16xf32>
    %cst_27 = arith.constant 1.000000e+00 : f32
    %52 = vector.broadcast %cst_27 : f32 to vector<2x16xf32>
    %53 = arith.addf %52, %51 : vector<2x16xf32>
    %54 = arith.divf %52, %53 : vector<2x16xf32>
    %55 = vector.extract_strided_slice %48 {offsets = [0, 16], sizes = [2, 16], strides = [1, 1]} : vector<2x64xf32> to vector<2x16xf32>
    %56 = arith.negf %55 : vector<2x16xf32>
    %57 = math.exp %56 : vector<2x16xf32>
    %cst_28 = arith.constant 1.000000e+00 : f32
    %58 = vector.broadcast %cst_28 : f32 to vector<2x16xf32>
    %59 = arith.addf %58, %57 : vector<2x16xf32>
    %60 = arith.divf %58, %59 : vector<2x16xf32>
    %61 = vector.extract_strided_slice %48 {offsets = [0, 32], sizes = [2, 16], strides = [1, 1]} : vector<2x64xf32> to vector<2x16xf32>
    %62 = math.tanh %61 : vector<2x16xf32>
    %63 = vector.extract_strided_slice %48 {offsets = [0, 48], sizes = [2, 16], strides = [1, 1]} : vector<2x64xf32> to vector<2x16xf32>
    %64 = arith.negf %63 : vector<2x16xf32>
    %65 = math.exp %64 : vector<2x16xf32>
    %cst_29 = arith.constant 1.000000e+00 : f32
    %66 = vector.broadcast %cst_29 : f32 to vector<2x16xf32>
    %67 = arith.addf %66, %65 : vector<2x16xf32>
    %68 = arith.divf %66, %67 : vector<2x16xf32>
    %69 = arith.mulf %60, %15 : vector<2x16xf32>
    %70 = arith.mulf %54, %62 : vector<2x16xf32>
    %71 = arith.addf %69, %70 : vector<2x16xf32>
    %72 = math.tanh %71 : vector<2x16xf32>
    %73 = arith.mulf %68, %72 : vector<2x16xf32>
    %c0_30 = arith.constant 0 : index
    %c0_31 = arith.constant 0 : index
    %74 = vector.load %arg24[%c0_30, %c0_31] : memref<16x16xf32, #tpu.memory_space<vmem>>, vector<2x16xf32>
    tpu.vector_store %arg24[%c0_30, %c0_31], %73 {strides = array<i32>} : memref<16x16xf32, #tpu.memory_space<vmem>>, vector<2x16xf32>,
    %75 = vector.extract_strided_slice %11 {offsets = [2, 0], sizes = [2, 128], strides = [1, 1]} : vector<16x128xf32> to vector<2x128xf32>
    %cst_32 = arith.constant dense<0.000000e+00> : vector<2x128xf32>
    %76 = tpu.matmul %43, %0, %cst_32 {dimension_numbers = #tpu.dot_dimension_numbers<[1], [0], [0], [1], [0, 0, 1, 1], [], []>} : vector<2x32xf32>, vector<32x128xf32>, vector<2x128xf32> -> vector<2x128xf32>
    %77 = arith.addf %75, %76 : vector<2x128xf32>
    %78 = vector.extract_strided_slice %77 {offsets = [0, 0], sizes = [2, 32], strides = [1, 1]} : vector<2x128xf32> to vector<2x32xf32>
    %79 = arith.negf %78 : vector<2x32xf32>
    %80 = math.exp %79 : vector<2x32xf32>
    %cst_33 = arith.constant 1.000000e+00 : f32
    %81 = vector.broadcast %cst_33 : f32 to vector<2x32xf32>
    %82 = arith.addf %81, %80 : vector<2x32xf32>
    %83 = arith.divf %81, %82 : vector<2x32xf32>
    %84 = vector.extract_strided_slice %77 {offsets = [0, 32], sizes = [2, 32], strides = [1, 1]} : vector<2x128xf32> to vector<2x32xf32>
    %85 = arith.negf %84 : vector<2x32xf32>
    %86 = math.exp %85 : vector<2x32xf32>
    %cst_34 = arith.constant 1.000000e+00 : f32
    %87 = vector.broadcast %cst_34 : f32 to vector<2x32xf32>
    %88 = arith.addf %87, %86 : vector<2x32xf32>
    %89 = arith.divf %87, %88 : vector<2x32xf32>
    %90 = vector.extract_strided_slice %77 {offsets = [0, 64], sizes = [2, 32], strides = [1, 1]} : vector<2x128xf32> to vector<2x32xf32>
    %91 = math.tanh %90 : vector<2x32xf32>
    %92 = vector.extract_strided_slice %77 {offsets = [0, 96], sizes = [2, 32], strides = [1, 1]} : vector<2x128xf32> to vector<2x32xf32>
    %93 = arith.negf %92 : vector<2x32xf32>
    %94 = math.exp %93 : vector<2x32xf32>
    %cst_35 = arith.constant 1.000000e+00 : f32
    %95 = vector.broadcast %cst_35 : f32 to vector<2x32xf32>
    %96 = arith.addf %95, %94 : vector<2x32xf32>
    %97 = arith.divf %95, %96 : vector<2x32xf32>
    %98 = arith.mulf %89, %41 : vector<2x32xf32>
    %99 = arith.mulf %83, %91 : vector<2x32xf32>
    %100 = arith.addf %98, %99 : vector<2x32xf32>
    %101 = math.tanh %100 : vector<2x32xf32>
    %102 = arith.mulf %97, %101 : vector<2x32xf32>
    %cst_36 = arith.constant dense<0.000000e+00> : vector<2x64xf32>
    %103 = tpu.matmul %102, %1, %cst_36 {dimension_numbers = #tpu.dot_dimension_numbers<[1], [0], [0], [1], [0, 0, 1, 1], [], []>} : vector<2x32xf32>, vector<32x64xf32>, vector<2x64xf32> -> vector<2x64xf32>
    %cst_37 = arith.constant dense<0.000000e+00> : vector<2x64xf32>
    %104 = tpu.matmul %73, %2, %cst_37 {dimension_numbers = #tpu.dot_dimension_numbers<[1], [0], [0], [1], [0, 0, 1, 1], [], []>} : vector<2x16xf32>, vector<16x64xf32>, vector<2x64xf32> -> vector<2x64xf32>
    %105 = arith.addf %103, %104 : vector<2x64xf32>
    %106 = vector.broadcast %3 : vector<1x64xf32> to vector<2x64xf32>
    %107 = arith.addf %105, %106 : vector<2x64xf32>
    %108 = vector.extract_strided_slice %107 {offsets = [0, 0], sizes = [2, 16], strides = [1, 1]} : vector<2x64xf32> to vector<2x16xf32>
    %109 = arith.negf %108 : vector<2x16xf32>
    %110 = math.exp %109 : vector<2x16xf32>
    %cst_38 = arith.constant 1.000000e+00 : f32
    %111 = vector.broadcast %cst_38 : f32 to vector<2x16xf32>
    %112 = arith.addf %111, %110 : vector<2x16xf32>
    %113 = arith.divf %111, %112 : vector<2x16xf32>
    %114 = vector.extract_strided_slice %107 {offsets = [0, 16], sizes = [2, 16], strides = [1, 1]} : vector<2x64xf32> to vector<2x16xf32>
    %115 = arith.negf %114 : vector<2x16xf32>
    %116 = math.exp %115 : vector<2x16xf32>
    %cst_39 = arith.constant 1.000000e+00 : f32
    %117 = vector.broadcast %cst_39 : f32 to vector<2x16xf32>
    %118 = arith.addf %117, %116 : vector<2x16xf32>
    %119 = arith.divf %117, %118 : vector<2x16xf32>
    %120 = vector.extract_strided_slice %107 {offsets = [0, 32], sizes = [2, 16], strides = [1, 1]} : vector<2x64xf32> to vector<2x16xf32>
    %121 = math.tanh %120 : vector<2x16xf32>
    %122 = vector.extract_strided_slice %107 {offsets = [0, 48], sizes = [2, 16], strides = [1, 1]} : vector<2x64xf32> to vector<2x16xf32>
    %123 = arith.negf %122 : vector<2x16xf32>
    %124 = math.exp %123 : vector<2x16xf32>
    %cst_40 = arith.constant 1.000000e+00 : f32
    %125 = vector.broadcast %cst_40 : f32 to vector<2x16xf32>
    %126 = arith.addf %125, %124 : vector<2x16xf32>
    %127 = arith.divf %125, %126 : vector<2x16xf32>
    %128 = arith.mulf %119, %71 : vector<2x16xf32>
    %129 = arith.mulf %113, %121 : vector<2x16xf32>
    %130 = arith.addf %128, %129 : vector<2x16xf32>
    %131 = math.tanh %130 : vector<2x16xf32>
    %132 = arith.mulf %127, %131 : vector<2x16xf32>
    %c2 = arith.constant 2 : index
    %c0_41 = arith.constant 0 : index
    %133 = vector.load %arg24[%c2, %c0_41] : memref<16x16xf32, #tpu.memory_space<vmem>>, vector<2x16xf32>
    tpu.vector_store %arg24[%c2, %c0_41], %132 {strides = array<i32>} : memref<16x16xf32, #tpu.memory_space<vmem>>, vector<2x16xf32>,
    %134 = vector.extract_strided_slice %11 {offsets = [4, 0], sizes = [2, 128], strides = [1, 1]} : vector<16x128xf32> to vector<2x128xf32>
    %cst_42 = arith.constant dense<0.000000e+00> : vector<2x128xf32>
    %135 = tpu.matmul %102, %0, %cst_42 {dimension_numbers = #tpu.dot_dimension_numbers<[1], [0], [0], [1], [0, 0, 1, 1], [], []>} : vector<2x32xf32>, vector<32x128xf32>, vector<2x128xf32> -> vector<2x128xf32>
    %136 = arith.addf %134, %135 : vector<2x128xf32>
    %137 = vector.extract_strided_slice %136 {offsets = [0, 0], sizes = [2, 32], strides = [1, 1]} : vector<2x128xf32> to vector<2x32xf32>
    %138 = arith.negf %137 : vector<2x32xf32>
    %139 = math.exp %138 : vector<2x32xf32>
    %cst_43 = arith.constant 1.000000e+00 : f32
    %140 = vector.broadcast %cst_43 : f32 to vector<2x32xf32>
    %141 = arith.addf %140, %139 : vector<2x32xf32>
    %142 = arith.divf %140, %141 : vector<2x32xf32>
    %143 = vector.extract_strided_slice %136 {offsets = [0, 32], sizes = [2, 32], strides = [1, 1]} : vector<2x128xf32> to vector<2x32xf32>
    %144 = arith.negf %143 : vector<2x32xf32>
    %145 = math.exp %144 : vector<2x32xf32>
    %cst_44 = arith.constant 1.000000e+00 : f32
    %146 = vector.broadcast %cst_44 : f32 to vector<2x32xf32>
    %147 = arith.addf %146, %145 : vector<2x32xf32>
    %148 = arith.divf %146, %147 : vector<2x32xf32>
    %149 = vector.extract_strided_slice %136 {offsets = [0, 64], sizes = [2, 32], strides = [1, 1]} : vector<2x128xf32> to vector<2x32xf32>
    %150 = math.tanh %149 : vector<2x32xf32>
    %151 = vector.extract_strided_slice %136 {offsets = [0, 96], sizes = [2, 32], strides = [1, 1]} : vector<2x128xf32> to vector<2x32xf32>
    %152 = arith.negf %151 : vector<2x32xf32>
    %153 = math.exp %152 : vector<2x32xf32>
    %cst_45 = arith.constant 1.000000e+00 : f32
    %154 = vector.broadcast %cst_45 : f32 to vector<2x32xf32>
    %155 = arith.addf %154, %153 : vector<2x32xf32>
    %156 = arith.divf %154, %155 : vector<2x32xf32>
    %157 = arith.mulf %148, %100 : vector<2x32xf32>
    %158 = arith.mulf %142, %150 : vector<2x32xf32>
    %159 = arith.addf %157, %158 : vector<2x32xf32>
    %160 = math.tanh %159 : vector<2x32xf32>
    %161 = arith.mulf %156, %160 : vector<2x32xf32>
    %cst_46 = arith.constant dense<0.000000e+00> : vector<2x64xf32>
    %162 = tpu.matmul %161, %1, %cst_46 {dimension_numbers = #tpu.dot_dimension_numbers<[1], [0], [0], [1], [0, 0, 1, 1], [], []>} : vector<2x32xf32>, vector<32x64xf32>, vector<2x64xf32> -> vector<2x64xf32>
    %cst_47 = arith.constant dense<0.000000e+00> : vector<2x64xf32>
    %163 = tpu.matmul %132, %2, %cst_47 {dimension_numbers = #tpu.dot_dimension_numbers<[1], [0], [0], [1], [0, 0, 1, 1], [], []>} : vector<2x16xf32>, vector<16x64xf32>, vector<2x64xf32> -> vector<2x64xf32>
    %164 = arith.addf %162, %163 : vector<2x64xf32>
    %165 = vector.broadcast %3 : vector<1x64xf32> to vector<2x64xf32>
    %166 = arith.addf %164, %165 : vector<2x64xf32>
    %167 = vector.extract_strided_slice %166 {offsets = [0, 0], sizes = [2, 16], strides = [1, 1]} : vector<2x64xf32> to vector<2x16xf32>
    %168 = arith.negf %167 : vector<2x16xf32>
    %169 = math.exp %168 : vector<2x16xf32>
    %cst_48 = arith.constant 1.000000e+00 : f32
    %170 = vector.broadcast %cst_48 : f32 to vector<2x16xf32>
    %171 = arith.addf %170, %169 : vector<2x16xf32>
    %172 = arith.divf %170, %171 : vector<2x16xf32>
    %173 = vector.extract_strided_slice %166 {offsets = [0, 16], sizes = [2, 16], strides = [1, 1]} : vector<2x64xf32> to vector<2x16xf32>
    %174 = arith.negf %173 : vector<2x16xf32>
    %175 = math.exp %174 : vector<2x16xf32>
    %cst_49 = arith.constant 1.000000e+00 : f32
    %176 = vector.broadcast %cst_49 : f32 to vector<2x16xf32>
    %177 = arith.addf %176, %175 : vector<2x16xf32>
    %178 = arith.divf %176, %177 : vector<2x16xf32>
    %179 = vector.extract_strided_slice %166 {offsets = [0, 32], sizes = [2, 16], strides = [1, 1]} : vector<2x64xf32> to vector<2x16xf32>
    %180 = math.tanh %179 : vector<2x16xf32>
    %181 = vector.extract_strided_slice %166 {offsets = [0, 48], sizes = [2, 16], strides = [1, 1]} : vector<2x64xf32> to vector<2x16xf32>
    %182 = arith.negf %181 : vector<2x16xf32>
    %183 = math.exp %182 : vector<2x16xf32>
    %cst_50 = arith.constant 1.000000e+00 : f32
    %184 = vector.broadcast %cst_50 : f32 to vector<2x16xf32>
    %185 = arith.addf %184, %183 : vector<2x16xf32>
    %186 = arith.divf %184, %185 : vector<2x16xf32>
    %187 = arith.mulf %178, %130 : vector<2x16xf32>
    %188 = arith.mulf %172, %180 : vector<2x16xf32>
    %189 = arith.addf %187, %188 : vector<2x16xf32>
    %190 = math.tanh %189 : vector<2x16xf32>
    %191 = arith.mulf %186, %190 : vector<2x16xf32>
    %c4 = arith.constant 4 : index
    %c0_51 = arith.constant 0 : index
    %192 = vector.load %arg24[%c4, %c0_51] : memref<16x16xf32, #tpu.memory_space<vmem>>, vector<2x16xf32>
    tpu.vector_store %arg24[%c4, %c0_51], %191 {strides = array<i32>} : memref<16x16xf32, #tpu.memory_space<vmem>>, vector<2x16xf32>,
    %193 = vector.extract_strided_slice %11 {offsets = [6, 0], sizes = [2, 128], strides = [1, 1]} : vector<16x128xf32> to vector<2x128xf32>
    %cst_52 = arith.constant dense<0.000000e+00> : vector<2x128xf32>
    %194 = tpu.matmul %161, %0, %cst_52 {dimension_numbers = #tpu.dot_dimension_numbers<[1], [0], [0], [1], [0, 0, 1, 1], [], []>} : vector<2x32xf32>, vector<32x128xf32>, vector<2x128xf32> -> vector<2x128xf32>
    %195 = arith.addf %193, %194 : vector<2x128xf32>
    %196 = vector.extract_strided_slice %195 {offsets = [0, 0], sizes = [2, 32], strides = [1, 1]} : vector<2x128xf32> to vector<2x32xf32>
    %197 = arith.negf %196 : vector<2x32xf32>
    %198 = math.exp %197 : vector<2x32xf32>
    %cst_53 = arith.constant 1.000000e+00 : f32
    %199 = vector.broadcast %cst_53 : f32 to vector<2x32xf32>
    %200 = arith.addf %199, %198 : vector<2x32xf32>
    %201 = arith.divf %199, %200 : vector<2x32xf32>
    %202 = vector.extract_strided_slice %195 {offsets = [0, 32], sizes = [2, 32], strides = [1, 1]} : vector<2x128xf32> to vector<2x32xf32>
    %203 = arith.negf %202 : vector<2x32xf32>
    %204 = math.exp %203 : vector<2x32xf32>
    %cst_54 = arith.constant 1.000000e+00 : f32
    %205 = vector.broadcast %cst_54 : f32 to vector<2x32xf32>
    %206 = arith.addf %205, %204 : vector<2x32xf32>
    %207 = arith.divf %205, %206 : vector<2x32xf32>
    %208 = vector.extract_strided_slice %195 {offsets = [0, 64], sizes = [2, 32], strides = [1, 1]} : vector<2x128xf32> to vector<2x32xf32>
    %209 = math.tanh %208 : vector<2x32xf32>
    %210 = vector.extract_strided_slice %195 {offsets = [0, 96], sizes = [2, 32], strides = [1, 1]} : vector<2x128xf32> to vector<2x32xf32>
    %211 = arith.negf %210 : vector<2x32xf32>
    %212 = math.exp %211 : vector<2x32xf32>
    %cst_55 = arith.constant 1.000000e+00 : f32
    %213 = vector.broadcast %cst_55 : f32 to vector<2x32xf32>
    %214 = arith.addf %213, %212 : vector<2x32xf32>
    %215 = arith.divf %213, %214 : vector<2x32xf32>
    %216 = arith.mulf %207, %159 : vector<2x32xf32>
    %217 = arith.mulf %201, %209 : vector<2x32xf32>
    %218 = arith.addf %216, %217 : vector<2x32xf32>
    %219 = math.tanh %218 : vector<2x32xf32>
    %220 = arith.mulf %215, %219 : vector<2x32xf32>
    %cst_56 = arith.constant dense<0.000000e+00> : vector<2x64xf32>
    %221 = tpu.matmul %220, %1, %cst_56 {dimension_numbers = #tpu.dot_dimension_numbers<[1], [0], [0], [1], [0, 0, 1, 1], [], []>} : vector<2x32xf32>, vector<32x64xf32>, vector<2x64xf32> -> vector<2x64xf32>
    %cst_57 = arith.constant dense<0.000000e+00> : vector<2x64xf32>
    %222 = tpu.matmul %191, %2, %cst_57 {dimension_numbers = #tpu.dot_dimension_numbers<[1], [0], [0], [1], [0, 0, 1, 1], [], []>} : vector<2x16xf32>, vector<16x64xf32>, vector<2x64xf32> -> vector<2x64xf32>
    %223 = arith.addf %221, %222 : vector<2x64xf32>
    %224 = vector.broadcast %3 : vector<1x64xf32> to vector<2x64xf32>
    %225 = arith.addf %223, %224 : vector<2x64xf32>
    %226 = vector.extract_strided_slice %225 {offsets = [0, 0], sizes = [2, 16], strides = [1, 1]} : vector<2x64xf32> to vector<2x16xf32>
    %227 = arith.negf %226 : vector<2x16xf32>
    %228 = math.exp %227 : vector<2x16xf32>
    %cst_58 = arith.constant 1.000000e+00 : f32
    %229 = vector.broadcast %cst_58 : f32 to vector<2x16xf32>
    %230 = arith.addf %229, %228 : vector<2x16xf32>
    %231 = arith.divf %229, %230 : vector<2x16xf32>
    %232 = vector.extract_strided_slice %225 {offsets = [0, 16], sizes = [2, 16], strides = [1, 1]} : vector<2x64xf32> to vector<2x16xf32>
    %233 = arith.negf %232 : vector<2x16xf32>
    %234 = math.exp %233 : vector<2x16xf32>
    %cst_59 = arith.constant 1.000000e+00 : f32
    %235 = vector.broadcast %cst_59 : f32 to vector<2x16xf32>
    %236 = arith.addf %235, %234 : vector<2x16xf32>
    %237 = arith.divf %235, %236 : vector<2x16xf32>
    %238 = vector.extract_strided_slice %225 {offsets = [0, 32], sizes = [2, 16], strides = [1, 1]} : vector<2x64xf32> to vector<2x16xf32>
    %239 = math.tanh %238 : vector<2x16xf32>
    %240 = vector.extract_strided_slice %225 {offsets = [0, 48], sizes = [2, 16], strides = [1, 1]} : vector<2x64xf32> to vector<2x16xf32>
    %241 = arith.negf %240 : vector<2x16xf32>
    %242 = math.exp %241 : vector<2x16xf32>
    %cst_60 = arith.constant 1.000000e+00 : f32
    %243 = vector.broadcast %cst_60 : f32 to vector<2x16xf32>
    %244 = arith.addf %243, %242 : vector<2x16xf32>
    %245 = arith.divf %243, %244 : vector<2x16xf32>
    %246 = arith.mulf %237, %189 : vector<2x16xf32>
    %247 = arith.mulf %231, %239 : vector<2x16xf32>
    %248 = arith.addf %246, %247 : vector<2x16xf32>
    %249 = math.tanh %248 : vector<2x16xf32>
    %250 = arith.mulf %245, %249 : vector<2x16xf32>
    %c6 = arith.constant 6 : index
    %c0_61 = arith.constant 0 : index
    %251 = vector.load %arg24[%c6, %c0_61] : memref<16x16xf32, #tpu.memory_space<vmem>>, vector<2x16xf32>
    tpu.vector_store %arg24[%c6, %c0_61], %250 {strides = array<i32>} : memref<16x16xf32, #tpu.memory_space<vmem>>, vector<2x16xf32>,
    %252 = vector.extract_strided_slice %11 {offsets = [8, 0], sizes = [2, 128], strides = [1, 1]} : vector<16x128xf32> to vector<2x128xf32>
    %cst_62 = arith.constant dense<0.000000e+00> : vector<2x128xf32>
    %253 = tpu.matmul %220, %0, %cst_62 {dimension_numbers = #tpu.dot_dimension_numbers<[1], [0], [0], [1], [0, 0, 1, 1], [], []>} : vector<2x32xf32>, vector<32x128xf32>, vector<2x128xf32> -> vector<2x128xf32>
    %254 = arith.addf %252, %253 : vector<2x128xf32>
    %255 = vector.extract_strided_slice %254 {offsets = [0, 0], sizes = [2, 32], strides = [1, 1]} : vector<2x128xf32> to vector<2x32xf32>
    %256 = arith.negf %255 : vector<2x32xf32>
    %257 = math.exp %256 : vector<2x32xf32>
    %cst_63 = arith.constant 1.000000e+00 : f32
    %258 = vector.broadcast %cst_63 : f32 to vector<2x32xf32>
    %259 = arith.addf %258, %257 : vector<2x32xf32>
    %260 = arith.divf %258, %259 : vector<2x32xf32>
    %261 = vector.extract_strided_slice %254 {offsets = [0, 32], sizes = [2, 32], strides = [1, 1]} : vector<2x128xf32> to vector<2x32xf32>
    %262 = arith.negf %261 : vector<2x32xf32>
    %263 = math.exp %262 : vector<2x32xf32>
    %cst_64 = arith.constant 1.000000e+00 : f32
    %264 = vector.broadcast %cst_64 : f32 to vector<2x32xf32>
    %265 = arith.addf %264, %263 : vector<2x32xf32>
    %266 = arith.divf %264, %265 : vector<2x32xf32>
    %267 = vector.extract_strided_slice %254 {offsets = [0, 64], sizes = [2, 32], strides = [1, 1]} : vector<2x128xf32> to vector<2x32xf32>
    %268 = math.tanh %267 : vector<2x32xf32>
    %269 = vector.extract_strided_slice %254 {offsets = [0, 96], sizes = [2, 32], strides = [1, 1]} : vector<2x128xf32> to vector<2x32xf32>
    %270 = arith.negf %269 : vector<2x32xf32>
    %271 = math.exp %270 : vector<2x32xf32>
    %cst_65 = arith.constant 1.000000e+00 : f32
    %272 = vector.broadcast %cst_65 : f32 to vector<2x32xf32>
    %273 = arith.addf %272, %271 : vector<2x32xf32>
    %274 = arith.divf %272, %273 : vector<2x32xf32>
    %275 = arith.mulf %266, %218 : vector<2x32xf32>
    %276 = arith.mulf %260, %268 : vector<2x32xf32>
    %277 = arith.addf %275, %276 : vector<2x32xf32>
    %278 = math.tanh %277 : vector<2x32xf32>
    %279 = arith.mulf %274, %278 : vector<2x32xf32>
    %cst_66 = arith.constant dense<0.000000e+00> : vector<2x64xf32>
    %280 = tpu.matmul %279, %1, %cst_66 {dimension_numbers = #tpu.dot_dimension_numbers<[1], [0], [0], [1], [0, 0, 1, 1], [], []>} : vector<2x32xf32>, vector<32x64xf32>, vector<2x64xf32> -> vector<2x64xf32>
    %cst_67 = arith.constant dense<0.000000e+00> : vector<2x64xf32>
    %281 = tpu.matmul %250, %2, %cst_67 {dimension_numbers = #tpu.dot_dimension_numbers<[1], [0], [0], [1], [0, 0, 1, 1], [], []>} : vector<2x16xf32>, vector<16x64xf32>, vector<2x64xf32> -> vector<2x64xf32>
    %282 = arith.addf %280, %281 : vector<2x64xf32>
    %283 = vector.broadcast %3 : vector<1x64xf32> to vector<2x64xf32>
    %284 = arith.addf %282, %283 : vector<2x64xf32>
    %285 = vector.extract_strided_slice %284 {offsets = [0, 0], sizes = [2, 16], strides = [1, 1]} : vector<2x64xf32> to vector<2x16xf32>
    %286 = arith.negf %285 : vector<2x16xf32>
    %287 = math.exp %286 : vector<2x16xf32>
    %cst_68 = arith.constant 1.000000e+00 : f32
    %288 = vector.broadcast %cst_68 : f32 to vector<2x16xf32>
    %289 = arith.addf %288, %287 : vector<2x16xf32>
    %290 = arith.divf %288, %289 : vector<2x16xf32>
    %291 = vector.extract_strided_slice %284 {offsets = [0, 16], sizes = [2, 16], strides = [1, 1]} : vector<2x64xf32> to vector<2x16xf32>
    %292 = arith.negf %291 : vector<2x16xf32>
    %293 = math.exp %292 : vector<2x16xf32>
    %cst_69 = arith.constant 1.000000e+00 : f32
    %294 = vector.broadcast %cst_69 : f32 to vector<2x16xf32>
    %295 = arith.addf %294, %293 : vector<2x16xf32>
    %296 = arith.divf %294, %295 : vector<2x16xf32>
    %297 = vector.extract_strided_slice %284 {offsets = [0, 32], sizes = [2, 16], strides = [1, 1]} : vector<2x64xf32> to vector<2x16xf32>
    %298 = math.tanh %297 : vector<2x16xf32>
    %299 = vector.extract_strided_slice %284 {offsets = [0, 48], sizes = [2, 16], strides = [1, 1]} : vector<2x64xf32> to vector<2x16xf32>
    %300 = arith.negf %299 : vector<2x16xf32>
    %301 = math.exp %300 : vector<2x16xf32>
    %cst_70 = arith.constant 1.000000e+00 : f32
    %302 = vector.broadcast %cst_70 : f32 to vector<2x16xf32>
    %303 = arith.addf %302, %301 : vector<2x16xf32>
    %304 = arith.divf %302, %303 : vector<2x16xf32>
    %305 = arith.mulf %296, %248 : vector<2x16xf32>
    %306 = arith.mulf %290, %298 : vector<2x16xf32>
    %307 = arith.addf %305, %306 : vector<2x16xf32>
    %308 = math.tanh %307 : vector<2x16xf32>
    %309 = arith.mulf %304, %308 : vector<2x16xf32>
    %c8 = arith.constant 8 : index
    %c0_71 = arith.constant 0 : index
    %310 = vector.load %arg24[%c8, %c0_71] : memref<16x16xf32, #tpu.memory_space<vmem>>, vector<2x16xf32>
    tpu.vector_store %arg24[%c8, %c0_71], %309 {strides = array<i32>} : memref<16x16xf32, #tpu.memory_space<vmem>>, vector<2x16xf32>,
    %311 = vector.extract_strided_slice %11 {offsets = [10, 0], sizes = [2, 128], strides = [1, 1]} : vector<16x128xf32> to vector<2x128xf32>
    %cst_72 = arith.constant dense<0.000000e+00> : vector<2x128xf32>
    %312 = tpu.matmul %279, %0, %cst_72 {dimension_numbers = #tpu.dot_dimension_numbers<[1], [0], [0], [1], [0, 0, 1, 1], [], []>} : vector<2x32xf32>, vector<32x128xf32>, vector<2x128xf32> -> vector<2x128xf32>
    %313 = arith.addf %311, %312 : vector<2x128xf32>
    %314 = vector.extract_strided_slice %313 {offsets = [0, 0], sizes = [2, 32], strides = [1, 1]} : vector<2x128xf32> to vector<2x32xf32>
    %315 = arith.negf %314 : vector<2x32xf32>
    %316 = math.exp %315 : vector<2x32xf32>
    %cst_73 = arith.constant 1.000000e+00 : f32
    %317 = vector.broadcast %cst_73 : f32 to vector<2x32xf32>
    %318 = arith.addf %317, %316 : vector<2x32xf32>
    %319 = arith.divf %317, %318 : vector<2x32xf32>
    %320 = vector.extract_strided_slice %313 {offsets = [0, 32], sizes = [2, 32], strides = [1, 1]} : vector<2x128xf32> to vector<2x32xf32>
    %321 = arith.negf %320 : vector<2x32xf32>
    %322 = math.exp %321 : vector<2x32xf32>
    %cst_74 = arith.constant 1.000000e+00 : f32
    %323 = vector.broadcast %cst_74 : f32 to vector<2x32xf32>
    %324 = arith.addf %323, %322 : vector<2x32xf32>
    %325 = arith.divf %323, %324 : vector<2x32xf32>
    %326 = vector.extract_strided_slice %313 {offsets = [0, 64], sizes = [2, 32], strides = [1, 1]} : vector<2x128xf32> to vector<2x32xf32>
    %327 = math.tanh %326 : vector<2x32xf32>
    %328 = vector.extract_strided_slice %313 {offsets = [0, 96], sizes = [2, 32], strides = [1, 1]} : vector<2x128xf32> to vector<2x32xf32>
    %329 = arith.negf %328 : vector<2x32xf32>
    %330 = math.exp %329 : vector<2x32xf32>
    %cst_75 = arith.constant 1.000000e+00 : f32
    %331 = vector.broadcast %cst_75 : f32 to vector<2x32xf32>
    %332 = arith.addf %331, %330 : vector<2x32xf32>
    %333 = arith.divf %331, %332 : vector<2x32xf32>
    %334 = arith.mulf %325, %277 : vector<2x32xf32>
    %335 = arith.mulf %319, %327 : vector<2x32xf32>
    %336 = arith.addf %334, %335 : vector<2x32xf32>
    %337 = math.tanh %336 : vector<2x32xf32>
    %338 = arith.mulf %333, %337 : vector<2x32xf32>
    %cst_76 = arith.constant dense<0.000000e+00> : vector<2x64xf32>
    %339 = tpu.matmul %338, %1, %cst_76 {dimension_numbers = #tpu.dot_dimension_numbers<[1], [0], [0], [1], [0, 0, 1, 1], [], []>} : vector<2x32xf32>, vector<32x64xf32>, vector<2x64xf32> -> vector<2x64xf32>
    %cst_77 = arith.constant dense<0.000000e+00> : vector<2x64xf32>
    %340 = tpu.matmul %309, %2, %cst_77 {dimension_numbers = #tpu.dot_dimension_numbers<[1], [0], [0], [1], [0, 0, 1, 1], [], []>} : vector<2x16xf32>, vector<16x64xf32>, vector<2x64xf32> -> vector<2x64xf32>
    %341 = arith.addf %339, %340 : vector<2x64xf32>
    %342 = vector.broadcast %3 : vector<1x64xf32> to vector<2x64xf32>
    %343 = arith.addf %341, %342 : vector<2x64xf32>
    %344 = vector.extract_strided_slice %343 {offsets = [0, 0], sizes = [2, 16], strides = [1, 1]} : vector<2x64xf32> to vector<2x16xf32>
    %345 = arith.negf %344 : vector<2x16xf32>
    %346 = math.exp %345 : vector<2x16xf32>
    %cst_78 = arith.constant 1.000000e+00 : f32
    %347 = vector.broadcast %cst_78 : f32 to vector<2x16xf32>
    %348 = arith.addf %347, %346 : vector<2x16xf32>
    %349 = arith.divf %347, %348 : vector<2x16xf32>
    %350 = vector.extract_strided_slice %343 {offsets = [0, 16], sizes = [2, 16], strides = [1, 1]} : vector<2x64xf32> to vector<2x16xf32>
    %351 = arith.negf %350 : vector<2x16xf32>
    %352 = math.exp %351 : vector<2x16xf32>
    %cst_79 = arith.constant 1.000000e+00 : f32
    %353 = vector.broadcast %cst_79 : f32 to vector<2x16xf32>
    %354 = arith.addf %353, %352 : vector<2x16xf32>
    %355 = arith.divf %353, %354 : vector<2x16xf32>
    %356 = vector.extract_strided_slice %343 {offsets = [0, 32], sizes = [2, 16], strides = [1, 1]} : vector<2x64xf32> to vector<2x16xf32>
    %357 = math.tanh %356 : vector<2x16xf32>
    %358 = vector.extract_strided_slice %343 {offsets = [0, 48], sizes = [2, 16], strides = [1, 1]} : vector<2x64xf32> to vector<2x16xf32>
    %359 = arith.negf %358 : vector<2x16xf32>
    %360 = math.exp %359 : vector<2x16xf32>
    %cst_80 = arith.constant 1.000000e+00 : f32
    %361 = vector.broadcast %cst_80 : f32 to vector<2x16xf32>
    %362 = arith.addf %361, %360 : vector<2x16xf32>
    %363 = arith.divf %361, %362 : vector<2x16xf32>
    %364 = arith.mulf %355, %307 : vector<2x16xf32>
    %365 = arith.mulf %349, %357 : vector<2x16xf32>
    %366 = arith.addf %364, %365 : vector<2x16xf32>
    %367 = math.tanh %366 : vector<2x16xf32>
    %368 = arith.mulf %363, %367 : vector<2x16xf32>
    %c10 = arith.constant 10 : index
    %c0_81 = arith.constant 0 : index
    %369 = vector.load %arg24[%c10, %c0_81] : memref<16x16xf32, #tpu.memory_space<vmem>>, vector<2x16xf32>
    tpu.vector_store %arg24[%c10, %c0_81], %368 {strides = array<i32>} : memref<16x16xf32, #tpu.memory_space<vmem>>, vector<2x16xf32>,
    %370 = vector.extract_strided_slice %11 {offsets = [12, 0], sizes = [2, 128], strides = [1, 1]} : vector<16x128xf32> to vector<2x128xf32>
    %cst_82 = arith.constant dense<0.000000e+00> : vector<2x128xf32>
    %371 = tpu.matmul %338, %0, %cst_82 {dimension_numbers = #tpu.dot_dimension_numbers<[1], [0], [0], [1], [0, 0, 1, 1], [], []>} : vector<2x32xf32>, vector<32x128xf32>, vector<2x128xf32> -> vector<2x128xf32>
    %372 = arith.addf %370, %371 : vector<2x128xf32>
    %373 = vector.extract_strided_slice %372 {offsets = [0, 0], sizes = [2, 32], strides = [1, 1]} : vector<2x128xf32> to vector<2x32xf32>
    %374 = arith.negf %373 : vector<2x32xf32>
    %375 = math.exp %374 : vector<2x32xf32>
    %cst_83 = arith.constant 1.000000e+00 : f32
    %376 = vector.broadcast %cst_83 : f32 to vector<2x32xf32>
    %377 = arith.addf %376, %375 : vector<2x32xf32>
    %378 = arith.divf %376, %377 : vector<2x32xf32>
    %379 = vector.extract_strided_slice %372 {offsets = [0, 32], sizes = [2, 32], strides = [1, 1]} : vector<2x128xf32> to vector<2x32xf32>
    %380 = arith.negf %379 : vector<2x32xf32>
    %381 = math.exp %380 : vector<2x32xf32>
    %cst_84 = arith.constant 1.000000e+00 : f32
    %382 = vector.broadcast %cst_84 : f32 to vector<2x32xf32>
    %383 = arith.addf %382, %381 : vector<2x32xf32>
    %384 = arith.divf %382, %383 : vector<2x32xf32>
    %385 = vector.extract_strided_slice %372 {offsets = [0, 64], sizes = [2, 32], strides = [1, 1]} : vector<2x128xf32> to vector<2x32xf32>
    %386 = math.tanh %385 : vector<2x32xf32>
    %387 = vector.extract_strided_slice %372 {offsets = [0, 96], sizes = [2, 32], strides = [1, 1]} : vector<2x128xf32> to vector<2x32xf32>
    %388 = arith.negf %387 : vector<2x32xf32>
    %389 = math.exp %388 : vector<2x32xf32>
    %cst_85 = arith.constant 1.000000e+00 : f32
    %390 = vector.broadcast %cst_85 : f32 to vector<2x32xf32>
    %391 = arith.addf %390, %389 : vector<2x32xf32>
    %392 = arith.divf %390, %391 : vector<2x32xf32>
    %393 = arith.mulf %384, %336 : vector<2x32xf32>
    %394 = arith.mulf %378, %386 : vector<2x32xf32>
    %395 = arith.addf %393, %394 : vector<2x32xf32>
    %396 = math.tanh %395 : vector<2x32xf32>
    %397 = arith.mulf %392, %396 : vector<2x32xf32>
    %cst_86 = arith.constant dense<0.000000e+00> : vector<2x64xf32>
    %398 = tpu.matmul %397, %1, %cst_86 {dimension_numbers = #tpu.dot_dimension_numbers<[1], [0], [0], [1], [0, 0, 1, 1], [], []>} : vector<2x32xf32>, vector<32x64xf32>, vector<2x64xf32> -> vector<2x64xf32>
    %cst_87 = arith.constant dense<0.000000e+00> : vector<2x64xf32>
    %399 = tpu.matmul %368, %2, %cst_87 {dimension_numbers = #tpu.dot_dimension_numbers<[1], [0], [0], [1], [0, 0, 1, 1], [], []>} : vector<2x16xf32>, vector<16x64xf32>, vector<2x64xf32> -> vector<2x64xf32>
    %400 = arith.addf %398, %399 : vector<2x64xf32>
    %401 = vector.broadcast %3 : vector<1x64xf32> to vector<2x64xf32>
    %402 = arith.addf %400, %401 : vector<2x64xf32>
    %403 = vector.extract_strided_slice %402 {offsets = [0, 0], sizes = [2, 16], strides = [1, 1]} : vector<2x64xf32> to vector<2x16xf32>
    %404 = arith.negf %403 : vector<2x16xf32>
    %405 = math.exp %404 : vector<2x16xf32>
    %cst_88 = arith.constant 1.000000e+00 : f32
    %406 = vector.broadcast %cst_88 : f32 to vector<2x16xf32>
    %407 = arith.addf %406, %405 : vector<2x16xf32>
    %408 = arith.divf %406, %407 : vector<2x16xf32>
    %409 = vector.extract_strided_slice %402 {offsets = [0, 16], sizes = [2, 16], strides = [1, 1]} : vector<2x64xf32> to vector<2x16xf32>
    %410 = arith.negf %409 : vector<2x16xf32>
    %411 = math.exp %410 : vector<2x16xf32>
    %cst_89 = arith.constant 1.000000e+00 : f32
    %412 = vector.broadcast %cst_89 : f32 to vector<2x16xf32>
    %413 = arith.addf %412, %411 : vector<2x16xf32>
    %414 = arith.divf %412, %413 : vector<2x16xf32>
    %415 = vector.extract_strided_slice %402 {offsets = [0, 32], sizes = [2, 16], strides = [1, 1]} : vector<2x64xf32> to vector<2x16xf32>
    %416 = math.tanh %415 : vector<2x16xf32>
    %417 = vector.extract_strided_slice %402 {offsets = [0, 48], sizes = [2, 16], strides = [1, 1]} : vector<2x64xf32> to vector<2x16xf32>
    %418 = arith.negf %417 : vector<2x16xf32>
    %419 = math.exp %418 : vector<2x16xf32>
    %cst_90 = arith.constant 1.000000e+00 : f32
    %420 = vector.broadcast %cst_90 : f32 to vector<2x16xf32>
    %421 = arith.addf %420, %419 : vector<2x16xf32>
    %422 = arith.divf %420, %421 : vector<2x16xf32>
    %423 = arith.mulf %414, %366 : vector<2x16xf32>
    %424 = arith.mulf %408, %416 : vector<2x16xf32>
    %425 = arith.addf %423, %424 : vector<2x16xf32>
    %426 = math.tanh %425 : vector<2x16xf32>
    %427 = arith.mulf %422, %426 : vector<2x16xf32>
    %c12 = arith.constant 12 : index
    %c0_91 = arith.constant 0 : index
    %428 = vector.load %arg24[%c12, %c0_91] : memref<16x16xf32, #tpu.memory_space<vmem>>, vector<2x16xf32>
    tpu.vector_store %arg24[%c12, %c0_91], %427 {strides = array<i32>} : memref<16x16xf32, #tpu.memory_space<vmem>>, vector<2x16xf32>,
    %429 = vector.extract_strided_slice %11 {offsets = [14, 0], sizes = [2, 128], strides = [1, 1]} : vector<16x128xf32> to vector<2x128xf32>
    %cst_92 = arith.constant dense<0.000000e+00> : vector<2x128xf32>
    %430 = tpu.matmul %397, %0, %cst_92 {dimension_numbers = #tpu.dot_dimension_numbers<[1], [0], [0], [1], [0, 0, 1, 1], [], []>} : vector<2x32xf32>, vector<32x128xf32>, vector<2x128xf32> -> vector<2x128xf32>
    %431 = arith.addf %429, %430 : vector<2x128xf32>
    %432 = vector.extract_strided_slice %431 {offsets = [0, 0], sizes = [2, 32], strides = [1, 1]} : vector<2x128xf32> to vector<2x32xf32>
    %433 = arith.negf %432 : vector<2x32xf32>
    %434 = math.exp %433 : vector<2x32xf32>
    %cst_93 = arith.constant 1.000000e+00 : f32
    %435 = vector.broadcast %cst_93 : f32 to vector<2x32xf32>
    %436 = arith.addf %435, %434 : vector<2x32xf32>
    %437 = arith.divf %435, %436 : vector<2x32xf32>
    %438 = vector.extract_strided_slice %431 {offsets = [0, 32], sizes = [2, 32], strides = [1, 1]} : vector<2x128xf32> to vector<2x32xf32>
    %439 = arith.negf %438 : vector<2x32xf32>
    %440 = math.exp %439 : vector<2x32xf32>
    %cst_94 = arith.constant 1.000000e+00 : f32
    %441 = vector.broadcast %cst_94 : f32 to vector<2x32xf32>
    %442 = arith.addf %441, %440 : vector<2x32xf32>
    %443 = arith.divf %441, %442 : vector<2x32xf32>
    %444 = vector.extract_strided_slice %431 {offsets = [0, 64], sizes = [2, 32], strides = [1, 1]} : vector<2x128xf32> to vector<2x32xf32>
    %445 = math.tanh %444 : vector<2x32xf32>
    %446 = vector.extract_strided_slice %431 {offsets = [0, 96], sizes = [2, 32], strides = [1, 1]} : vector<2x128xf32> to vector<2x32xf32>
    %447 = arith.negf %446 : vector<2x32xf32>
    %448 = math.exp %447 : vector<2x32xf32>
    %cst_95 = arith.constant 1.000000e+00 : f32
    %449 = vector.broadcast %cst_95 : f32 to vector<2x32xf32>
    %450 = arith.addf %449, %448 : vector<2x32xf32>
    %451 = arith.divf %449, %450 : vector<2x32xf32>
    %452 = arith.mulf %443, %395 : vector<2x32xf32>
    %453 = arith.mulf %437, %445 : vector<2x32xf32>
    %454 = arith.addf %452, %453 : vector<2x32xf32>
    %455 = math.tanh %454 : vector<2x32xf32>
    %456 = arith.mulf %451, %455 : vector<2x32xf32>
    %cst_96 = arith.constant dense<0.000000e+00> : vector<2x64xf32>
    %457 = tpu.matmul %456, %1, %cst_96 {dimension_numbers = #tpu.dot_dimension_numbers<[1], [0], [0], [1], [0, 0, 1, 1], [], []>} : vector<2x32xf32>, vector<32x64xf32>, vector<2x64xf32> -> vector<2x64xf32>
    %cst_97 = arith.constant dense<0.000000e+00> : vector<2x64xf32>
    %458 = tpu.matmul %427, %2, %cst_97 {dimension_numbers = #tpu.dot_dimension_numbers<[1], [0], [0], [1], [0, 0, 1, 1], [], []>} : vector<2x16xf32>, vector<16x64xf32>, vector<2x64xf32> -> vector<2x64xf32>
    %459 = arith.addf %457, %458 : vector<2x64xf32>
    %460 = vector.broadcast %3 : vector<1x64xf32> to vector<2x64xf32>
    %461 = arith.addf %459, %460 : vector<2x64xf32>
    %462 = vector.extract_strided_slice %461 {offsets = [0, 0], sizes = [2, 16], strides = [1, 1]} : vector<2x64xf32> to vector<2x16xf32>
    %463 = arith.negf %462 : vector<2x16xf32>
    %464 = math.exp %463 : vector<2x16xf32>
    %cst_98 = arith.constant 1.000000e+00 : f32
    %465 = vector.broadcast %cst_98 : f32 to vector<2x16xf32>
    %466 = arith.addf %465, %464 : vector<2x16xf32>
    %467 = arith.divf %465, %466 : vector<2x16xf32>
    %468 = vector.extract_strided_slice %461 {offsets = [0, 16], sizes = [2, 16], strides = [1, 1]} : vector<2x64xf32> to vector<2x16xf32>
    %469 = arith.negf %468 : vector<2x16xf32>
    %470 = math.exp %469 : vector<2x16xf32>
    %cst_99 = arith.constant 1.000000e+00 : f32
    %471 = vector.broadcast %cst_99 : f32 to vector<2x16xf32>
    %472 = arith.addf %471, %470 : vector<2x16xf32>
    %473 = arith.divf %471, %472 : vector<2x16xf32>
    %474 = vector.extract_strided_slice %461 {offsets = [0, 32], sizes = [2, 16], strides = [1, 1]} : vector<2x64xf32> to vector<2x16xf32>
    %475 = math.tanh %474 : vector<2x16xf32>
    %476 = vector.extract_strided_slice %461 {offsets = [0, 48], sizes = [2, 16], strides = [1, 1]} : vector<2x64xf32> to vector<2x16xf32>
    %477 = arith.negf %476 : vector<2x16xf32>
    %478 = math.exp %477 : vector<2x16xf32>
    %cst_100 = arith.constant 1.000000e+00 : f32
    %479 = vector.broadcast %cst_100 : f32 to vector<2x16xf32>
    %480 = arith.addf %479, %478 : vector<2x16xf32>
    %481 = arith.divf %479, %480 : vector<2x16xf32>
    %482 = arith.mulf %473, %425 : vector<2x16xf32>
    %483 = arith.mulf %467, %475 : vector<2x16xf32>
    %484 = arith.addf %482, %483 : vector<2x16xf32>
    %485 = math.tanh %484 : vector<2x16xf32>
    %486 = arith.mulf %481, %485 : vector<2x16xf32>
    %c14 = arith.constant 14 : index
    %c0_101 = arith.constant 0 : index
    %487 = vector.load %arg24[%c14, %c0_101] : memref<16x16xf32, #tpu.memory_space<vmem>>, vector<2x16xf32>
    tpu.vector_store %arg24[%c14, %c0_101], %486 {strides = array<i32>} : memref<16x16xf32, #tpu.memory_space<vmem>>, vector<2x16xf32>,
    %c0_102 = arith.constant 0 : index
    %c0_103 = arith.constant 0 : index
    %488 = vector.load %arg24[%c0_102, %c0_103] : memref<16x16xf32, #tpu.memory_space<vmem>>, vector<16x16xf32>
    %c0_104 = arith.constant 0 : index
    %c0_105 = arith.constant 0 : index
    %489 = vector.load %arg8[%c0_104, %c0_105] : memref<16x16xf32, #tpu.memory_space<vmem>>, vector<16x16xf32>
    %cst_106 = arith.constant dense<0.000000e+00> : vector<16x16xf32>
    %490 = tpu.matmul %488, %489, %cst_106 {dimension_numbers = #tpu.dot_dimension_numbers<[1], [0], [0], [1], [0, 0, 1, 1], [], []>} : vector<16x16xf32>, vector<16x16xf32>, vector<16x16xf32> -> vector<16x16xf32>
    %c0_107 = arith.constant 0 : index
    %c0_108 = arith.constant 0 : index
    %491 = vector.load %arg11[%c0_107, %c0_108] : memref<1x16xf32, #tpu.memory_space<vmem>>, vector<1x16xf32>
    %492 = vector.broadcast %491 : vector<1x16xf32> to vector<16x16xf32>
    %493 = arith.addf %490, %492 : vector<16x16xf32>
    %c0_109 = arith.constant 0 : index
    %c0_110 = arith.constant 0 : index
    %494 = vector.load %arg9[%c0_109, %c0_110] : memref<16x16xf32, #tpu.memory_space<vmem>>, vector<16x16xf32>
    %cst_111 = arith.constant dense<0.000000e+00> : vector<16x16xf32>
    %495 = tpu.matmul %488, %494, %cst_111 {dimension_numbers = #tpu.dot_dimension_numbers<[1], [0], [0], [1], [0, 0, 1, 1], [], []>} : vector<16x16xf32>, vector<16x16xf32>, vector<16x16xf32> -> vector<16x16xf32>
    %c0_112 = arith.constant 0 : index
    %c0_113 = arith.constant 0 : index
    %496 = vector.load %arg12[%c0_112, %c0_113] : memref<1x16xf32, #tpu.memory_space<vmem>>, vector<1x16xf32>
    %497 = vector.broadcast %496 : vector<1x16xf32> to vector<16x16xf32>
    %498 = arith.addf %495, %497 : vector<16x16xf32>
    %c0_114 = arith.constant 0 : index
    %c0_115 = arith.constant 0 : index
    %499 = vector.load %arg7[%c0_114, %c0_115] : memref<16x16xf32, #tpu.memory_space<vmem>>, vector<16x16xf32>
    %cst_116 = arith.constant dense<0.000000e+00> : vector<2x16xf32>
    %500 = tpu.matmul %486, %499, %cst_116 {dimension_numbers = #tpu.dot_dimension_numbers<[1], [0], [0], [1], [0, 0, 1, 1], [], []>} : vector<2x16xf32>, vector<16x16xf32>, vector<2x16xf32> -> vector<2x16xf32>
    %c0_117 = arith.constant 0 : index
    %c0_118 = arith.constant 0 : index
    %501 = vector.load %arg10[%c0_117, %c0_118] : memref<1x16xf32, #tpu.memory_space<vmem>>, vector<1x16xf32>
    %502 = vector.broadcast %501 : vector<1x16xf32> to vector<2x16xf32>
    %503 = arith.addf %500, %502 : vector<2x16xf32>
    %cst_119 = arith.constant 0.707106769 : f32
    %504 = vector.broadcast %cst_119 : f32 to vector<2x16xf32>
    %505 = arith.mulf %503, %504 : vector<2x16xf32>
    %506 = vector.extract_strided_slice %493 {offsets = [0, 0], sizes = [2, 16], strides = [1, 1]} : vector<16x16xf32> to vector<2x16xf32>
    %507 = arith.mulf %505, %506 : vector<2x16xf32>
    %cst_120 = arith.constant dense<0.000000e+00> : vector<2x8xf32>
    %508 = tpu.matmul %507, %4, %cst_120 {dimension_numbers = #tpu.dot_dimension_numbers<[1], [0], [0], [1], [0, 0, 1, 1], [], []>} : vector<2x16xf32>, vector<16x8xf32>, vector<2x8xf32> -> vector<2x8xf32>
    %509 = vector.extract_strided_slice %493 {offsets = [2, 0], sizes = [2, 16], strides = [1, 1]} : vector<16x16xf32> to vector<2x16xf32>
    %510 = arith.mulf %505, %509 : vector<2x16xf32>
    %cst_121 = arith.constant dense<0.000000e+00> : vector<2x8xf32>
    %511 = tpu.matmul %510, %4, %cst_121 {dimension_numbers = #tpu.dot_dimension_numbers<[1], [0], [0], [1], [0, 0, 1, 1], [], []>} : vector<2x16xf32>, vector<16x8xf32>, vector<2x8xf32> -> vector<2x8xf32>
    %512 = vector.extract_strided_slice %493 {offsets = [4, 0], sizes = [2, 16], strides = [1, 1]} : vector<16x16xf32> to vector<2x16xf32>
    %513 = arith.mulf %505, %512 : vector<2x16xf32>
    %cst_122 = arith.constant dense<0.000000e+00> : vector<2x8xf32>
    %514 = tpu.matmul %513, %4, %cst_122 {dimension_numbers = #tpu.dot_dimension_numbers<[1], [0], [0], [1], [0, 0, 1, 1], [], []>} : vector<2x16xf32>, vector<16x8xf32>, vector<2x8xf32> -> vector<2x8xf32>
    %515 = vector.extract_strided_slice %493 {offsets = [6, 0], sizes = [2, 16], strides = [1, 1]} : vector<16x16xf32> to vector<2x16xf32>
    %516 = arith.mulf %505, %515 : vector<2x16xf32>
    %cst_123 = arith.constant dense<0.000000e+00> : vector<2x8xf32>
    %517 = tpu.matmul %516, %4, %cst_123 {dimension_numbers = #tpu.dot_dimension_numbers<[1], [0], [0], [1], [0, 0, 1, 1], [], []>} : vector<2x16xf32>, vector<16x8xf32>, vector<2x8xf32> -> vector<2x8xf32>
    %518 = vector.extract_strided_slice %493 {offsets = [8, 0], sizes = [2, 16], strides = [1, 1]} : vector<16x16xf32> to vector<2x16xf32>
    %519 = arith.mulf %505, %518 : vector<2x16xf32>
    %cst_124 = arith.constant dense<0.000000e+00> : vector<2x8xf32>
    %520 = tpu.matmul %519, %4, %cst_124 {dimension_numbers = #tpu.dot_dimension_numbers<[1], [0], [0], [1], [0, 0, 1, 1], [], []>} : vector<2x16xf32>, vector<16x8xf32>, vector<2x8xf32> -> vector<2x8xf32>
    %521 = vector.extract_strided_slice %493 {offsets = [10, 0], sizes = [2, 16], strides = [1, 1]} : vector<16x16xf32> to vector<2x16xf32>
    %522 = arith.mulf %505, %521 : vector<2x16xf32>
    %cst_125 = arith.constant dense<0.000000e+00> : vector<2x8xf32>
    %523 = tpu.matmul %522, %4, %cst_125 {dimension_numbers = #tpu.dot_dimension_numbers<[1], [0], [0], [1], [0, 0, 1, 1], [], []>} : vector<2x16xf32>, vector<16x8xf32>, vector<2x8xf32> -> vector<2x8xf32>
    %524 = vector.extract_strided_slice %493 {offsets = [12, 0], sizes = [2, 16], strides = [1, 1]} : vector<16x16xf32> to vector<2x16xf32>
    %525 = arith.mulf %505, %524 : vector<2x16xf32>
    %cst_126 = arith.constant dense<0.000000e+00> : vector<2x8xf32>
    %526 = tpu.matmul %525, %4, %cst_126 {dimension_numbers = #tpu.dot_dimension_numbers<[1], [0], [0], [1], [0, 0, 1, 1], [], []>} : vector<2x16xf32>, vector<16x8xf32>, vector<2x8xf32> -> vector<2x8xf32>
    %527 = vector.extract_strided_slice %493 {offsets = [14, 0], sizes = [2, 16], strides = [1, 1]} : vector<16x16xf32> to vector<2x16xf32>
    %528 = arith.mulf %505, %527 : vector<2x16xf32>
    %cst_127 = arith.constant dense<0.000000e+00> : vector<2x8xf32>
    %529 = tpu.matmul %528, %4, %cst_127 {dimension_numbers = #tpu.dot_dimension_numbers<[1], [0], [0], [1], [0, 0, 1, 1], [], []>} : vector<2x16xf32>, vector<16x8xf32>, vector<2x8xf32> -> vector<2x8xf32>
    %530 = arith.maximumf %508, %511 : vector<2x8xf32>
    %531 = arith.maximumf %530, %514 : vector<2x8xf32>
    %532 = arith.maximumf %531, %517 : vector<2x8xf32>
    %533 = arith.maximumf %532, %520 : vector<2x8xf32>
    %534 = arith.maximumf %533, %523 : vector<2x8xf32>
    %535 = arith.maximumf %534, %526 : vector<2x8xf32>
    %536 = arith.maximumf %535, %529 : vector<2x8xf32>
    %537 = arith.subf %508, %536 : vector<2x8xf32>
    %538 = math.exp %537 : vector<2x8xf32>
    %539 = arith.subf %511, %536 : vector<2x8xf32>
    %540 = math.exp %539 : vector<2x8xf32>
    %541 = arith.subf %514, %536 : vector<2x8xf32>
    %542 = math.exp %541 : vector<2x8xf32>
    %543 = arith.subf %517, %536 : vector<2x8xf32>
    %544 = math.exp %543 : vector<2x8xf32>
    %545 = arith.subf %520, %536 : vector<2x8xf32>
    %546 = math.exp %545 : vector<2x8xf32>
    %547 = arith.subf %523, %536 : vector<2x8xf32>
    %548 = math.exp %547 : vector<2x8xf32>
    %549 = arith.subf %526, %536 : vector<2x8xf32>
    %550 = math.exp %549 : vector<2x8xf32>
    %551 = arith.subf %529, %536 : vector<2x8xf32>
    %552 = math.exp %551 : vector<2x8xf32>
    %553 = arith.addf %538, %540 : vector<2x8xf32>
    %554 = arith.addf %553, %542 : vector<2x8xf32>
    %555 = arith.addf %554, %544 : vector<2x8xf32>
    %556 = arith.addf %555, %546 : vector<2x8xf32>
    %557 = arith.addf %556, %548 : vector<2x8xf32>
    %558 = arith.addf %557, %550 : vector<2x8xf32>
    %559 = arith.addf %558, %552 : vector<2x8xf32>
    %560 = tpu.reciprocal %559 {approx = true} : vector<2x8xf32> -> vector<2x8xf32>
    %cst_128 = arith.constant 0.000000e+00 : f32
    %561 = vector.broadcast %cst_128 : f32 to vector<2x16xf32>
    %cst_129 = arith.constant dense<0.000000e+00> : vector<2x16xf32>
    %562 = tpu.matmul %538, %5, %cst_129 {dimension_numbers = #tpu.dot_dimension_numbers<[1], [0], [0], [1], [0, 0, 1, 1], [], []>} : vector<2x8xf32>, vector<8x16xf32>, vector<2x16xf32> -> vector<2x16xf32>
    %563 = vector.extract_strided_slice %498 {offsets = [0, 0], sizes = [2, 16], strides = [1, 1]} : vector<16x16xf32> to vector<2x16xf32>
    %564 = arith.mulf %562, %563 : vector<2x16xf32>
    %565 = arith.addf %561, %564 : vector<2x16xf32>
    %cst_130 = arith.constant dense<0.000000e+00> : vector<2x16xf32>
    %566 = tpu.matmul %540, %5, %cst_130 {dimension_numbers = #tpu.dot_dimension_numbers<[1], [0], [0], [1], [0, 0, 1, 1], [], []>} : vector<2x8xf32>, vector<8x16xf32>, vector<2x16xf32> -> vector<2x16xf32>
    %567 = vector.extract_strided_slice %498 {offsets = [2, 0], sizes = [2, 16], strides = [1, 1]} : vector<16x16xf32> to vector<2x16xf32>
    %568 = arith.mulf %566, %567 : vector<2x16xf32>
    %569 = arith.addf %565, %568 : vector<2x16xf32>
    %cst_131 = arith.constant dense<0.000000e+00> : vector<2x16xf32>
    %570 = tpu.matmul %542, %5, %cst_131 {dimension_numbers = #tpu.dot_dimension_numbers<[1], [0], [0], [1], [0, 0, 1, 1], [], []>} : vector<2x8xf32>, vector<8x16xf32>, vector<2x16xf32> -> vector<2x16xf32>
    %571 = vector.extract_strided_slice %498 {offsets = [4, 0], sizes = [2, 16], strides = [1, 1]} : vector<16x16xf32> to vector<2x16xf32>
    %572 = arith.mulf %570, %571 : vector<2x16xf32>
    %573 = arith.addf %569, %572 : vector<2x16xf32>
    %cst_132 = arith.constant dense<0.000000e+00> : vector<2x16xf32>
    %574 = tpu.matmul %544, %5, %cst_132 {dimension_numbers = #tpu.dot_dimension_numbers<[1], [0], [0], [1], [0, 0, 1, 1], [], []>} : vector<2x8xf32>, vector<8x16xf32>, vector<2x16xf32> -> vector<2x16xf32>
    %575 = vector.extract_strided_slice %498 {offsets = [6, 0], sizes = [2, 16], strides = [1, 1]} : vector<16x16xf32> to vector<2x16xf32>
    %576 = arith.mulf %574, %575 : vector<2x16xf32>
    %577 = arith.addf %573, %576 : vector<2x16xf32>
    %cst_133 = arith.constant dense<0.000000e+00> : vector<2x16xf32>
    %578 = tpu.matmul %546, %5, %cst_133 {dimension_numbers = #tpu.dot_dimension_numbers<[1], [0], [0], [1], [0, 0, 1, 1], [], []>} : vector<2x8xf32>, vector<8x16xf32>, vector<2x16xf32> -> vector<2x16xf32>
    %579 = vector.extract_strided_slice %498 {offsets = [8, 0], sizes = [2, 16], strides = [1, 1]} : vector<16x16xf32> to vector<2x16xf32>
    %580 = arith.mulf %578, %579 : vector<2x16xf32>
    %581 = arith.addf %577, %580 : vector<2x16xf32>
    %cst_134 = arith.constant dense<0.000000e+00> : vector<2x16xf32>
    %582 = tpu.matmul %548, %5, %cst_134 {dimension_numbers = #tpu.dot_dimension_numbers<[1], [0], [0], [1], [0, 0, 1, 1], [], []>} : vector<2x8xf32>, vector<8x16xf32>, vector<2x16xf32> -> vector<2x16xf32>
    %583 = vector.extract_strided_slice %498 {offsets = [10, 0], sizes = [2, 16], strides = [1, 1]} : vector<16x16xf32> to vector<2x16xf32>
    %584 = arith.mulf %582, %583 : vector<2x16xf32>
    %585 = arith.addf %581, %584 : vector<2x16xf32>
    %cst_135 = arith.constant dense<0.000000e+00> : vector<2x16xf32>
    %586 = tpu.matmul %550, %5, %cst_135 {dimension_numbers = #tpu.dot_dimension_numbers<[1], [0], [0], [1], [0, 0, 1, 1], [], []>} : vector<2x8xf32>, vector<8x16xf32>, vector<2x16xf32> -> vector<2x16xf32>
    %587 = vector.extract_strided_slice %498 {offsets = [12, 0], sizes = [2, 16], strides = [1, 1]} : vector<16x16xf32> to vector<2x16xf32>
    %588 = arith.mulf %586, %587 : vector<2x16xf32>
    %589 = arith.addf %585, %588 : vector<2x16xf32>
    %cst_136 = arith.constant dense<0.000000e+00> : vector<2x16xf32>
    %590 = tpu.matmul %552, %5, %cst_136 {dimension_numbers = #tpu.dot_dimension_numbers<[1], [0], [0], [1], [0, 0, 1, 1], [], []>} : vector<2x8xf32>, vector<8x16xf32>, vector<2x16xf32> -> vector<2x16xf32>
    %591 = vector.extract_strided_slice %498 {offsets = [14, 0], sizes = [2, 16], strides = [1, 1]} : vector<16x16xf32> to vector<2x16xf32>
    %592 = arith.mulf %590, %591 : vector<2x16xf32>
    %593 = arith.addf %589, %592 : vector<2x16xf32>
    %cst_137 = arith.constant dense<0.000000e+00> : vector<2x16xf32>
    %594 = tpu.matmul %560, %5, %cst_137 {dimension_numbers = #tpu.dot_dimension_numbers<[1], [0], [0], [1], [0, 0, 1, 1], [], []>} : vector<2x8xf32>, vector<8x16xf32>, vector<2x16xf32> -> vector<2x16xf32>
    %595 = arith.mulf %593, %594 : vector<2x16xf32>
    %c0_138 = arith.constant 0 : index
    %c0_139 = arith.constant 0 : index
    %596 = vector.load %arg13[%c0_138, %c0_139] : memref<16x16xf32, #tpu.memory_space<vmem>>, vector<16x16xf32>
    %cst_140 = arith.constant dense<0.000000e+00> : vector<2x16xf32>
    %597 = tpu.matmul %595, %596, %cst_140 {dimension_numbers = #tpu.dot_dimension_numbers<[1], [0], [0], [1], [0, 0, 1, 1], [], []>} : vector<2x16xf32>, vector<16x16xf32>, vector<2x16xf32> -> vector<2x16xf32>
    %c0_141 = arith.constant 0 : index
    %c0_142 = arith.constant 0 : index
    %598 = vector.load %arg14[%c0_141, %c0_142] : memref<1x16xf32, #tpu.memory_space<vmem>>, vector<1x16xf32>
    %599 = vector.broadcast %598 : vector<1x16xf32> to vector<2x16xf32>
    %600 = arith.addf %597, %599 : vector<2x16xf32>
    %c0_143 = arith.constant 0 : index
    %c0_144 = arith.constant 0 : index
    %601 = vector.load %arg17[%c0_143, %c0_144] : memref<16x64xf32, #tpu.memory_space<vmem>>, vector<16x64xf32>
    %cst_145 = arith.constant dense<0.000000e+00> : vector<2x64xf32>
    %602 = tpu.matmul %600, %601, %cst_145 {dimension_numbers = #tpu.dot_dimension_numbers<[1], [0], [0], [1], [0, 0, 1, 1], [], []>} : vector<2x16xf32>, vector<16x64xf32>, vector<2x64xf32> -> vector<2x64xf32>
    %c0_146 = arith.constant 0 : index
    %c0_147 = arith.constant 0 : index
    %603 = vector.load %arg18[%c0_146, %c0_147] : memref<1x64xf32, #tpu.memory_space<vmem>>, vector<1x64xf32>
    %604 = vector.broadcast %603 : vector<1x64xf32> to vector<2x64xf32>
    %605 = arith.addf %602, %604 : vector<2x64xf32>
    %cst_148 = arith.constant 0.000000e+00 : f32
    %606 = vector.broadcast %cst_148 : f32 to vector<2x64xf32>
    %607 = arith.maximumf %605, %606 : vector<2x64xf32>
    %c0_149 = arith.constant 0 : index
    %c0_150 = arith.constant 0 : index
    %608 = vector.load %arg19[%c0_149, %c0_150] : memref<64x32xf32, #tpu.memory_space<vmem>>, vector<64x32xf32>
    %cst_151 = arith.constant dense<0.000000e+00> : vector<2x32xf32>
    %609 = tpu.matmul %607, %608, %cst_151 {dimension_numbers = #tpu.dot_dimension_numbers<[1], [0], [0], [1], [0, 0, 1, 1], [], []>} : vector<2x64xf32>, vector<64x32xf32>, vector<2x32xf32> -> vector<2x32xf32>
    %c0_152 = arith.constant 0 : index
    %c0_153 = arith.constant 0 : index
    %610 = vector.load %arg20[%c0_152, %c0_153] : memref<1x32xf32, #tpu.memory_space<vmem>>, vector<1x32xf32>
    %611 = vector.broadcast %610 : vector<1x32xf32> to vector<2x32xf32>
    %612 = arith.addf %609, %611 : vector<2x32xf32>
    %cst_154 = arith.constant 0.000000e+00 : f32
    %613 = vector.broadcast %cst_154 : f32 to vector<2x32xf32>
    %614 = arith.maximumf %612, %613 : vector<2x32xf32>
    %c0_155 = arith.constant 0 : index
    %c0_156 = arith.constant 0 : index
    %615 = vector.load %arg21[%c0_155, %c0_156] : memref<32x1xf32, #tpu.memory_space<vmem>>, vector<32x1xf32>
    %cst_157 = arith.constant dense<0.000000e+00> : vector<2x1xf32>
    %616 = tpu.matmul %614, %615, %cst_157 {dimension_numbers = #tpu.dot_dimension_numbers<[1], [0], [0], [1], [0, 0, 1, 1], [], []>} : vector<2x32xf32>, vector<32x1xf32>, vector<2x1xf32> -> vector<2x1xf32>
    %c0_158 = arith.constant 0 : index
    %c0_159 = arith.constant 0 : index
    %617 = vector.load %arg22[%c0_158, %c0_159] : memref<1x1xf32, #tpu.memory_space<vmem>>, vector<1x1xf32>
    %618 = vector.broadcast %617 : vector<1x1xf32> to vector<2x1xf32>
    %619 = arith.addf %616, %618 : vector<2x1xf32>
    %c0_160 = arith.constant 0 : index
    %c0_161 = arith.constant 0 : index
    %620 = vector.load %arg23[%c0_160, %c0_161] : memref<2x1xf32, #tpu.memory_space<vmem>>, vector<2x1xf32>
    tpu.vector_store %arg23[%c0_160, %c0_161], %619 {strides = array<i32>} : memref<2x1xf32, #tpu.memory_space<vmem>>, vector<2x1xf32>,
    return
  }
}

</mosaic_0001>

<llo_original>
// kernel: price_predictor_forward.1
$region0: #{price_predictor_forward.1}
  #allocation0 [shape = 'u32[]', space=smem, size = 0x4, offset = 0x4, fixed_abs, tag = 'smem constant byte address 0x4 - core index']
  #allocation1 [shape = 'u32[72,128]{1,0:T(1,128)}', space=vmem, size = 0x9000, scoped, tag = 'internal scratch']
  #allocation2 [shape = 'f32[16,16]{1,0:T(8,128)}', space=vmem, size = 0x2000, scoped, tag = 'scratch operand']
  #allocation3 [shape = 'f32[1,1]{1,0:T(1,128)S(1)}', space=vmem, size = 0x200, scoped, tag = 'scoped memory for price_predictor_forward.1']
  %s0 = inlined_call_operand.vmem [shape: f32[16,8], index: 0, kind: input, shape index: {}]
  %s1 = inlined_call_operand.vmem [shape: f32[8,128], index: 1, kind: input, shape index: {}]
  %s2 = inlined_call_operand.vmem [shape: f32[32,128], index: 2, kind: input, shape index: {}]
  %s3 = inlined_call_operand.vmem [shape: f32[1,128], index: 3, kind: input, shape index: {}]
  %s4 = inlined_call_operand.vmem [shape: f32[32,64], index: 4, kind: input, shape index: {}]
  %s5 = inlined_call_operand.vmem [shape: f32[16,64], index: 5, kind: input, shape index: {}]
  %s6 = inlined_call_operand.hbm [shape: f32[1,64], index: 6, kind: input, shape index: {}]
  %s7 = inlined_call_operand.vmem [shape: f32[16,16], index: 7, kind: input, shape index: {}]
  %s8 = inlined_call_operand.vmem [shape: f32[16,16], index: 8, kind: input, shape index: {}]
  %s9 = inlined_call_operand.vmem [shape: f32[16,16], index: 9, kind: input, shape index: {}]
  %s10 = inlined_call_operand.hbm [shape: f32[1,16], index: 10, kind: input, shape index: {}]
  %s11 = inlined_call_operand.hbm [shape: f32[1,16], index: 11, kind: input, shape index: {}]
  %s12 = inlined_call_operand.hbm [shape: f32[1,16], index: 12, kind: input, shape index: {}]
  %s13 = inlined_call_operand.vmem [shape: f32[16,16], index: 13, kind: input, shape index: {}]
  %s14 = inlined_call_operand.hbm [shape: f32[1,16], index: 14, kind: input, shape index: {}]
  %s15 = inlined_call_operand.vmem [shape: f32[16,8], index: 15, kind: input, shape index: {}]
  %s16 = inlined_call_operand.hbm [shape: f32[8,16], index: 16, kind: input, shape index: {}]
  %s17 = inlined_call_operand.hbm [shape: f32[16,64], index: 17, kind: input, shape index: {}]
  %s18 = inlined_call_operand.vmem [shape: f32[1,64], index: 18, kind: input, shape index: {}]
  %s19 = inlined_call_operand.vmem [shape: f32[64,32], index: 19, kind: input, shape index: {}]
  %s20 = inlined_call_operand.vmem [shape: f32[1,32], index: 20, kind: input, shape index: {}]
  %s21 = inlined_call_operand.vmem [shape: f32[32,1], index: 21, kind: input, shape index: {}]
  %s22 = inlined_call_operand.<no memory space> [shape: f32[1,1], index: 22, kind: input, shape index: {}]
  %s23 = inlined_call_operand.vmem [shape: f32[2,1], index: 23, kind: output, shape index: {}]
  %s24 = sld [smem:[#allocation0]]
  $region130: #{price_predictor_forward.1} parent=0
    _
  %s26 = ssub.s32 1, %s24
  %s27 = scalar_select 0, %s26, %s24
  %v28 = vstv %s22
  %29 = vst [vmem:[#allocation3] sm:$0x1] %v28
  $region1: #{price_predictor_forward.1} parent=0
    #allocation4 [shape = 'u8[512]{0}', space=vmem, size = 0x400, scoped, tag = 'input window, operand 6, single buffered']
    #allocation5 [shape = 's32[1]{0}', space=sflag, size = 0x4, scoped, tag = 'scoped memory for price_predictor_forward.1']
    #allocation6 [shape = 'u8[512]{0}', space=vmem, size = 0x400, scoped, tag = 'input window, operand 10, single buffered']
    #allocation7 [shape = 's32[1]{0}', space=sflag, size = 0x4, scoped, tag = 'scoped memory for price_predictor_forward.1']
    #allocation8 [shape = 'u8[512]{0}', space=vmem, size = 0x400, scoped, tag = 'input window, operand 11, single buffered']
    #allocation9 [shape = 'u8[512]{0}', space=vmem, size = 0x400, scoped, tag = 'input window, operand 12, single buffered']
    #allocation10 [shape = 's32[1]{0}', space=sflag, size = 0x4, scoped, tag = 'scoped memory for price_predictor_forward.1']
    #allocation11 [shape = 'u8[512]{0}', space=vmem, size = 0x400, scoped, tag = 'input window, operand 14, single buffered']
    #allocation12 [shape = 'u8[4096]{0}', space=vmem, size = 0x1000, scoped, tag = 'input window, operand 16, single buffered']
    #allocation13 [shape = 's32[1]{0}', space=sflag, size = 0x4, scoped, tag = 'scoped memory for price_predictor_forward.1']
    #allocation14 [shape = 'u8[8192]{0}', space=vmem, size = 0x2000, scoped, tag = 'input window, operand 17, single buffered']
    %30 = vsyncpa [#allocation5], 0
    %31 = vsyncpa [#allocation7], 0
    %32 = vsyncpa [#allocation10], 0
    %33 = vsyncpa [#allocation13], 0
    // Predicated region
    $region2: #{price_predictor_forward.1} parent=1 // pred_check
      _
    $region3: #{price_predictor_forward.1} parent=1 // pred_check_branch
      %35 = sbr.rel (0) target = $region5
    $region4: #{price_predictor_forward.1} parent=1 // pred_region
      _
    $region5: #{price_predictor_forward.1} parent=1 // pred_fallthru
      _
    // Predicated region
    $region6: #{price_predictor_forward.1} parent=1 // pred_check
      _
    $region7: #{price_predictor_forward.1} parent=1 // pred_check_branch
      %37 = sbr.rel (0) target = $region9
    $region8: #{price_predictor_forward.1} parent=1 // pred_region
      _
    $region9: #{price_predictor_forward.1} parent=1 // pred_fallthru
      _
    // Predicated region
    $region10: #{price_predictor_forward.1} parent=1 // pred_check
      _
    $region11: #{price_predictor_forward.1} parent=1 // pred_check_branch
      %39 = sbr.rel (0) target = $region13
    $region12: #{price_predictor_forward.1} parent=1 // pred_region
      _
    $region13: #{price_predictor_forward.1} parent=1 // pred_fallthru
      _
    // Predicated region
    $region14: #{price_predictor_forward.1} parent=1 // pred_check
      _
    $region15: #{price_predictor_forward.1} parent=1 // pred_check_branch
      %41 = sbr.rel (0) target = $region17
    $region16: #{price_predictor_forward.1} parent=1 // pred_region
      _
    $region17: #{price_predictor_forward.1} parent=1 // pred_fallthru
      _
    // Predicated region
    $region18: #{price_predictor_forward.1} parent=1 // pred_check
      _
    $region19: #{price_predictor_forward.1} parent=1 // pred_check_branch
      %43 = sbr.rel (0) target = $region21
    $region20: #{price_predictor_forward.1} parent=1 // pred_region
      _
    $region21: #{price_predictor_forward.1} parent=1 // pred_fallthru
      _
    // Predicated region
    $region22: #{price_predictor_forward.1} parent=1 // pred_check
      _
    $region23: #{price_predictor_forward.1} parent=1 // pred_check_branch
      %45 = sbr.rel (0) target = $region25
    $region24: #{price_predictor_forward.1} parent=1 // pred_region
      _
    $region25: #{price_predictor_forward.1} parent=1 // pred_fallthru
      _
    // Predicated region
    $region26: #{price_predictor_forward.1} parent=1 // pred_check
      _
    $region27: #{price_predictor_forward.1} parent=1 // pred_check_branch
      %47 = sbr.rel (0) target = $region29
    $region28: #{price_predictor_forward.1} parent=1 // pred_region
      %49 = vsyncadd [#allocation5], 0
      %s51 = sshll.u32 %s6, 4
      %s52 = int_to_ptr.hbm [resolvable:$true] %s51
      %s53 = sshll.u32 [#allocation4], 4
      %s54 = int_to_ptr.vmem [resolvable:$true] %s53
      %56 = dma.hbm_to_vmem [thread:$0]  %s52, 16, %s54, [#allocation5]
    $region29: #{price_predictor_forward.1} parent=1 // pred_fallthru
      _
    // Predicated region
    $region30: #{price_predictor_forward.1} parent=1 // pred_check
      _
    $region31: #{price_predictor_forward.1} parent=1 // pred_check_branch
      %58 = sbr.rel (0) target = $region33
    $region32: #{price_predictor_forward.1} parent=1 // pred_region
      _
    $region33: #{price_predictor_forward.1} parent=1 // pred_fallthru
      _
    // Predicated region
    $region34: #{price_predictor_forward.1} parent=1 // pred_check
      _
    $region35: #{price_predictor_forward.1} parent=1 // pred_check_branch
      %60 = sbr.rel (0) target = $region37
    $region36: #{price_predictor_forward.1} parent=1 // pred_region
      _
    $region37: #{price_predictor_forward.1} parent=1 // pred_fallthru
      _
    // Predicated region
    $region38: #{price_predictor_forward.1} parent=1 // pred_check
      _
    $region39: #{price_predictor_forward.1} parent=1 // pred_check_branch
      %62 = sbr.rel (0) target = $region41
    $region40: #{price_predictor_forward.1} parent=1 // pred_region
      _
    $region41: #{price_predictor_forward.1} parent=1 // pred_fallthru
      _
    // Predicated region
    $region42: #{price_predictor_forward.1} parent=1 // pred_check
      _
    $region43: #{price_predictor_forward.1} parent=1 // pred_check_branch
      %64 = sbr.rel (0) target = $region45
    $region44: #{price_predictor_forward.1} parent=1 // pred_region
      %66 = vsyncadd [#allocation7], 0
      %s68 = sshll.u32 %s10, 4
      %s69 = int_to_ptr.hbm [resolvable:$true] %s68
      %s70 = sshll.u32 [#allocation6], 4
      %s71 = int_to_ptr.vmem [resolvable:$true] %s70
      %73 = dma.hbm_to_vmem [thread:$0]  %s69, 16, %s71, [#allocation7]
    $region45: #{price_predictor_forward.1} parent=1 // pred_fallthru
      _
    // Predicated region
    $region46: #{price_predictor_forward.1} parent=1 // pred_check
      _
    $region47: #{price_predictor_forward.1} parent=1 // pred_check_branch
      %75 = sbr.rel (0) target = $region49
    $region48: #{price_predictor_forward.1} parent=1 // pred_region
      %77 = vsyncadd [#allocation7], 0
      %s79 = sshll.u32 %s11, 4
      %s80 = int_to_ptr.hbm [resolvable:$true] %s79
      %s81 = sshll.u32 [#allocation8], 4
      %s82 = int_to_ptr.vmem [resolvable:$true] %s81
      %84 = dma.hbm_to_vmem [thread:$0]  %s80, 16, %s82, [#allocation7]
    $region49: #{price_predictor_forward.1} parent=1 // pred_fallthru
      _
    // Predicated region
    $region50: #{price_predictor_forward.1} parent=1 // pred_check
      _
    $region51: #{price_predictor_forward.1} parent=1 // pred_check_branch
      %86 = sbr.rel (0) target = $region53
    $region52: #{price_predictor_forward.1} parent=1 // pred_region
      %88 = vsyncadd [#allocation10], 0
      %s90 = sshll.u32 %s12, 4
      %s91 = int_to_ptr.hbm [resolvable:$true] %s90
      %s92 = sshll.u32 [#allocation9], 4
      %s93 = int_to_ptr.vmem [resolvable:$true] %s92
      %95 = dma.hbm_to_vmem [thread:$0]  %s91, 16, %s93, [#allocation10]
    $region53: #{price_predictor_forward.1} parent=1 // pred_fallthru
      _
    // Predicated region
    $region54: #{price_predictor_forward.1} parent=1 // pred_check
      _
    $region55: #{price_predictor_forward.1} parent=1 // pred_check_branch
      %97 = sbr.rel (0) target = $region57
    $region56: #{price_predictor_forward.1} parent=1 // pred_region
      _
    $region57: #{price_predictor_forward.1} parent=1 // pred_fallthru
      _
    // Predicated region
    $region58: #{price_predictor_forward.1} parent=1 // pred_check
      _
    $region59: #{price_predictor_forward.1} parent=1 // pred_check_branch
      %99 = sbr.rel (0) target = $region61
    $region60: #{price_predictor_forward.1} parent=1 // pred_region
      %101 = vsyncadd [#allocation10], 0
      %s103 = sshll.u32 %s14, 4
      %s104 = int_to_ptr.hbm [resolvable:$true] %s103
      %s105 = sshll.u32 [#allocation11], 4
      %s106 = int_to_ptr.vmem [resolvable:$true] %s105
      %108 = dma.hbm_to_vmem [thread:$0]  %s104, 16, %s106, [#allocation10]
    $region61: #{price_predictor_forward.1} parent=1 // pred_fallthru
      _
    // Predicated region
    $region62: #{price_predictor_forward.1} parent=1 // pred_check
      _
    $region63: #{price_predictor_forward.1} parent=1 // pred_check_branch
      %110 = sbr.rel (0) target = $region65
    $region64: #{price_predictor_forward.1} parent=1 // pred_region
      _
    $region65: #{price_predictor_forward.1} parent=1 // pred_fallthru
      _
    // Predicated region
    $region66: #{price_predictor_forward.1} parent=1 // pred_check
      _
    $region67: #{price_predictor_forward.1} parent=1 // pred_check_branch
      %112 = sbr.rel (0) target = $region69
    $region68: #{price_predictor_forward.1} parent=1 // pred_region
      %114 = vsyncadd [#allocation13], 0
      %s116 = sshll.u32 %s16, 4
      %s117 = int_to_ptr.hbm [resolvable:$true] %s116
      %s118 = sshll.u32 [#allocation12], 4
      %s119 = int_to_ptr.vmem [resolvable:$true] %s118
      %121 = dma.hbm_to_vmem [thread:$0]  %s117, 128, %s119, [#allocation13]
    $region69: #{price_predictor_forward.1} parent=1 // pred_fallthru
      _
    // Predicated region
    $region70: #{price_predictor_forward.1} parent=1 // pred_check
      _
    $region71: #{price_predictor_forward.1} parent=1 // pred_check_branch
      %123 = sbr.rel (0) target = $region73
    $region72: #{price_predictor_forward.1} parent=1 // pred_region
      %125 = vsyncadd [#allocation13], 0
      %s126 = sshll.u32 %s17, 4
      %s127 = int_to_ptr.hbm [resolvable:$true] %s126
      %s128 = sshll.u32 [#allocation14], 4
      %s129 = int_to_ptr.vmem [resolvable:$true] %s128
      %134 = dma.hbm_to_vmem [thread:$0]  %s127, 256, %s129, [#allocation13], 128, 128, 8
    $region73: #{price_predictor_forward.1} parent=1 // pred_fallthru
      _
    // Predicated region
    $region74: #{price_predictor_forward.1} parent=1 // pred_check
      _
    $region75: #{price_predictor_forward.1} parent=1 // pred_check_branch
      %136 = sbr.rel (0) target = $region77
    $region76: #{price_predictor_forward.1} parent=1 // pred_region
      _
    $region77: #{price_predictor_forward.1} parent=1 // pred_fallthru
      _
    // Predicated region
    $region78: #{price_predictor_forward.1} parent=1 // pred_check
      _
    $region79: #{price_predictor_forward.1} parent=1 // pred_check_branch
      %138 = sbr.rel (0) target = $region81
    $region80: #{price_predictor_forward.1} parent=1 // pred_region
      _
    $region81: #{price_predictor_forward.1} parent=1 // pred_fallthru
      _
    // Predicated region
    $region82: #{price_predictor_forward.1} parent=1 // pred_check
      _
    $region83: #{price_predictor_forward.1} parent=1 // pred_check_branch
      %140 = sbr.rel (0) target = $region85
    $region84: #{price_predictor_forward.1} parent=1 // pred_region
      _
    $region85: #{price_predictor_forward.1} parent=1 // pred_fallthru
      _
    // Predicated region
    $region86: #{price_predictor_forward.1} parent=1 // pred_check
      _
    $region87: #{price_predictor_forward.1} parent=1 // pred_check_branch
      %142 = sbr.rel (0) target = $region89
    $region88: #{price_predictor_forward.1} parent=1 // pred_region
      _
    $region89: #{price_predictor_forward.1} parent=1 // pred_fallthru
      _
    // Predicated region
    $region90: #{price_predictor_forward.1} parent=1 // pred_check
      _
    $region91: #{price_predictor_forward.1} parent=1 // pred_check_branch
      %144 = sbr.rel (0) target = $region93
    $region92: #{price_predictor_forward.1} parent=1 // pred_region
      _
    $region93: #{price_predictor_forward.1} parent=1 // pred_fallthru
      _
    // Predicated region
    $region94: #{price_predictor_forward.1} parent=1 // pred_check
      _
    $region95: #{price_predictor_forward.1} parent=1 // pred_check_branch
      %146 = sbr.rel (0) target = $region97
    $region96: #{price_predictor_forward.1} parent=1 // pred_region
      %148 = dma.done [#allocation5], 16
    $region97: #{price_predictor_forward.1} parent=1 // pred_fallthru
      _
    // Predicated region
    $region98: #{price_predictor_forward.1} parent=1 // pred_check
      _
    $region99: #{price_predictor_forward.1} parent=1 // pred_check_branch
      %150 = sbr.rel (0) target = $region101
    $region100: #{price_predictor_forward.1} parent=1 // pred_region
      %152 = dma.done [#allocation7], 16
    $region101: #{price_predictor_forward.1} parent=1 // pred_fallthru
      _
    // Predicated region
    $region102: #{price_predictor_forward.1} parent=1 // pred_check
      _
    $region103: #{price_predictor_forward.1} parent=1 // pred_check_branch
      %154 = sbr.rel (0) target = $region105
    $region104: #{price_predictor_forward.1} parent=1 // pred_region
      %156 = dma.done [#allocation7], 16
    $region105: #{price_predictor_forward.1} parent=1 // pred_fallthru
      _
    // Predicated region
    $region106: #{price_predictor_forward.1} parent=1 // pred_check
      _
    $region107: #{price_predictor_forward.1} parent=1 // pred_check_branch
      %158 = sbr.rel (0) target = $region109
    $region108: #{price_predictor_forward.1} parent=1 // pred_region
      %160 = dma.done [#allocation10], 16
    $region109: #{price_predictor_forward.1} parent=1 // pred_fallthru
      _
    // Predicated region
    $region110: #{price_predictor_forward.1} parent=1 // pred_check
      _
    $region111: #{price_predictor_forward.1} parent=1 // pred_check_branch
      %162 = sbr.rel (0) target = $region113
    $region112: #{price_predictor_forward.1} parent=1 // pred_region
      %164 = dma.done [#allocation10], 16
    $region113: #{price_predictor_forward.1} parent=1 // pred_fallthru
      _
    // Predicated region
    $region114: #{price_predictor_forward.1} parent=1 // pred_check
      _
    $region115: #{price_predictor_forward.1} parent=1 // pred_check_branch
      %166 = sbr.rel (0) target = $region117
    $region116: #{price_predictor_forward.1} parent=1 // pred_region
      %168 = dma.done [#allocation13], 128
    $region117: #{price_predictor_forward.1} parent=1 // pred_fallthru
      _
    // Predicated region
    $region118: #{price_predictor_forward.1} parent=1 // pred_check
      _
    $region119: #{price_predictor_forward.1} parent=1 // pred_check_branch
      %170 = sbr.rel (0) target = $region121
    $region120: #{price_predictor_forward.1} parent=1 // pred_region
      %172 = dma.done [#allocation13], 256
    $region121: #{price_predictor_forward.1} parent=1 // pred_fallthru
      _
    %v173 = vld [vmem:[%s2] sm:$0xff]
    %v174 = vld [vmem:[%s2 + $0x8] sm:$0xff]
    %v175 = vld [vmem:[%s2 + $0x10] sm:$0xff]
    %v176 = vld [vmem:[%s2 + $0x18] sm:$0xff]
    %v177 = vld [vmem:[%s4] sm:$0xff]
    %v178 = vld [vmem:[%s4 + $0x8] sm:$0xff]
    %v179 = vld [vmem:[%s4 + $0x10] sm:$0xff]
    %v180 = vld [vmem:[%s4 + $0x18] sm:$0xff]
    %v181 = vld [vmem:[%s5] sm:$0xff]
    %v182 = vld [vmem:[%s5 + $0x8] sm:$0xff]
    %v183 = vld [vmem:[#allocation4] sm:$0x1]
    %v184 = vld [vmem:[%s15] sm:$0xff]
    %v185 = vld [vmem:[%s15 + $0x8] sm:$0xff]
    %v186 = vld [vmem:[#allocation12] sm:$0xff]
    %v187 = vld [vmem:[%s0] sm:$0xff]
    %v188 = vld [vmem:[%s0 + $0x8] sm:$0xff]
    %v189 = vld [vmem:[%s1] sm:$0xff]
    %v190 = vld [vmem:[%s3] sm:$0x1]
    %v192 = vperm.slane %v190, 0
    %vm194 = vcmask 64512
    %v196 = vsel %vm194, %v187, 0
    %v199 = vsel %vm194, %v188, 0
    %201 = vmatpush.msra.mxu0 0.0
    %202 = vmatpush.msra.mxu0 0.0
    %203 = vmatpush.msra.mxu0 0.0
    %204 = vmatpush.msra.mxu0 0.0
    %205 = vmatpush.msra.mxu0 0.0
    %206 = vmatpush.msra.mxu0 0.0
    %207 = vmatpush.msra.mxu0 0.0
    %208 = vmatpush.msra.mxu0 0.0
    %209 = vmatpush.msra.mxu0 0.0
    %210 = vmatpush.msra.mxu0 0.0
    %211 = vmatpush.msra.mxu0 0.0
    %212 = vmatpush.msra.mxu0 0.0
    %213 = vmatpush.msra.mxu0 0.0
    %214 = vmatpush.msra.mxu0 0.0
    %215 = vmatpush.msra.mxu0 0.0
    %216 = vmatpush.msra.mxu0 %v189
    %217 = vmatmul.f32.gmra.mxu0 %v196
    %v218 = vpop.f32.mrf.mxu0
    %v219 = vadd.f32 %v192, %v218
    %220 = vmatmul.f32.gmra.mxu0 %v199
    %v221 = vpop.f32.mrf.mxu0
    %v222 = vadd.f32 %v192, %v221
    %223 = vdwg.mxu0
    %vm224 = vcmask 261120
    %v226 = vsel %vm224, 0.0, 0
    %228 = vmatpush.msra.mxu0 0.0
    %229 = vmatpush.msra.mxu0 0.0
    %230 = vmatpush.msra.mxu0 0.0
    %231 = vmatpush.msra.mxu0 0.0
    %232 = vmatpush.msra.mxu0 0.0
    %233 = vmatpush.msra.mxu0 0.0
    %234 = vmatpush.msra.mxu0 0.0
    %235 = vmatpush.msra.mxu0 0.0
    %236 = vmatpush.msra.mxu0 0.0
    %237 = vmatpush.msra.mxu0 0.0
    %238 = vmatpush.msra.mxu0 0.0
    %239 = vmatpush.msra.mxu0 0.0
    %240 = vmatpush.msra.mxu0 %v176
    %241 = vmatpush.msra.mxu0 %v175
    %242 = vmatpush.msra.mxu0 %v174
    %243 = vmatpush.msra.mxu0 %v173
    %244 = vmatmul.f32.gmra.mxu0 %v226
    %v245 = vpop.f32.mrf.mxu0
    %v246 = vadd.f32 0.0, %v245
    %247 = vdwg.mxu0
    %v248 = vadd.f32 %v219, %v246
    %v249 = vxor.u32 %v248, 2147483648
    %v250 = vmul.f32 %v249, 1.442695
    %v251 = vpow.pop %v250
    %v252 = vadd.f32 %v251, 1.0
    %v253 = vrcp.pop %v252
    %v254 = vmul.f32 %v252, %v253
    %v255 = vsub.f32 1.0, %v254
    %v256 = vmul.f32 %v253, %v255
    %v257 = vadd.f32 %v253, %v256
    %vm258 = vweird.f32 %v252
    %vm259 = vweird.f32 %v253
    %vm260 = vmor %vm258, %vm259
    %v261 = vsel %vm260, %v253, %v257
    %v262 = vand.u32 2147483647, %v252
    %vm263 = vcmp.eq.f32.partialorder %v262, 8.507059e+37
    %v264 = vand.u32 %v252, 2147483648
    %v265 = vor.u32 1.1754944e-38, %v264
    %v266 = vsel %vm263, %v265, %v261
    %v267 = vmul.f32 1.0, %v266
    %v268 = vtanh.pop %v248
    %v269 = vmul.f32 %v267, 0.0
    %271 = vrot.lane.b32.xlu0 %v268, 64
    %v272 = vpop.permute.xlu0 %271
    %v274 = vmul.f32 %v267, %v272
    %276 = vrot.lane.b32.xlu0 %v274, 32
    %v277 = vpop.permute.xlu0 %276
    %v279 = vadd.f32 %v269, %v277
    %v280 = vtanh.pop %v279
    %282 = vrot.lane.b32.xlu0 %v280, 64
    %v283 = vpop.permute.xlu0 %282
    %v285 = vmul.f32 %v267, %v283
    %vm286 = vcmask 130048
    %v287 = vsel %vm286, 0.0, 0
    %289 = vmatpush.msra.mxu0 0.0
    %290 = vmatpush.msra.mxu0 0.0
    %291 = vmatpush.msra.mxu0 0.0
    %292 = vmatpush.msra.mxu0 0.0
    %293 = vmatpush.msra.mxu0 0.0
    %294 = vmatpush.msra.mxu0 0.0
    %295 = vmatpush.msra.mxu0 0.0
    %296 = vmatpush.msra.mxu0 0.0
    %297 = vmatpush.msra.mxu0 0.0
    %298 = vmatpush.msra.mxu0 0.0
    %299 = vmatpush.msra.mxu0 0.0
    %300 = vmatpush.msra.mxu0 0.0
    %301 = vmatpush.msra.mxu0 0.0
    %302 = vmatpush.msra.mxu0 0.0
    %303 = vmatpush.msra.mxu0 %v182
    %304 = vmatpush.msra.mxu0 %v181
    %305 = vmatmul.f32.gmra.mxu0 %v287
    %v306 = vpop.f32.mrf.mxu0
    %v307 = vadd.f32 0.0, %v306
    %308 = vdwg.mxu0
    %310 = vrot.lane.b32.xlu0 %v285, 32
    %v311 = vpop.permute.xlu0 %310
    %v312 = vsel %vm224, %v311, 0
    %314 = vmatpush.msra.mxu0 0.0
    %315 = vmatpush.msra.mxu0 0.0
    %316 = vmatpush.msra.mxu0 0.0
    %317 = vmatpush.msra.mxu0 0.0
    %318 = vmatpush.msra.mxu0 0.0
    %319 = vmatpush.msra.mxu0 0.0
    %320 = vmatpush.msra.mxu0 0.0
    %321 = vmatpush.msra.mxu0 0.0
    %322 = vmatpush.msra.mxu0 0.0
    %323 = vmatpush.msra.mxu0 0.0
    %324 = vmatpush.msra.mxu0 0.0
    %325 = vmatpush.msra.mxu0 0.0
    %326 = vmatpush.msra.mxu0 %v180
    %327 = vmatpush.msra.mxu0 %v179
    %328 = vmatpush.msra.mxu0 %v178
    %329 = vmatpush.msra.mxu0 %v177
    %330 = vmatmul.f32.gmra.mxu0 %v312
    %v331 = vpop.f32.mrf.mxu0
    %v332 = vadd.f32 %v307, %v331
    %333 = vdwg.mxu0
    %v335 = vperm.slane %v183, 0
    %v337 = vadd.f32 %v332, %v335
    %v338 = vxor.u32 %v337, 2147483648
    %v339 = vmul.f32 %v338, 1.442695
    %v340 = vpow.pop %v339
    %v341 = vadd.f32 %v340, 1.0
    %v342 = vrcp.pop %v341
    %v343 = vmul.f32 %v341, %v342
    %v344 = vsub.f32 1.0, %v343
    %v345 = vmul.f32 %v342, %v344
    %v346 = vadd.f32 %v342, %v345
    %vm347 = vweird.f32 %v341
    %vm348 = vweird.f32 %v342
    %vm349 = vmor %vm347, %vm348
    %v350 = vsel %vm349, %v342, %v346
    %v351 = vand.u32 2147483647, %v341
    %vm352 = vcmp.eq.f32.partialorder %v351, 8.507059e+37
    %v353 = vand.u32 %v341, 2147483648
    %v354 = vor.u32 1.1754944e-38, %v353
    %v355 = vsel %vm352, %v354, %v350
    %v356 = vmul.f32 1.0, %v355
    %v357 = vtanh.pop %v337
    %v358 = vmul.f32 %v356, 0.0
    %360 = vrot.lane.b32.xlu0 %v357, 96
    %v361 = vpop.permute.xlu0 %360
    %v363 = vmul.f32 %v356, %v361
    %365 = vrot.lane.b32.xlu0 %v363, 16
    %v366 = vpop.permute.xlu0 %365
    %v368 = vadd.f32 %v358, %v366
    %v369 = vtanh.pop %v368
    %371 = vrot.lane.b32.xlu0 %v369, 32
    %v372 = vpop.permute.xlu0 %371
    %v374 = vmul.f32 %v356, %v372
    %376 = vrot.lane.b32.xlu0 %v374, 80
    %v377 = vpop.permute.xlu0 %376
    %vm379 = vcmask 123904
    %380 = vst.msk [vmem:[#allocation2] sm:$0x3] %vm379, %v377
    %381 = vmatpush.msra.mxu0 0.0
    %382 = vmatpush.msra.mxu0 0.0
    %383 = vmatpush.msra.mxu0 0.0
    %384 = vmatpush.msra.mxu0 0.0
    %385 = vmatpush.msra.mxu0 0.0
    %386 = vmatpush.msra.mxu0 0.0
    %387 = vmatpush.msra.mxu0 0.0
    %388 = vmatpush.msra.mxu0 0.0
    %389 = vmatpush.msra.mxu0 0.0
    %390 = vmatpush.msra.mxu0 0.0
    %391 = vmatpush.msra.mxu0 0.0
    %392 = vmatpush.msra.mxu0 0.0
    %393 = vmatpush.msra.mxu0 %v176
    %394 = vmatpush.msra.mxu0 %v175
    %395 = vmatpush.msra.mxu0 %v174
    %396 = vmatpush.msra.mxu0 %v173
    %397 = vmatmul.f32.gmra.mxu0 %v312
    %v398 = vpop.f32.mrf.mxu0
    %v399 = vadd.f32 0.0, %v398
    %400 = vdwg.mxu0
    %v402 = vrot.slane %v399, 6
    %v404 = vadd.f32 %v219, %v402
    %v405 = vxor.u32 %v404, 2147483648
    %v406 = vmul.f32 %v405, 1.442695
    %v407 = vpow.pop %v406
    %v408 = vadd.f32 %v407, 1.0
    %v409 = vrcp.pop %v408
    %v410 = vmul.f32 %v408, %v409
    %v411 = vsub.f32 1.0, %v410
    %v412 = vmul.f32 %v409, %v411
    %v413 = vadd.f32 %v409, %v412
    %vm414 = vweird.f32 %v408
    %vm415 = vweird.f32 %v409
    %vm416 = vmor %vm414, %vm415
    %v417 = vsel %vm416, %v409, %v413
    %v418 = vand.u32 2147483647, %v408
    %vm419 = vcmp.eq.f32.partialorder %v418, 8.507059e+37
    %v420 = vand.u32 %v408, 2147483648
    %v421 = vor.u32 1.1754944e-38, %v420
    %v422 = vsel %vm419, %v421, %v417
    %v423 = vmul.f32 1.0, %v422
    %v424 = vtanh.pop %v404
    %v426 = vrot.slane %v279, 6
    %v428 = vmul.f32 %v423, %v426
    %430 = vrot.lane.b32.xlu0 %v424, 64
    %v431 = vpop.permute.xlu0 %430
    %v433 = vmul.f32 %v423, %v431
    %435 = vrot.lane.b32.xlu0 %v433, 32
    %v436 = vpop.permute.xlu0 %435
    %v438 = vadd.f32 %v428, %v436
    %v439 = vtanh.pop %v438
    %441 = vrot.lane.b32.xlu0 %v439, 64
    %v442 = vpop.permute.xlu0 %441
    %v444 = vmul.f32 %v423, %v442
    %v445 = vsel %vm286, %v377, 0
    %447 = vmatpush.msra.mxu0 0.0
    %448 = vmatpush.msra.mxu0 0.0
    %449 = vmatpush.msra.mxu0 0.0
    %450 = vmatpush.msra.mxu0 0.0
    %451 = vmatpush.msra.mxu0 0.0
    %452 = vmatpush.msra.mxu0 0.0
    %453 = vmatpush.msra.mxu0 0.0
    %454 = vmatpush.msra.mxu0 0.0
    %455 = vmatpush.msra.mxu0 0.0
    %456 = vmatpush.msra.mxu0 0.0
    %457 = vmatpush.msra.mxu0 0.0
    %458 = vmatpush.msra.mxu0 0.0
    %459 = vmatpush.msra.mxu0 0.0
    %460 = vmatpush.msra.mxu0 0.0
    %461 = vmatpush.msra.mxu0 %v182
    %462 = vmatpush.msra.mxu0 %v181
    %463 = vmatmul.f32.gmra.mxu0 %v445
    %v464 = vpop.f32.mrf.mxu0
    %v465 = vadd.f32 0.0, %v464
    %466 = vdwg.mxu0
    %v468 = vrot.slane %v444, 2
    %469 = vrot.lane.b32.xlu0 %v468, 32
    %v470 = vpop.permute.xlu0 %469
    %v471 = vsel %vm224, %v470, 0
    %473 = vmatpush.msra.mxu0 0.0
    %474 = vmatpush.msra.mxu0 0.0
    %475 = vmatpush.msra.mxu0 0.0
    %476 = vmatpush.msra.mxu0 0.0
    %477 = vmatpush.msra.mxu0 0.0
    %478 = vmatpush.msra.mxu0 0.0
    %479 = vmatpush.msra.mxu0 0.0
    %480 = vmatpush.msra.mxu0 0.0
    %481 = vmatpush.msra.mxu0 0.0
    %482 = vmatpush.msra.mxu0 0.0
    %483 = vmatpush.msra.mxu0 0.0
    %484 = vmatpush.msra.mxu0 0.0
    %485 = vmatpush.msra.mxu0 %v180
    %486 = vmatpush.msra.mxu0 %v179
    %487 = vmatpush.msra.mxu0 %v178
    %488 = vmatpush.msra.mxu0 %v177
    %489 = vmatmul.f32.gmra.mxu0 %v471
    %v490 = vpop.f32.mrf.mxu0
    %v491 = vadd.f32 %v465, %v490
    %492 = vdwg.mxu0
    %v493 = vadd.f32 %v491, %v335
    %v494 = vxor.u32 %v493, 2147483648
    %v495 = vmul.f32 %v494, 1.442695
    %v496 = vpow.pop %v495
    %v497 = vadd.f32 %v496, 1.0
    %v498 = vrcp.pop %v497
    %v499 = vmul.f32 %v497, %v498
    %v500 = vsub.f32 1.0, %v499
    %v501 = vmul.f32 %v498, %v500
    %v502 = vadd.f32 %v498, %v501
    %vm503 = vweird.f32 %v497
    %vm504 = vweird.f32 %v498
    %vm505 = vmor %vm503, %vm504
    %v506 = vsel %vm505, %v498, %v502
    %v507 = vand.u32 2147483647, %v497
    %vm508 = vcmp.eq.f32.partialorder %v507, 8.507059e+37
    %v509 = vand.u32 %v497, 2147483648
    %v510 = vor.u32 1.1754944e-38, %v509
    %v511 = vsel %vm508, %v510, %v506
    %v512 = vmul.f32 1.0, %v511
    %v513 = vtanh.pop %v493
    %v514 = vmul.f32 %v512, %v368
    %516 = vrot.lane.b32.xlu0 %v513, 96
    %v517 = vpop.permute.xlu0 %516
    %v519 = vmul.f32 %v512, %v517
    %521 = vrot.lane.b32.xlu0 %v519, 16
    %v522 = vpop.permute.xlu0 %521
    %v524 = vadd.f32 %v514, %v522
    %v525 = vtanh.pop %v524
    %527 = vrot.lane.b32.xlu0 %v525, 32
    %v528 = vpop.permute.xlu0 %527
    %v530 = vmul.f32 %v512, %v528
    %532 = vrot.lane.b32.xlu0 %v530, 80
    %v533 = vpop.permute.xlu0 %532
    %535 = vst.msk [vmem:[#allocation2 + $0x2] sm:$0x3] %vm379, %v533
    %536 = vmatpush.msra.mxu0 0.0
    %537 = vmatpush.msra.mxu0 0.0
    %538 = vmatpush.msra.mxu0 0.0
    %539 = vmatpush.msra.mxu0 0.0
    %540 = vmatpush.msra.mxu0 0.0
    %541 = vmatpush.msra.mxu0 0.0
    %542 = vmatpush.msra.mxu0 0.0
    %543 = vmatpush.msra.mxu0 0.0
    %544 = vmatpush.msra.mxu0 0.0
    %545 = vmatpush.msra.mxu0 0.0
    %546 = vmatpush.msra.mxu0 0.0
    %547 = vmatpush.msra.mxu0 0.0
    %548 = vmatpush.msra.mxu0 %v176
    %549 = vmatpush.msra.mxu0 %v175
    %550 = vmatpush.msra.mxu0 %v174
    %551 = vmatpush.msra.mxu0 %v173
    %552 = vmatmul.f32.gmra.mxu0 %v471
    %v553 = vpop.f32.mrf.mxu0
    %v554 = vadd.f32 0.0, %v553
    %555 = vdwg.mxu0
    %v557 = vrot.slane %v554, 4
    %v559 = vadd.f32 %v219, %v557
    %v560 = vxor.u32 %v559, 2147483648
    %v561 = vmul.f32 %v560, 1.442695
    %v562 = vpow.pop %v561
    %v563 = vadd.f32 %v562, 1.0
    %v564 = vrcp.pop %v563
    %v565 = vmul.f32 %v563, %v564
    %v566 = vsub.f32 1.0, %v565
    %v567 = vmul.f32 %v564, %v566
    %v568 = vadd.f32 %v564, %v567
    %vm569 = vweird.f32 %v563
    %vm570 = vweird.f32 %v564
    %vm571 = vmor %vm569, %vm570
    %v572 = vsel %vm571, %v564, %v568
    %v573 = vand.u32 2147483647, %v563
    %vm574 = vcmp.eq.f32.partialorder %v573, 8.507059e+37
    %v575 = vand.u32 %v563, 2147483648
    %v576 = vor.u32 1.1754944e-38, %v575
    %v577 = vsel %vm574, %v576, %v572
    %v578 = vmul.f32 1.0, %v577
    %v579 = vtanh.pop %v559
    %v581 = vrot.slane %v438, 6
    %v583 = vmul.f32 %v578, %v581
    %585 = vrot.lane.b32.xlu0 %v579, 64
    %v586 = vpop.permute.xlu0 %585
    %v588 = vmul.f32 %v578, %v586
    %590 = vrot.lane.b32.xlu0 %v588, 32
    %v591 = vpop.permute.xlu0 %590
    %v593 = vadd.f32 %v583, %v591
    %v594 = vtanh.pop %v593
    %596 = vrot.lane.b32.xlu0 %v594, 64
    %v597 = vpop.permute.xlu0 %596
    %v599 = vmul.f32 %v578, %v597
    %v600 = vsel %vm286, %v533, 0
    %602 = vmatpush.msra.mxu0 0.0
    %603 = vmatpush.msra.mxu0 0.0
    %604 = vmatpush.msra.mxu0 0.0
    %605 = vmatpush.msra.mxu0 0.0
    %606 = vmatpush.msra.mxu0 0.0
    %607 = vmatpush.msra.mxu0 0.0
    %608 = vmatpush.msra.mxu0 0.0
    %609 = vmatpush.msra.mxu0 0.0
    %610 = vmatpush.msra.mxu0 0.0
    %611 = vmatpush.msra.mxu0 0.0
    %612 = vmatpush.msra.mxu0 0.0
    %613 = vmatpush.msra.mxu0 0.0
    %614 = vmatpush.msra.mxu0 0.0
    %615 = vmatpush.msra.mxu0 0.0
    %616 = vmatpush.msra.mxu0 %v182
    %617 = vmatpush.msra.mxu0 %v181
    %618 = vmatmul.f32.gmra.mxu0 %v600
    %v619 = vpop.f32.mrf.mxu0
    %v620 = vadd.f32 0.0, %v619
    %621 = vdwg.mxu0
    %v623 = vrot.slane %v599, 4
    %624 = vrot.lane.b32.xlu0 %v623, 32
    %v625 = vpop.permute.xlu0 %624
    %v626 = vsel %vm224, %v625, 0
    %628 = vmatpush.msra.mxu0 0.0
    %629 = vmatpush.msra.mxu0 0.0
    %630 = vmatpush.msra.mxu0 0.0
    %631 = vmatpush.msra.mxu0 0.0
    %632 = vmatpush.msra.mxu0 0.0
    %633 = vmatpush.msra.mxu0 0.0
    %634 = vmatpush.msra.mxu0 0.0
    %635 = vmatpush.msra.mxu0 0.0
    %636 = vmatpush.msra.mxu0 0.0
    %637 = vmatpush.msra.mxu0 0.0
    %638 = vmatpush.msra.mxu0 0.0
    %639 = vmatpush.msra.mxu0 0.0
    %640 = vmatpush.msra.mxu0 %v180
    %641 = vmatpush.msra.mxu0 %v179
    %642 = vmatpush.msra.mxu0 %v178
    %643 = vmatpush.msra.mxu0 %v177
    %644 = vmatmul.f32.gmra.mxu0 %v626
    %v645 = vpop.f32.mrf.mxu0
    %v646 = vadd.f32 %v620, %v645
    %647 = vdwg.mxu0
    %v648 = vadd.f32 %v646, %v335
    %v649 = vxor.u32 %v648, 2147483648
    %v650 = vmul.f32 %v649, 1.442695
    %v651 = vpow.pop %v650
    %v652 = vadd.f32 %v651, 1.0
    %v653 = vrcp.pop %v652
    %v654 = vmul.f32 %v652, %v653
    %v655 = vsub.f32 1.0, %v654
    %v656 = vmul.f32 %v653, %v655
    %v657 = vadd.f32 %v653, %v656
    %vm658 = vweird.f32 %v652
    %vm659 = vweird.f32 %v653
    %vm660 = vmor %vm658, %vm659
    %v661 = vsel %vm660, %v653, %v657
    %v662 = vand.u32 2147483647, %v652
    %vm663 = vcmp.eq.f32.partialorder %v662, 8.507059e+37
    %v664 = vand.u32 %v652, 2147483648
    %v665 = vor.u32 1.1754944e-38, %v664
    %v666 = vsel %vm663, %v665, %v661
    %v667 = vmul.f32 1.0, %v666
    %v668 = vtanh.pop %v648
    %v669 = vmul.f32 %v667, %v524
    %671 = vrot.lane.b32.xlu0 %v668, 96
    %v672 = vpop.permute.xlu0 %671
    %v674 = vmul.f32 %v667, %v672
    %676 = vrot.lane.b32.xlu0 %v674, 16
    %v677 = vpop.permute.xlu0 %676
    %v679 = vadd.f32 %v669, %v677
    %v680 = vtanh.pop %v679
    %682 = vrot.lane.b32.xlu0 %v680, 32
    %v683 = vpop.permute.xlu0 %682
    %v685 = vmul.f32 %v667, %v683
    %687 = vrot.lane.b32.xlu0 %v685, 80
    %v688 = vpop.permute.xlu0 %687
    %690 = vst.msk [vmem:[#allocation2 + $0x4] sm:$0x3] %vm379, %v688
    %691 = vmatpush.msra.mxu0 0.0
    %692 = vmatpush.msra.mxu0 0.0
    %693 = vmatpush.msra.mxu0 0.0
    %694 = vmatpush.msra.mxu0 0.0
    %695 = vmatpush.msra.mxu0 0.0
    %696 = vmatpush.msra.mxu0 0.0
    %697 = vmatpush.msra.mxu0 0.0
    %698 = vmatpush.msra.mxu0 0.0
    %699 = vmatpush.msra.mxu0 0.0
    %700 = vmatpush.msra.mxu0 0.0
    %701 = vmatpush.msra.mxu0 0.0
    %702 = vmatpush.msra.mxu0 0.0
    %703 = vmatpush.msra.mxu0 %v176
    %704 = vmatpush.msra.mxu0 %v175
    %705 = vmatpush.msra.mxu0 %v174
    %706 = vmatpush.msra.mxu0 %v173
    %707 = vmatmul.f32.gmra.mxu0 %v626
    %v708 = vpop.f32.mrf.mxu0
    %v709 = vadd.f32 0.0, %v708
    %710 = vdwg.mxu0
    %v712 = vrot.slane %v709, 2
    %v714 = vadd.f32 %v219, %v712
    %v715 = vxor.u32 %v714, 2147483648
    %v716 = vmul.f32 %v715, 1.442695
    %v717 = vpow.pop %v716
    %v718 = vadd.f32 %v717, 1.0
    %v719 = vrcp.pop %v718
    %v720 = vmul.f32 %v718, %v719
    %v721 = vsub.f32 1.0, %v720
    %v722 = vmul.f32 %v719, %v721
    %v723 = vadd.f32 %v719, %v722
    %vm724 = vweird.f32 %v718
    %vm725 = vweird.f32 %v719
    %vm726 = vmor %vm724, %vm725
    %v727 = vsel %vm726, %v719, %v723
    %v728 = vand.u32 2147483647, %v718
    %vm729 = vcmp.eq.f32.partialorder %v728, 8.507059e+37
    %v730 = vand.u32 %v718, 2147483648
    %v731 = vor.u32 1.1754944e-38, %v730
    %v732 = vsel %vm729, %v731, %v727
    %v733 = vmul.f32 1.0, %v732
    %v734 = vtanh.pop %v714
    %v736 = vrot.slane %v593, 6
    %v738 = vmul.f32 %v733, %v736
    %740 = vrot.lane.b32.xlu0 %v734, 64
    %v741 = vpop.permute.xlu0 %740
    %v743 = vmul.f32 %v733, %v741
    %745 = vrot.lane.b32.xlu0 %v743, 32
    %v746 = vpop.permute.xlu0 %745
    %v748 = vadd.f32 %v738, %v746
    %v749 = vtanh.pop %v748
    %751 = vrot.lane.b32.xlu0 %v749, 64
    %v752 = vpop.permute.xlu0 %751
    %v754 = vmul.f32 %v733, %v752
    %v755 = vsel %vm286, %v688, 0
    %757 = vmatpush.msra.mxu0 0.0
    %758 = vmatpush.msra.mxu0 0.0
    %759 = vmatpush.msra.mxu0 0.0
    %760 = vmatpush.msra.mxu0 0.0
    %761 = vmatpush.msra.mxu0 0.0
    %762 = vmatpush.msra.mxu0 0.0
    %763 = vmatpush.msra.mxu0 0.0
    %764 = vmatpush.msra.mxu0 0.0
    %765 = vmatpush.msra.mxu0 0.0
    %766 = vmatpush.msra.mxu0 0.0
    %767 = vmatpush.msra.mxu0 0.0
    %768 = vmatpush.msra.mxu0 0.0
    %769 = vmatpush.msra.mxu0 0.0
    %770 = vmatpush.msra.mxu0 0.0
    %771 = vmatpush.msra.mxu0 %v182
    %772 = vmatpush.msra.mxu0 %v181
    %773 = vmatmul.f32.gmra.mxu0 %v755
    %v774 = vpop.f32.mrf.mxu0
    %v775 = vadd.f32 0.0, %v774
    %776 = vdwg.mxu0
    %v778 = vrot.slane %v754, 6
    %779 = vrot.lane.b32.xlu0 %v778, 32
    %v780 = vpop.permute.xlu0 %779
    %v781 = vsel %vm224, %v780, 0
    %783 = vmatpush.msra.mxu0 0.0
    %784 = vmatpush.msra.mxu0 0.0
    %785 = vmatpush.msra.mxu0 0.0
    %786 = vmatpush.msra.mxu0 0.0
    %787 = vmatpush.msra.mxu0 0.0
    %788 = vmatpush.msra.mxu0 0.0
    %789 = vmatpush.msra.mxu0 0.0
    %790 = vmatpush.msra.mxu0 0.0
    %791 = vmatpush.msra.mxu0 0.0
    %792 = vmatpush.msra.mxu0 0.0
    %793 = vmatpush.msra.mxu0 0.0
    %794 = vmatpush.msra.mxu0 0.0
    %795 = vmatpush.msra.mxu0 %v180
    %796 = vmatpush.msra.mxu0 %v179
    %797 = vmatpush.msra.mxu0 %v178
    %798 = vmatpush.msra.mxu0 %v177
    %799 = vmatmul.f32.gmra.mxu0 %v781
    %v800 = vpop.f32.mrf.mxu0
    %v801 = vadd.f32 %v775, %v800
    %802 = vdwg.mxu0
    %v803 = vadd.f32 %v801, %v335
    %v804 = vxor.u32 %v803, 2147483648
    %v805 = vmul.f32 %v804, 1.442695
    %v806 = vpow.pop %v805
    %v807 = vadd.f32 %v806, 1.0
    %v808 = vrcp.pop %v807
    %v809 = vmul.f32 %v807, %v808
    %v810 = vsub.f32 1.0, %v809
    %v811 = vmul.f32 %v808, %v810
    %v812 = vadd.f32 %v808, %v811
    %vm813 = vweird.f32 %v807
    %vm814 = vweird.f32 %v808
    %vm815 = vmor %vm813, %vm814
    %v816 = vsel %vm815, %v808, %v812
    %v817 = vand.u32 2147483647, %v807
    %vm818 = vcmp.eq.f32.partialorder %v817, 8.507059e+37
    %v819 = vand.u32 %v807, 2147483648
    %v820 = vor.u32 1.1754944e-38, %v819
    %v821 = vsel %vm818, %v820, %v816
    %v822 = vmul.f32 1.0, %v821
    %v823 = vtanh.pop %v803
    %v824 = vmul.f32 %v822, %v679
    %826 = vrot.lane.b32.xlu0 %v823, 96
    %v827 = vpop.permute.xlu0 %826
    %v829 = vmul.f32 %v822, %v827
    %831 = vrot.lane.b32.xlu0 %v829, 16
    %v832 = vpop.permute.xlu0 %831
    %v834 = vadd.f32 %v824, %v832
    %v835 = vtanh.pop %v834
    %837 = vrot.lane.b32.xlu0 %v835, 32
    %v838 = vpop.permute.xlu0 %837
    %v840 = vmul.f32 %v822, %v838
    %842 = vrot.lane.b32.xlu0 %v840, 80
    %v843 = vpop.permute.xlu0 %842
    %845 = vst.msk [vmem:[#allocation2 + $0x6] sm:$0x3] %vm379, %v843
    %846 = vmatpush.msra.mxu0 0.0
    %847 = vmatpush.msra.mxu0 0.0
    %848 = vmatpush.msra.mxu0 0.0
    %849 = vmatpush.msra.mxu0 0.0
    %850 = vmatpush.msra.mxu0 0.0
    %851 = vmatpush.msra.mxu0 0.0
    %852 = vmatpush.msra.mxu0 0.0
    %853 = vmatpush.msra.mxu0 0.0
    %854 = vmatpush.msra.mxu0 0.0
    %855 = vmatpush.msra.mxu0 0.0
    %856 = vmatpush.msra.mxu0 0.0
    %857 = vmatpush.msra.mxu0 0.0
    %858 = vmatpush.msra.mxu0 %v176
    %859 = vmatpush.msra.mxu0 %v175
    %860 = vmatpush.msra.mxu0 %v174
    %861 = vmatpush.msra.mxu0 %v173
    %862 = vmatmul.f32.gmra.mxu0 %v781
    %v863 = vpop.f32.mrf.mxu0
    %v864 = vadd.f32 0.0, %v863
    %865 = vdwg.mxu0
    %v866 = vadd.f32 %v222, %v864
    %v867 = vxor.u32 %v866, 2147483648
    %v868 = vmul.f32 %v867, 1.442695
    %v869 = vpow.pop %v868
    %v870 = vadd.f32 %v869, 1.0
    %v871 = vrcp.pop %v870
    %v872 = vmul.f32 %v870, %v871
    %v873 = vsub.f32 1.0, %v872
    %v874 = vmul.f32 %v871, %v873
    %v875 = vadd.f32 %v871, %v874
    %vm876 = vweird.f32 %v870
    %vm877 = vweird.f32 %v871
    %vm878 = vmor %vm876, %vm877
    %v879 = vsel %vm878, %v871, %v875
    %v880 = vand.u32 2147483647, %v870
    %vm881 = vcmp.eq.f32.partialorder %v880, 8.507059e+37
    %v882 = vand.u32 %v870, 2147483648
    %v883 = vor.u32 1.1754944e-38, %v882
    %v884 = vsel %vm881, %v883, %v879
    %v885 = vmul.f32 1.0, %v884
    %v886 = vtanh.pop %v866
    %v888 = vrot.slane %v748, 6
    %v890 = vmul.f32 %v885, %v888
    %892 = vrot.lane.b32.xlu0 %v886, 64
    %v893 = vpop.permute.xlu0 %892
    %v895 = vmul.f32 %v885, %v893
    %897 = vrot.lane.b32.xlu0 %v895, 32
    %v898 = vpop.permute.xlu0 %897
    %v900 = vadd.f32 %v890, %v898
    %v901 = vtanh.pop %v900
    %903 = vrot.lane.b32.xlu0 %v901, 64
    %v904 = vpop.permute.xlu0 %903
    %v906 = vmul.f32 %v885, %v904
    %v907 = vsel %vm286, %v843, 0
    %909 = vmatpush.msra.mxu0 0.0
    %910 = vmatpush.msra.mxu0 0.0
    %911 = vmatpush.msra.mxu0 0.0
    %912 = vmatpush.msra.mxu0 0.0
    %913 = vmatpush.msra.mxu0 0.0
    %914 = vmatpush.msra.mxu0 0.0
    %915 = vmatpush.msra.mxu0 0.0
    %916 = vmatpush.msra.mxu0 0.0
    %917 = vmatpush.msra.mxu0 0.0
    %918 = vmatpush.msra.mxu0 0.0
    %919 = vmatpush.msra.mxu0 0.0
    %920 = vmatpush.msra.mxu0 0.0
    %921 = vmatpush.msra.mxu0 0.0
    %922 = vmatpush.msra.mxu0 0.0
    %923 = vmatpush.msra.mxu0 %v182
    %924 = vmatpush.msra.mxu0 %v181
    %925 = vmatmul.f32.gmra.mxu0 %v907
    %v926 = vpop.f32.mrf.mxu0
    %v927 = vadd.f32 0.0, %v926
    %928 = vdwg.mxu0
    %930 = vrot.lane.b32.xlu0 %v906, 32
    %v931 = vpop.permute.xlu0 %930
    %v932 = vsel %vm224, %v931, 0
    %934 = vmatpush.msra.mxu0 0.0
    %935 = vmatpush.msra.mxu0 0.0
    %936 = vmatpush.msra.mxu0 0.0
    %937 = vmatpush.msra.mxu0 0.0
    %938 = vmatpush.msra.mxu0 0.0
    %939 = vmatpush.msra.mxu0 0.0
    %940 = vmatpush.msra.mxu0 0.0
    %941 = vmatpush.msra.mxu0 0.0
    %942 = vmatpush.msra.mxu0 0.0
    %943 = vmatpush.msra.mxu0 0.0
    %944 = vmatpush.msra.mxu0 0.0
    %945 = vmatpush.msra.mxu0 0.0
    %946 = vmatpush.msra.mxu0 %v180
    %947 = vmatpush.msra.mxu0 %v179
    %948 = vmatpush.msra.mxu0 %v178
    %949 = vmatpush.msra.mxu0 %v177
    %950 = vmatmul.f32.gmra.mxu0 %v932
    %v951 = vpop.f32.mrf.mxu0
    %v952 = vadd.f32 %v927, %v951
    %953 = vdwg.mxu0
    %v954 = vadd.f32 %v952, %v335
    %v955 = vxor.u32 %v954, 2147483648
    %v956 = vmul.f32 %v955, 1.442695
    %v957 = vpow.pop %v956
    %v958 = vadd.f32 %v957, 1.0
    %v959 = vrcp.pop %v958
    %v960 = vmul.f32 %v958, %v959
    %v961 = vsub.f32 1.0, %v960
    %v962 = vmul.f32 %v959, %v961
    %v963 = vadd.f32 %v959, %v962
    %vm964 = vweird.f32 %v958
    %vm965 = vweird.f32 %v959
    %vm966 = vmor %vm964, %vm965
    %v967 = vsel %vm966, %v959, %v963
    %v968 = vand.u32 2147483647, %v958
    %vm969 = vcmp.eq.f32.partialorder %v968, 8.507059e+37
    %v970 = vand.u32 %v958, 2147483648
    %v971 = vor.u32 1.1754944e-38, %v970
    %v972 = vsel %vm969, %v971, %v967
    %v973 = vmul.f32 1.0, %v972
    %v974 = vtanh.pop %v954
    %v975 = vmul.f32 %v973, %v834
    %977 = vrot.lane.b32.xlu0 %v974, 96
    %v978 = vpop.permute.xlu0 %977
    %v980 = vmul.f32 %v973, %v978
    %982 = vrot.lane.b32.xlu0 %v980, 16
    %v983 = vpop.permute.xlu0 %982
    %v985 = vadd.f32 %v975, %v983
    %v986 = vtanh.pop %v985
    %988 = vrot.lane.b32.xlu0 %v986, 32
    %v989 = vpop.permute.xlu0 %988
    %v991 = vmul.f32 %v973, %v989
    %993 = vrot.lane.b32.xlu0 %v991, 80
    %v994 = vpop.permute.xlu0 %993
    %996 = vst.msk [vmem:[#allocation2 + $0x8] sm:$0x3] %vm379, %v994
    %997 = vmatpush.msra.mxu0 0.0
    %998 = vmatpush.msra.mxu0 0.0
    %999 = vmatpush.msra.mxu0 0.0
    %1000 = vmatpush.msra.mxu0 0.0
    %1001 = vmatpush.msra.mxu0 0.0
    %1002 = vmatpush.msra.mxu0 0.0
    %1003 = vmatpush.msra.mxu0 0.0
    %1004 = vmatpush.msra.mxu0 0.0
    %1005 = vmatpush.msra.mxu0 0.0
    %1006 = vmatpush.msra.mxu0 0.0
    %1007 = vmatpush.msra.mxu0 0.0
    %1008 = vmatpush.msra.mxu0 0.0
    %1009 = vmatpush.msra.mxu0 %v176
    %1010 = vmatpush.msra.mxu0 %v175
    %1011 = vmatpush.msra.mxu0 %v174
    %1012 = vmatpush.msra.mxu0 %v173
    %1013 = vmatmul.f32.gmra.mxu0 %v932
    %v1014 = vpop.f32.mrf.mxu0
    %v1015 = vadd.f32 0.0, %v1014
    %1016 = vdwg.mxu0
    %v1018 = vrot.slane %v1015, 6
    %v1020 = vadd.f32 %v222, %v1018
    %v1021 = vxor.u32 %v1020, 2147483648
    %v1022 = vmul.f32 %v1021, 1.442695
    %v1023 = vpow.pop %v1022
    %v1024 = vadd.f32 %v1023, 1.0
    %v1025 = vrcp.pop %v1024
    %v1026 = vmul.f32 %v1024, %v1025
    %v1027 = vsub.f32 1.0, %v1026
    %v1028 = vmul.f32 %v1025, %v1027
    %v1029 = vadd.f32 %v1025, %v1028
    %vm1030 = vweird.f32 %v1024
    %vm1031 = vweird.f32 %v1025
    %vm1032 = vmor %vm1030, %vm1031
    %v1033 = vsel %vm1032, %v1025, %v1029
    %v1034 = vand.u32 2147483647, %v1024
    %vm1035 = vcmp.eq.f32.partialorder %v1034, 8.507059e+37
    %v1036 = vand.u32 %v1024, 2147483648
    %v1037 = vor.u32 1.1754944e-38, %v1036
    %v1038 = vsel %vm1035, %v1037, %v1033
    %v1039 = vmul.f32 1.0, %v1038
    %v1040 = vtanh.pop %v1020
    %v1042 = vrot.slane %v900, 6
    %v1044 = vmul.f32 %v1039, %v1042
    %1046 = vrot.lane.b32.xlu0 %v1040, 64
    %v1047 = vpop.permute.xlu0 %1046
    %v1049 = vmul.f32 %v1039, %v1047
    %1051 = vrot.lane.b32.xlu0 %v1049, 32
    %v1052 = vpop.permute.xlu0 %1051
    %v1054 = vadd.f32 %v1044, %v1052
    %v1055 = vtanh.pop %v1054
    %1057 = vrot.lane.b32.xlu0 %v1055, 64
    %v1058 = vpop.permute.xlu0 %1057
    %v1060 = vmul.f32 %v1039, %v1058
    %v1061 = vsel %vm286, %v994, 0
    %1063 = vmatpush.msra.mxu0 0.0
    %1064 = vmatpush.msra.mxu0 0.0
    %1065 = vmatpush.msra.mxu0 0.0
    %1066 = vmatpush.msra.mxu0 0.0
    %1067 = vmatpush.msra.mxu0 0.0
    %1068 = vmatpush.msra.mxu0 0.0
    %1069 = vmatpush.msra.mxu0 0.0
    %1070 = vmatpush.msra.mxu0 0.0
    %1071 = vmatpush.msra.mxu0 0.0
    %1072 = vmatpush.msra.mxu0 0.0
    %1073 = vmatpush.msra.mxu0 0.0
    %1074 = vmatpush.msra.mxu0 0.0
    %1075 = vmatpush.msra.mxu0 0.0
    %1076 = vmatpush.msra.mxu0 0.0
    %1077 = vmatpush.msra.mxu0 %v182
    %1078 = vmatpush.msra.mxu0 %v181
    %1079 = vmatmul.f32.gmra.mxu0 %v1061
    %v1080 = vpop.f32.mrf.mxu0
    %v1081 = vadd.f32 0.0, %v1080
    %1082 = vdwg.mxu0
    %v1084 = vrot.slane %v1060, 2
    %1085 = vrot.lane.b32.xlu0 %v1084, 32
    %v1086 = vpop.permute.xlu0 %1085
    %v1087 = vsel %vm224, %v1086, 0
    %1089 = vmatpush.msra.mxu0 0.0
    %1090 = vmatpush.msra.mxu0 0.0
    %1091 = vmatpush.msra.mxu0 0.0
    %1092 = vmatpush.msra.mxu0 0.0
    %1093 = vmatpush.msra.mxu0 0.0
    %1094 = vmatpush.msra.mxu0 0.0
    %1095 = vmatpush.msra.mxu0 0.0
    %1096 = vmatpush.msra.mxu0 0.0
    %1097 = vmatpush.msra.mxu0 0.0
    %1098 = vmatpush.msra.mxu0 0.0
    %1099 = vmatpush.msra.mxu0 0.0
    %1100 = vmatpush.msra.mxu0 0.0
    %1101 = vmatpush.msra.mxu0 %v180
    %1102 = vmatpush.msra.mxu0 %v179
    %1103 = vmatpush.msra.mxu0 %v178
    %1104 = vmatpush.msra.mxu0 %v177
    %1105 = vmatmul.f32.gmra.mxu0 %v1087
    %v1106 = vpop.f32.mrf.mxu0
    %v1107 = vadd.f32 %v1081, %v1106
    %1108 = vdwg.mxu0
    %v1109 = vadd.f32 %v1107, %v335
    %v1110 = vxor.u32 %v1109, 2147483648
    %v1111 = vmul.f32 %v1110, 1.442695
    %v1112 = vpow.pop %v1111
    %v1113 = vadd.f32 %v1112, 1.0
    %v1114 = vrcp.pop %v1113
    %v1115 = vmul.f32 %v1113, %v1114
    %v1116 = vsub.f32 1.0, %v1115
    %v1117 = vmul.f32 %v1114, %v1116
    %v1118 = vadd.f32 %v1114, %v1117
    %vm1119 = vweird.f32 %v1113
    %vm1120 = vweird.f32 %v1114
    %vm1121 = vmor %vm1119, %vm1120
    %v1122 = vsel %vm1121, %v1114, %v1118
    %v1123 = vand.u32 2147483647, %v1113
    %vm1124 = vcmp.eq.f32.partialorder %v1123, 8.507059e+37
    %v1125 = vand.u32 %v1113, 2147483648
    %v1126 = vor.u32 1.1754944e-38, %v1125
    %v1127 = vsel %vm1124, %v1126, %v1122
    %v1128 = vmul.f32 1.0, %v1127
    %v1129 = vtanh.pop %v1109
    %v1130 = vmul.f32 %v1128, %v985
    %1132 = vrot.lane.b32.xlu0 %v1129, 96
    %v1133 = vpop.permute.xlu0 %1132
    %v1135 = vmul.f32 %v1128, %v1133
    %1137 = vrot.lane.b32.xlu0 %v1135, 16
    %v1138 = vpop.permute.xlu0 %1137
    %v1140 = vadd.f32 %v1130, %v1138
    %v1141 = vtanh.pop %v1140
    %1143 = vrot.lane.b32.xlu0 %v1141, 32
    %v1144 = vpop.permute.xlu0 %1143
    %v1146 = vmul.f32 %v1128, %v1144
    %1148 = vrot.lane.b32.xlu0 %v1146, 80
    %v1149 = vpop.permute.xlu0 %1148
    %1151 = vst.msk [vmem:[#allocation2 + $0xa] sm:$0x3] %vm379, %v1149
    %1152 = vmatpush.msra.mxu0 0.0
    %1153 = vmatpush.msra.mxu0 0.0
    %1154 = vmatpush.msra.mxu0 0.0
    %1155 = vmatpush.msra.mxu0 0.0
    %1156 = vmatpush.msra.mxu0 0.0
    %1157 = vmatpush.msra.mxu0 0.0
    %1158 = vmatpush.msra.mxu0 0.0
    %1159 = vmatpush.msra.mxu0 0.0
    %1160 = vmatpush.msra.mxu0 0.0
    %1161 = vmatpush.msra.mxu0 0.0
    %1162 = vmatpush.msra.mxu0 0.0
    %1163 = vmatpush.msra.mxu0 0.0
    %1164 = vmatpush.msra.mxu0 %v176
    %1165 = vmatpush.msra.mxu0 %v175
    %1166 = vmatpush.msra.mxu0 %v174
    %1167 = vmatpush.msra.mxu0 %v173
    %1168 = vmatmul.f32.gmra.mxu0 %v1087
    %v1169 = vpop.f32.mrf.mxu0
    %v1170 = vadd.f32 0.0, %v1169
    %1171 = vdwg.mxu0
    %v1173 = vrot.slane %v1170, 4
    %v1175 = vadd.f32 %v222, %v1173
    %v1176 = vxor.u32 %v1175, 2147483648
    %v1177 = vmul.f32 %v1176, 1.442695
    %v1178 = vpow.pop %v1177
    %v1179 = vadd.f32 %v1178, 1.0
    %v1180 = vrcp.pop %v1179
    %v1181 = vmul.f32 %v1179, %v1180
    %v1182 = vsub.f32 1.0, %v1181
    %v1183 = vmul.f32 %v1180, %v1182
    %v1184 = vadd.f32 %v1180, %v1183
    %vm1185 = vweird.f32 %v1179
    %vm1186 = vweird.f32 %v1180
    %vm1187 = vmor %vm1185, %vm1186
    %v1188 = vsel %vm1187, %v1180, %v1184
    %v1189 = vand.u32 2147483647, %v1179
    %vm1190 = vcmp.eq.f32.partialorder %v1189, 8.507059e+37
    %v1191 = vand.u32 %v1179, 2147483648
    %v1192 = vor.u32 1.1754944e-38, %v1191
    %v1193 = vsel %vm1190, %v1192, %v1188
    %v1194 = vmul.f32 1.0, %v1193
    %v1195 = vtanh.pop %v1175
    %v1197 = vrot.slane %v1054, 6
    %v1199 = vmul.f32 %v1194, %v1197
    %1201 = vrot.lane.b32.xlu0 %v1195, 64
    %v1202 = vpop.permute.xlu0 %1201
    %v1204 = vmul.f32 %v1194, %v1202
    %1206 = vrot.lane.b32.xlu0 %v1204, 32
    %v1207 = vpop.permute.xlu0 %1206
    %v1209 = vadd.f32 %v1199, %v1207
    %v1210 = vtanh.pop %v1209
    %1212 = vrot.lane.b32.xlu0 %v1210, 64
    %v1213 = vpop.permute.xlu0 %1212
    %v1215 = vmul.f32 %v1194, %v1213
    %v1216 = vsel %vm286, %v1149, 0
    %1218 = vmatpush.msra.mxu0 0.0
    %1219 = vmatpush.msra.mxu0 0.0
    %1220 = vmatpush.msra.mxu0 0.0
    %1221 = vmatpush.msra.mxu0 0.0
    %1222 = vmatpush.msra.mxu0 0.0
    %1223 = vmatpush.msra.mxu0 0.0
    %1224 = vmatpush.msra.mxu0 0.0
    %1225 = vmatpush.msra.mxu0 0.0
    %1226 = vmatpush.msra.mxu0 0.0
    %1227 = vmatpush.msra.mxu0 0.0
    %1228 = vmatpush.msra.mxu0 0.0
    %1229 = vmatpush.msra.mxu0 0.0
    %1230 = vmatpush.msra.mxu0 0.0
    %1231 = vmatpush.msra.mxu0 0.0
    %1232 = vmatpush.msra.mxu0 %v182
    %1233 = vmatpush.msra.mxu0 %v181
    %1234 = vmatmul.f32.gmra.mxu0 %v1216
    %v1235 = vpop.f32.mrf.mxu0
    %v1236 = vadd.f32 0.0, %v1235
    %1237 = vdwg.mxu0
    %v1239 = vrot.slane %v1215, 4
    %1240 = vrot.lane.b32.xlu0 %v1239, 32
    %v1241 = vpop.permute.xlu0 %1240
    %v1242 = vsel %vm224, %v1241, 0
    %1244 = vmatpush.msra.mxu0 0.0
    %1245 = vmatpush.msra.mxu0 0.0
    %1246 = vmatpush.msra.mxu0 0.0
    %1247 = vmatpush.msra.mxu0 0.0
    %1248 = vmatpush.msra.mxu0 0.0
    %1249 = vmatpush.msra.mxu0 0.0
    %1250 = vmatpush.msra.mxu0 0.0
    %1251 = vmatpush.msra.mxu0 0.0
    %1252 = vmatpush.msra.mxu0 0.0
    %1253 = vmatpush.msra.mxu0 0.0
    %1254 = vmatpush.msra.mxu0 0.0
    %1255 = vmatpush.msra.mxu0 0.0
    %1256 = vmatpush.msra.mxu0 %v180
    %1257 = vmatpush.msra.mxu0 %v179
    %1258 = vmatpush.msra.mxu0 %v178
    %1259 = vmatpush.msra.mxu0 %v177
    %1260 = vmatmul.f32.gmra.mxu0 %v1242
    %v1261 = vpop.f32.mrf.mxu0
    %v1262 = vadd.f32 %v1236, %v1261
    %1263 = vdwg.mxu0
    %v1264 = vadd.f32 %v1262, %v335
    %v1265 = vxor.u32 %v1264, 2147483648
    %v1266 = vmul.f32 %v1265, 1.442695
    %v1267 = vpow.pop %v1266
    %v1268 = vadd.f32 %v1267, 1.0
    %v1269 = vrcp.pop %v1268
    %v1270 = vmul.f32 %v1268, %v1269
    %v1271 = vsub.f32 1.0, %v1270
    %v1272 = vmul.f32 %v1269, %v1271
    %v1273 = vadd.f32 %v1269, %v1272
    %vm1274 = vweird.f32 %v1268
    %vm1275 = vweird.f32 %v1269
    %vm1276 = vmor %vm1274, %vm1275
    %v1277 = vsel %vm1276, %v1269, %v1273
    %v1278 = vand.u32 2147483647, %v1268
    %vm1279 = vcmp.eq.f32.partialorder %v1278, 8.507059e+37
    %v1280 = vand.u32 %v1268, 2147483648
    %v1281 = vor.u32 1.1754944e-38, %v1280
    %v1282 = vsel %vm1279, %v1281, %v1277
    %v1283 = vmul.f32 1.0, %v1282
    %v1284 = vtanh.pop %v1264
    %v1285 = vmul.f32 %v1283, %v1140
    %1287 = vrot.lane.b32.xlu0 %v1284, 96
    %v1288 = vpop.permute.xlu0 %1287
    %v1290 = vmul.f32 %v1283, %v1288
    %1292 = vrot.lane.b32.xlu0 %v1290, 16
    %v1293 = vpop.permute.xlu0 %1292
    %v1295 = vadd.f32 %v1285, %v1293
    %v1296 = vtanh.pop %v1295
    %1298 = vrot.lane.b32.xlu0 %v1296, 32
    %v1299 = vpop.permute.xlu0 %1298
    %v1301 = vmul.f32 %v1283, %v1299
    %1303 = vrot.lane.b32.xlu0 %v1301, 80
    %v1304 = vpop.permute.xlu0 %1303
    %1306 = vst.msk [vmem:[#allocation2 + $0xc] sm:$0x3] %vm379, %v1304
    %1307 = vmatpush.msra.mxu0 0.0
    %1308 = vmatpush.msra.mxu0 0.0
    %1309 = vmatpush.msra.mxu0 0.0
    %1310 = vmatpush.msra.mxu0 0.0
    %1311 = vmatpush.msra.mxu0 0.0
    %1312 = vmatpush.msra.mxu0 0.0
    %1313 = vmatpush.msra.mxu0 0.0
    %1314 = vmatpush.msra.mxu0 0.0
    %1315 = vmatpush.msra.mxu0 0.0
    %1316 = vmatpush.msra.mxu0 0.0
    %1317 = vmatpush.msra.mxu0 0.0
    %1318 = vmatpush.msra.mxu0 0.0
    %1319 = vmatpush.msra.mxu0 %v176
    %1320 = vmatpush.msra.mxu0 %v175
    %1321 = vmatpush.msra.mxu0 %v174
    %1322 = vmatpush.msra.mxu0 %v173
    %1323 = vmatmul.f32.gmra.mxu0 %v1242
    %v1324 = vpop.f32.mrf.mxu0
    %v1325 = vadd.f32 0.0, %v1324
    %1326 = vdwg.mxu0
    %v1328 = vrot.slane %v1325, 2
    %v1330 = vadd.f32 %v222, %v1328
    %v1331 = vxor.u32 %v1330, 2147483648
    %v1332 = vmul.f32 %v1331, 1.442695
    %v1333 = vpow.pop %v1332
    %v1334 = vadd.f32 %v1333, 1.0
    %v1335 = vrcp.pop %v1334
    %v1336 = vmul.f32 %v1334, %v1335
    %v1337 = vsub.f32 1.0, %v1336
    %v1338 = vmul.f32 %v1335, %v1337
    %v1339 = vadd.f32 %v1335, %v1338
    %vm1340 = vweird.f32 %v1334
    %vm1341 = vweird.f32 %v1335
    %vm1342 = vmor %vm1340, %vm1341
    %v1343 = vsel %vm1342, %v1335, %v1339
    %v1344 = vand.u32 2147483647, %v1334
    %vm1345 = vcmp.eq.f32.partialorder %v1344, 8.507059e+37
    %v1346 = vand.u32 %v1334, 2147483648
    %v1347 = vor.u32 1.1754944e-38, %v1346
    %v1348 = vsel %vm1345, %v1347, %v1343
    %v1349 = vmul.f32 1.0, %v1348
    %v1350 = vtanh.pop %v1330
    %v1352 = vrot.slane %v1209, 6
    %v1354 = vmul.f32 %v1349, %v1352
    %1356 = vrot.lane.b32.xlu0 %v1350, 64
    %v1357 = vpop.permute.xlu0 %1356
    %v1359 = vmul.f32 %v1349, %v1357
    %1361 = vrot.lane.b32.xlu0 %v1359, 32
    %v1362 = vpop.permute.xlu0 %1361
    %v1364 = vadd.f32 %v1354, %v1362
    %v1365 = vtanh.pop %v1364
    %1367 = vrot.lane.b32.xlu0 %v1365, 64
    %v1368 = vpop.permute.xlu0 %1367
    %v1370 = vmul.f32 %v1349, %v1368
    %v1371 = vsel %vm286, %v1304, 0
    %1373 = vmatpush.msra.mxu0 0.0
    %1374 = vmatpush.msra.mxu0 0.0
    %1375 = vmatpush.msra.mxu0 0.0
    %1376 = vmatpush.msra.mxu0 0.0
    %1377 = vmatpush.msra.mxu0 0.0
    %1378 = vmatpush.msra.mxu0 0.0
    %1379 = vmatpush.msra.mxu0 0.0
    %1380 = vmatpush.msra.mxu0 0.0
    %1381 = vmatpush.msra.mxu0 0.0
    %1382 = vmatpush.msra.mxu0 0.0
    %1383 = vmatpush.msra.mxu0 0.0
    %1384 = vmatpush.msra.mxu0 0.0
    %1385 = vmatpush.msra.mxu0 0.0
    %1386 = vmatpush.msra.mxu0 0.0
    %1387 = vmatpush.msra.mxu0 %v182
    %1388 = vmatpush.msra.mxu0 %v181
    %1389 = vmatmul.f32.gmra.mxu0 %v1371
    %v1390 = vpop.f32.mrf.mxu0
    %v1391 = vadd.f32 0.0, %v1390
    %1392 = vdwg.mxu0
    %v1394 = vrot.slane %v1370, 6
    %1395 = vrot.lane.b32.xlu0 %v1394, 32
    %v1396 = vpop.permute.xlu0 %1395
    %v1397 = vsel %vm224, %v1396, 0
    %1399 = vmatpush.msra.mxu0 0.0
    %1400 = vmatpush.msra.mxu0 0.0
    %1401 = vmatpush.msra.mxu0 0.0
    %1402 = vmatpush.msra.mxu0 0.0
    %1403 = vmatpush.msra.mxu0 0.0
    %1404 = vmatpush.msra.mxu0 0.0
    %1405 = vmatpush.msra.mxu0 0.0
    %1406 = vmatpush.msra.mxu0 0.0
    %1407 = vmatpush.msra.mxu0 0.0
    %1408 = vmatpush.msra.mxu0 0.0
    %1409 = vmatpush.msra.mxu0 0.0
    %1410 = vmatpush.msra.mxu0 0.0
    %1411 = vmatpush.msra.mxu0 %v180
    %1412 = vmatpush.msra.mxu0 %v179
    %1413 = vmatpush.msra.mxu0 %v178
    %1414 = vmatpush.msra.mxu0 %v177
    %1415 = vmatmul.f32.gmra.mxu0 %v1397
    %v1416 = vpop.f32.mrf.mxu0
    %v1417 = vadd.f32 %v1391, %v1416
    %1418 = vdwg.mxu0
    %v1419 = vadd.f32 %v1417, %v335
    %v1420 = vxor.u32 %v1419, 2147483648
    %v1421 = vmul.f32 %v1420, 1.442695
    %v1422 = vpow.pop %v1421
    %v1423 = vadd.f32 %v1422, 1.0
    %v1424 = vrcp.pop %v1423
    %v1425 = vmul.f32 %v1423, %v1424
    %v1426 = vsub.f32 1.0, %v1425
    %v1427 = vmul.f32 %v1424, %v1426
    %v1428 = vadd.f32 %v1424, %v1427
    %vm1429 = vweird.f32 %v1423
    %vm1430 = vweird.f32 %v1424
    %vm1431 = vmor %vm1429, %vm1430
    %v1432 = vsel %vm1431, %v1424, %v1428
    %v1433 = vand.u32 2147483647, %v1423
    %vm1434 = vcmp.eq.f32.partialorder %v1433, 8.507059e+37
    %v1435 = vand.u32 %v1423, 2147483648
    %v1436 = vor.u32 1.1754944e-38, %v1435
    %v1437 = vsel %vm1434, %v1436, %v1432
    %v1438 = vmul.f32 1.0, %v1437
    %v1439 = vtanh.pop %v1419
    %v1440 = vmul.f32 %v1438, %v1295
    %1442 = vrot.lane.b32.xlu0 %v1439, 96
    %v1443 = vpop.permute.xlu0 %1442
    %v1445 = vmul.f32 %v1438, %v1443
    %1447 = vrot.lane.b32.xlu0 %v1445, 16
    %v1448 = vpop.permute.xlu0 %1447
    %v1450 = vadd.f32 %v1440, %v1448
    %v1451 = vtanh.pop %v1450
    %1453 = vrot.lane.b32.xlu0 %v1451, 32
    %v1454 = vpop.permute.xlu0 %1453
    %v1456 = vmul.f32 %v1438, %v1454
    %1458 = vrot.lane.b32.xlu0 %v1456, 80
    %v1459 = vpop.permute.xlu0 %1458
    %1461 = vst.msk [vmem:[#allocation2 + $0xe] sm:$0x3] %vm379, %v1459
    %v1462 = vld [vmem:[#allocation2] sm:$0xff]
    %v1463 = vld [vmem:[#allocation2 + $0x8] sm:$0xff]
    %v1464 = vld [vmem:[%s8] sm:$0xff]
    %v1465 = vld [vmem:[%s8 + $0x8] sm:$0xff]
    %v1466 = vld [vmem:[#allocation8] sm:$0x1]
    %v1468 = vperm.slane %v1466, 0
    %v1471 = vsel %vm286, %v1462, 0
    %v1474 = vsel %vm286, %v1463, 0
    %1476 = vmatpush.msra.mxu0 0.0
    %1477 = vmatpush.msra.mxu0 0.0
    %1478 = vmatpush.msra.mxu0 0.0
    %1479 = vmatpush.msra.mxu0 0.0
    %1480 = vmatpush.msra.mxu0 0.0
    %1481 = vmatpush.msra.mxu0 0.0
    %1482 = vmatpush.msra.mxu0 0.0
    %1483 = vmatpush.msra.mxu0 0.0
    %1484 = vmatpush.msra.mxu0 0.0
    %1485 = vmatpush.msra.mxu0 0.0
    %1486 = vmatpush.msra.mxu0 0.0
    %1487 = vmatpush.msra.mxu0 0.0
    %1488 = vmatpush.msra.mxu0 0.0
    %1489 = vmatpush.msra.mxu0 0.0
    %1490 = vmatpush.msra.mxu0 %v1465
    %1491 = vmatpush.msra.mxu0 %v1464
    %1492 = vmatmul.f32.gmra.mxu0 %v1471
    %v1493 = vpop.f32.mrf.mxu0
    %v1494 = vadd.f32 %v1468, %v1493
    %1495 = vmatmul.f32.gmra.mxu0 %v1474
    %v1496 = vpop.f32.mrf.mxu0
    %v1497 = vadd.f32 %v1468, %v1496
    %1498 = vdwg.mxu0
    %v1499 = vld [vmem:[%s9] sm:$0xff]
    %v1500 = vld [vmem:[%s9 + $0x8] sm:$0xff]
    %v1501 = vld [vmem:[#allocation9] sm:$0x1]
    %v1503 = vperm.slane %v1501, 0
    %1505 = vmatpush.msra.mxu0 0.0
    %1506 = vmatpush.msra.mxu0 0.0
    %1507 = vmatpush.msra.mxu0 0.0
    %1508 = vmatpush.msra.mxu0 0.0
    %1509 = vmatpush.msra.mxu0 0.0
    %1510 = vmatpush.msra.mxu0 0.0
    %1511 = vmatpush.msra.mxu0 0.0
    %1512 = vmatpush.msra.mxu0 0.0
    %1513 = vmatpush.msra.mxu0 0.0
    %1514 = vmatpush.msra.mxu0 0.0
    %1515 = vmatpush.msra.mxu0 0.0
    %1516 = vmatpush.msra.mxu0 0.0
    %1517 = vmatpush.msra.mxu0 0.0
    %1518 = vmatpush.msra.mxu0 0.0
    %1519 = vmatpush.msra.mxu0 %v1500
    %1520 = vmatpush.msra.mxu0 %v1499
    %1521 = vmatmul.f32.gmra.mxu0 %v1471
    %v1522 = vpop.f32.mrf.mxu0
    %v1523 = vadd.f32 %v1503, %v1522
    %1524 = vmatmul.f32.gmra.mxu0 %v1474
    %v1525 = vpop.f32.mrf.mxu0
    %v1526 = vadd.f32 %v1503, %v1525
    %1527 = vdwg.mxu0
    %v1528 = vld [vmem:[%s7] sm:$0xff]
    %v1529 = vld [vmem:[%s7 + $0x8] sm:$0xff]
    %v1530 = vld [vmem:[#allocation6] sm:$0x1]
    %v1532 = vperm.slane %v1530, 0
    %v1534 = vsel %vm286, %v1459, 0
    %1536 = vmatpush.msra.mxu0 0.0
    %1537 = vmatpush.msra.mxu0 0.0
    %1538 = vmatpush.msra.mxu0 0.0
    %1539 = vmatpush.msra.mxu0 0.0
    %1540 = vmatpush.msra.mxu0 0.0
    %1541 = vmatpush.msra.mxu0 0.0
    %1542 = vmatpush.msra.mxu0 0.0
    %1543 = vmatpush.msra.mxu0 0.0
    %1544 = vmatpush.msra.mxu0 0.0
    %1545 = vmatpush.msra.mxu0 0.0
    %1546 = vmatpush.msra.mxu0 0.0
    %1547 = vmatpush.msra.mxu0 0.0
    %1548 = vmatpush.msra.mxu0 0.0
    %1549 = vmatpush.msra.mxu0 0.0
    %1550 = vmatpush.msra.mxu0 %v1529
    %1551 = vmatpush.msra.mxu0 %v1528
    %1552 = vmatmul.f32.gmra.mxu0 %v1534
    %v1553 = vpop.f32.mrf.mxu0
    %v1554 = vadd.f32 %v1532, %v1553
    %1555 = vdwg.mxu0
    %v1556 = vmul.f32 %v1554, 0.70710677
    %v1557 = vmul.f32 %v1556, %v1494
    %v1559 = vsel %vm286, %v1557, 0
    %1561 = vmatpush.msra.mxu0 0.0
    %1562 = vmatpush.msra.mxu0 0.0
    %1563 = vmatpush.msra.mxu0 0.0
    %1564 = vmatpush.msra.mxu0 0.0
    %1565 = vmatpush.msra.mxu0 0.0
    %1566 = vmatpush.msra.mxu0 0.0
    %1567 = vmatpush.msra.mxu0 0.0
    %1568 = vmatpush.msra.mxu0 0.0
    %1569 = vmatpush.msra.mxu0 0.0
    %1570 = vmatpush.msra.mxu0 0.0
    %1571 = vmatpush.msra.mxu0 0.0
    %1572 = vmatpush.msra.mxu0 0.0
    %1573 = vmatpush.msra.mxu0 0.0
    %1574 = vmatpush.msra.mxu0 0.0
    %1575 = vmatpush.msra.mxu0 %v185
    %1576 = vmatpush.msra.mxu0 %v184
    %1577 = vmatmul.f32.gmra.mxu0 %v1559
    %v1578 = vpop.f32.mrf.mxu0
    %v1579 = vadd.f32 0.0, %v1578
    %1580 = vdwg.mxu0
    %v1582 = vrot.slane %v1494, 2
    %v1584 = vmul.f32 %v1556, %v1582
    %v1586 = vsel %vm286, %v1584, 0
    %1588 = vmatpush.msra.mxu0 0.0
    %1589 = vmatpush.msra.mxu0 0.0
    %1590 = vmatpush.msra.mxu0 0.0
    %1591 = vmatpush.msra.mxu0 0.0
    %1592 = vmatpush.msra.mxu0 0.0
    %1593 = vmatpush.msra.mxu0 0.0
    %1594 = vmatpush.msra.mxu0 0.0
    %1595 = vmatpush.msra.mxu0 0.0
    %1596 = vmatpush.msra.mxu0 0.0
    %1597 = vmatpush.msra.mxu0 0.0
    %1598 = vmatpush.msra.mxu0 0.0
    %1599 = vmatpush.msra.mxu0 0.0
    %1600 = vmatpush.msra.mxu0 0.0
    %1601 = vmatpush.msra.mxu0 0.0
    %1602 = vmatpush.msra.mxu0 %v185
    %1603 = vmatpush.msra.mxu0 %v184
    %1604 = vmatmul.f32.gmra.mxu0 %v1586
    %v1605 = vpop.f32.mrf.mxu0
    %v1606 = vadd.f32 0.0, %v1605
    %1607 = vdwg.mxu0
    %v1608 = vrot.slane %v1494, 4
    %v1610 = vmul.f32 %v1556, %v1608
    %v1612 = vsel %vm286, %v1610, 0
    %1614 = vmatpush.msra.mxu0 0.0
    %1615 = vmatpush.msra.mxu0 0.0
    %1616 = vmatpush.msra.mxu0 0.0
    %1617 = vmatpush.msra.mxu0 0.0
    %1618 = vmatpush.msra.mxu0 0.0
    %1619 = vmatpush.msra.mxu0 0.0
    %1620 = vmatpush.msra.mxu0 0.0
    %1621 = vmatpush.msra.mxu0 0.0
    %1622 = vmatpush.msra.mxu0 0.0
    %1623 = vmatpush.msra.mxu0 0.0
    %1624 = vmatpush.msra.mxu0 0.0
    %1625 = vmatpush.msra.mxu0 0.0
    %1626 = vmatpush.msra.mxu0 0.0
    %1627 = vmatpush.msra.mxu0 0.0
    %1628 = vmatpush.msra.mxu0 %v185
    %1629 = vmatpush.msra.mxu0 %v184
    %1630 = vmatmul.f32.gmra.mxu0 %v1612
    %v1631 = vpop.f32.mrf.mxu0
    %v1632 = vadd.f32 0.0, %v1631
    %1633 = vdwg.mxu0
    %v1634 = vrot.slane %v1494, 6
    %v1636 = vmul.f32 %v1556, %v1634
    %v1638 = vsel %vm286, %v1636, 0
    %1640 = vmatpush.msra.mxu0 0.0
    %1641 = vmatpush.msra.mxu0 0.0
    %1642 = vmatpush.msra.mxu0 0.0
    %1643 = vmatpush.msra.mxu0 0.0
    %1644 = vmatpush.msra.mxu0 0.0
    %1645 = vmatpush.msra.mxu0 0.0
    %1646 = vmatpush.msra.mxu0 0.0
    %1647 = vmatpush.msra.mxu0 0.0
    %1648 = vmatpush.msra.mxu0 0.0
    %1649 = vmatpush.msra.mxu0 0.0
    %1650 = vmatpush.msra.mxu0 0.0
    %1651 = vmatpush.msra.mxu0 0.0
    %1652 = vmatpush.msra.mxu0 0.0
    %1653 = vmatpush.msra.mxu0 0.0
    %1654 = vmatpush.msra.mxu0 %v185
    %1655 = vmatpush.msra.mxu0 %v184
    %1656 = vmatmul.f32.gmra.mxu0 %v1638
    %v1657 = vpop.f32.mrf.mxu0
    %v1658 = vadd.f32 0.0, %v1657
    %1659 = vdwg.mxu0
    %v1660 = vmul.f32 %v1556, %v1497
    %v1662 = vsel %vm286, %v1660, 0
    %1664 = vmatpush.msra.mxu0 0.0
    %1665 = vmatpush.msra.mxu0 0.0
    %1666 = vmatpush.msra.mxu0 0.0
    %1667 = vmatpush.msra.mxu0 0.0
    %1668 = vmatpush.msra.mxu0 0.0
    %1669 = vmatpush.msra.mxu0 0.0
    %1670 = vmatpush.msra.mxu0 0.0
    %1671 = vmatpush.msra.mxu0 0.0
    %1672 = vmatpush.msra.mxu0 0.0
    %1673 = vmatpush.msra.mxu0 0.0
    %1674 = vmatpush.msra.mxu0 0.0
    %1675 = vmatpush.msra.mxu0 0.0
    %1676 = vmatpush.msra.mxu0 0.0
    %1677 = vmatpush.msra.mxu0 0.0
    %1678 = vmatpush.msra.mxu0 %v185
    %1679 = vmatpush.msra.mxu0 %v184
    %1680 = vmatmul.f32.gmra.mxu0 %v1662
    %v1681 = vpop.f32.mrf.mxu0
    %v1682 = vadd.f32 0.0, %v1681
    %1683 = vdwg.mxu0
    %v1685 = vrot.slane %v1497, 2
    %v1687 = vmul.f32 %v1556, %v1685
    %v1689 = vsel %vm286, %v1687, 0
    %1691 = vmatpush.msra.mxu0 0.0
    %1692 = vmatpush.msra.mxu0 0.0
    %1693 = vmatpush.msra.mxu0 0.0
    %1694 = vmatpush.msra.mxu0 0.0
    %1695 = vmatpush.msra.mxu0 0.0
    %1696 = vmatpush.msra.mxu0 0.0
    %1697 = vmatpush.msra.mxu0 0.0
    %1698 = vmatpush.msra.mxu0 0.0
    %1699 = vmatpush.msra.mxu0 0.0
    %1700 = vmatpush.msra.mxu0 0.0
    %1701 = vmatpush.msra.mxu0 0.0
    %1702 = vmatpush.msra.mxu0 0.0
    %1703 = vmatpush.msra.mxu0 0.0
    %1704 = vmatpush.msra.mxu0 0.0
    %1705 = vmatpush.msra.mxu0 %v185
    %1706 = vmatpush.msra.mxu0 %v184
    %1707 = vmatmul.f32.gmra.mxu0 %v1689
    %v1708 = vpop.f32.mrf.mxu0
    %v1709 = vadd.f32 0.0, %v1708
    %1710 = vdwg.mxu0
    %v1711 = vrot.slane %v1497, 4
    %v1713 = vmul.f32 %v1556, %v1711
    %v1715 = vsel %vm286, %v1713, 0
    %1717 = vmatpush.msra.mxu0 0.0
    %1718 = vmatpush.msra.mxu0 0.0
    %1719 = vmatpush.msra.mxu0 0.0
    %1720 = vmatpush.msra.mxu0 0.0
    %1721 = vmatpush.msra.mxu0 0.0
    %1722 = vmatpush.msra.mxu0 0.0
    %1723 = vmatpush.msra.mxu0 0.0
    %1724 = vmatpush.msra.mxu0 0.0
    %1725 = vmatpush.msra.mxu0 0.0
    %1726 = vmatpush.msra.mxu0 0.0
    %1727 = vmatpush.msra.mxu0 0.0
    %1728 = vmatpush.msra.mxu0 0.0
    %1729 = vmatpush.msra.mxu0 0.0
    %1730 = vmatpush.msra.mxu0 0.0
    %1731 = vmatpush.msra.mxu0 %v185
    %1732 = vmatpush.msra.mxu0 %v184
    %1733 = vmatmul.f32.gmra.mxu0 %v1715
    %v1734 = vpop.f32.mrf.mxu0
    %v1735 = vadd.f32 0.0, %v1734
    %1736 = vdwg.mxu0
    %v1737 = vrot.slane %v1497, 6
    %v1739 = vmul.f32 %v1556, %v1737
    %v1741 = vsel %vm286, %v1739, 0
    %1743 = vmatpush.msra.mxu0 0.0
    %1744 = vmatpush.msra.mxu0 0.0
    %1745 = vmatpush.msra.mxu0 0.0
    %1746 = vmatpush.msra.mxu0 0.0
    %1747 = vmatpush.msra.mxu0 0.0
    %1748 = vmatpush.msra.mxu0 0.0
    %1749 = vmatpush.msra.mxu0 0.0
    %1750 = vmatpush.msra.mxu0 0.0
    %1751 = vmatpush.msra.mxu0 0.0
    %1752 = vmatpush.msra.mxu0 0.0
    %1753 = vmatpush.msra.mxu0 0.0
    %1754 = vmatpush.msra.mxu0 0.0
    %1755 = vmatpush.msra.mxu0 0.0
    %1756 = vmatpush.msra.mxu0 0.0
    %1757 = vmatpush.msra.mxu0 %v185
    %1758 = vmatpush.msra.mxu0 %v184
    %1759 = vmatmul.f32.gmra.mxu0 %v1741
    %v1760 = vpop.f32.mrf.mxu0
    %v1761 = vadd.f32 0.0, %v1760
    %1762 = vdwg.mxu0
    %v1763 = vmax.f32 %v1579, %v1606
    %v1764 = vmax.f32 %v1763, %v1632
    %v1765 = vmax.f32 %v1764, %v1658
    %v1766 = vmax.f32 %v1765, %v1682
    %v1767 = vmax.f32 %v1766, %v1709
    %v1768 = vmax.f32 %v1767, %v1735
    %v1769 = vmax.f32 %v1768, %v1761
    %v1770 = vsub.f32 %v1579, %v1769
    %v1771 = vmul.f32 %v1770, 1.442695
    %v1772 = vpow.pop %v1771
    %v1773 = vsub.f32 %v1606, %v1769
    %v1774 = vmul.f32 %v1773, 1.442695
    %v1775 = vpow.pop %v1774
    %v1776 = vsub.f32 %v1632, %v1769
    %v1777 = vmul.f32 %v1776, 1.442695
    %v1778 = vpow.pop %v1777
    %v1779 = vsub.f32 %v1658, %v1769
    %v1780 = vmul.f32 %v1779, 1.442695
    %v1781 = vpow.pop %v1780
    %v1782 = vsub.f32 %v1682, %v1769
    %v1783 = vmul.f32 %v1782, 1.442695
    %v1784 = vpow.pop %v1783
    %v1785 = vsub.f32 %v1709, %v1769
    %v1786 = vmul.f32 %v1785, 1.442695
    %v1787 = vpow.pop %v1786
    %v1788 = vsub.f32 %v1735, %v1769
    %v1789 = vmul.f32 %v1788, 1.442695
    %v1790 = vpow.pop %v1789
    %v1791 = vsub.f32 %v1761, %v1769
    %v1792 = vmul.f32 %v1791, 1.442695
    %v1793 = vpow.pop %v1792
    %v1794 = vadd.f32 %v1772, %v1775
    %v1795 = vadd.f32 %v1794, %v1778
    %v1796 = vadd.f32 %v1795, %v1781
    %v1797 = vadd.f32 %v1796, %v1784
    %v1798 = vadd.f32 %v1797, %v1787
    %v1799 = vadd.f32 %v1798, %v1790
    %v1800 = vadd.f32 %v1799, %v1793
    %v1801 = vrcp.pop %v1800
    %v1803 = vsel %vm194, %v1772, 0
    %1805 = vmatpush.msra.mxu0 0.0
    %1806 = vmatpush.msra.mxu0 0.0
    %1807 = vmatpush.msra.mxu0 0.0
    %1808 = vmatpush.msra.mxu0 0.0
    %1809 = vmatpush.msra.mxu0 0.0
    %1810 = vmatpush.msra.mxu0 0.0
    %1811 = vmatpush.msra.mxu0 0.0
    %1812 = vmatpush.msra.mxu0 0.0
    %1813 = vmatpush.msra.mxu0 0.0
    %1814 = vmatpush.msra.mxu0 0.0
    %1815 = vmatpush.msra.mxu0 0.0
    %1816 = vmatpush.msra.mxu0 0.0
    %1817 = vmatpush.msra.mxu0 0.0
    %1818 = vmatpush.msra.mxu0 0.0
    %1819 = vmatpush.msra.mxu0 0.0
    %1820 = vmatpush.msra.mxu0 %v186
    %1821 = vmatmul.f32.gmra.mxu0 %v1803
    %v1822 = vpop.f32.mrf.mxu0
    %v1823 = vadd.f32 0.0, %v1822
    %1824 = vdwg.mxu0
    %v1825 = vmul.f32 %v1823, %v1523
    %v1826 = vadd.f32 %v1825, 0.0
    %v1828 = vsel %vm194, %v1775, 0
    %1830 = vmatpush.msra.mxu0 0.0
    %1831 = vmatpush.msra.mxu0 0.0
    %1832 = vmatpush.msra.mxu0 0.0
    %1833 = vmatpush.msra.mxu0 0.0
    %1834 = vmatpush.msra.mxu0 0.0
    %1835 = vmatpush.msra.mxu0 0.0
    %1836 = vmatpush.msra.mxu0 0.0
    %1837 = vmatpush.msra.mxu0 0.0
    %1838 = vmatpush.msra.mxu0 0.0
    %1839 = vmatpush.msra.mxu0 0.0
    %1840 = vmatpush.msra.mxu0 0.0
    %1841 = vmatpush.msra.mxu0 0.0
    %1842 = vmatpush.msra.mxu0 0.0
    %1843 = vmatpush.msra.mxu0 0.0
    %1844 = vmatpush.msra.mxu0 0.0
    %1845 = vmatpush.msra.mxu0 %v186
    %1846 = vmatmul.f32.gmra.mxu0 %v1828
    %v1847 = vpop.f32.mrf.mxu0
    %v1848 = vadd.f32 0.0, %v1847
    %1849 = vdwg.mxu0
    %v1851 = vrot.slane %v1523, 2
    %v1853 = vmul.f32 %v1848, %v1851
    %v1854 = vadd.f32 %v1826, %v1853
    %v1856 = vsel %vm194, %v1778, 0
    %1858 = vmatpush.msra.mxu0 0.0
    %1859 = vmatpush.msra.mxu0 0.0
    %1860 = vmatpush.msra.mxu0 0.0
    %1861 = vmatpush.msra.mxu0 0.0
    %1862 = vmatpush.msra.mxu0 0.0
    %1863 = vmatpush.msra.mxu0 0.0
    %1864 = vmatpush.msra.mxu0 0.0
    %1865 = vmatpush.msra.mxu0 0.0
    %1866 = vmatpush.msra.mxu0 0.0
    %1867 = vmatpush.msra.mxu0 0.0
    %1868 = vmatpush.msra.mxu0 0.0
    %1869 = vmatpush.msra.mxu0 0.0
    %1870 = vmatpush.msra.mxu0 0.0
    %1871 = vmatpush.msra.mxu0 0.0
    %1872 = vmatpush.msra.mxu0 0.0
    %1873 = vmatpush.msra.mxu0 %v186
    %1874 = vmatmul.f32.gmra.mxu0 %v1856
    %v1875 = vpop.f32.mrf.mxu0
    %v1876 = vadd.f32 0.0, %v1875
    %1877 = vdwg.mxu0
    %v1878 = vrot.slane %v1523, 4
    %v1880 = vmul.f32 %v1876, %v1878
    %v1881 = vadd.f32 %v1854, %v1880
    %v1883 = vsel %vm194, %v1781, 0
    %1885 = vmatpush.msra.mxu0 0.0
    %1886 = vmatpush.msra.mxu0 0.0
    %1887 = vmatpush.msra.mxu0 0.0
    %1888 = vmatpush.msra.mxu0 0.0
    %1889 = vmatpush.msra.mxu0 0.0
    %1890 = vmatpush.msra.mxu0 0.0
    %1891 = vmatpush.msra.mxu0 0.0
    %1892 = vmatpush.msra.mxu0 0.0
    %1893 = vmatpush.msra.mxu0 0.0
    %1894 = vmatpush.msra.mxu0 0.0
    %1895 = vmatpush.msra.mxu0 0.0
    %1896 = vmatpush.msra.mxu0 0.0
    %1897 = vmatpush.msra.mxu0 0.0
    %1898 = vmatpush.msra.mxu0 0.0
    %1899 = vmatpush.msra.mxu0 0.0
    %1900 = vmatpush.msra.mxu0 %v186
    %1901 = vmatmul.f32.gmra.mxu0 %v1883
    %v1902 = vpop.f32.mrf.mxu0
    %v1903 = vadd.f32 0.0, %v1902
    %1904 = vdwg.mxu0
    %v1905 = vrot.slane %v1523, 6
    %v1907 = vmul.f32 %v1903, %v1905
    %v1908 = vadd.f32 %v1881, %v1907
    %v1910 = vsel %vm194, %v1784, 0
    %1912 = vmatpush.msra.mxu0 0.0
    %1913 = vmatpush.msra.mxu0 0.0
    %1914 = vmatpush.msra.mxu0 0.0
    %1915 = vmatpush.msra.mxu0 0.0
    %1916 = vmatpush.msra.mxu0 0.0
    %1917 = vmatpush.msra.mxu0 0.0
    %1918 = vmatpush.msra.mxu0 0.0
    %1919 = vmatpush.msra.mxu0 0.0
    %1920 = vmatpush.msra.mxu0 0.0
    %1921 = vmatpush.msra.mxu0 0.0
    %1922 = vmatpush.msra.mxu0 0.0
    %1923 = vmatpush.msra.mxu0 0.0
    %1924 = vmatpush.msra.mxu0 0.0
    %1925 = vmatpush.msra.mxu0 0.0
    %1926 = vmatpush.msra.mxu0 0.0
    %1927 = vmatpush.msra.mxu0 %v186
    %1928 = vmatmul.f32.gmra.mxu0 %v1910
    %v1929 = vpop.f32.mrf.mxu0
    %v1930 = vadd.f32 0.0, %v1929
    %1931 = vdwg.mxu0
    %v1932 = vmul.f32 %v1930, %v1526
    %v1933 = vadd.f32 %v1908, %v1932
    %v1935 = vsel %vm194, %v1787, 0
    %1937 = vmatpush.msra.mxu0 0.0
    %1938 = vmatpush.msra.mxu0 0.0
    %1939 = vmatpush.msra.mxu0 0.0
    %1940 = vmatpush.msra.mxu0 0.0
    %1941 = vmatpush.msra.mxu0 0.0
    %1942 = vmatpush.msra.mxu0 0.0
    %1943 = vmatpush.msra.mxu0 0.0
    %1944 = vmatpush.msra.mxu0 0.0
    %1945 = vmatpush.msra.mxu0 0.0
    %1946 = vmatpush.msra.mxu0 0.0
    %1947 = vmatpush.msra.mxu0 0.0
    %1948 = vmatpush.msra.mxu0 0.0
    %1949 = vmatpush.msra.mxu0 0.0
    %1950 = vmatpush.msra.mxu0 0.0
    %1951 = vmatpush.msra.mxu0 0.0
    %1952 = vmatpush.msra.mxu0 %v186
    %1953 = vmatmul.f32.gmra.mxu0 %v1935
    %v1954 = vpop.f32.mrf.mxu0
    %v1955 = vadd.f32 0.0, %v1954
    %1956 = vdwg.mxu0
    %v1958 = vrot.slane %v1526, 2
    %v1960 = vmul.f32 %v1955, %v1958
    %v1961 = vadd.f32 %v1933, %v1960
    %v1963 = vsel %vm194, %v1790, 0
    %1965 = vmatpush.msra.mxu0 0.0
    %1966 = vmatpush.msra.mxu0 0.0
    %1967 = vmatpush.msra.mxu0 0.0
    %1968 = vmatpush.msra.mxu0 0.0
    %1969 = vmatpush.msra.mxu0 0.0
    %1970 = vmatpush.msra.mxu0 0.0
    %1971 = vmatpush.msra.mxu0 0.0
    %1972 = vmatpush.msra.mxu0 0.0
    %1973 = vmatpush.msra.mxu0 0.0
    %1974 = vmatpush.msra.mxu0 0.0
    %1975 = vmatpush.msra.mxu0 0.0
    %1976 = vmatpush.msra.mxu0 0.0
    %1977 = vmatpush.msra.mxu0 0.0
    %1978 = vmatpush.msra.mxu0 0.0
    %1979 = vmatpush.msra.mxu0 0.0
    %1980 = vmatpush.msra.mxu0 %v186
    %1981 = vmatmul.f32.gmra.mxu0 %v1963
    %v1982 = vpop.f32.mrf.mxu0
    %v1983 = vadd.f32 0.0, %v1982
    %1984 = vdwg.mxu0
    %v1985 = vrot.slane %v1526, 4
    %v1987 = vmul.f32 %v1983, %v1985
    %v1988 = vadd.f32 %v1961, %v1987
    %v1990 = vsel %vm194, %v1793, 0
    %1992 = vmatpush.msra.mxu0 0.0
    %1993 = vmatpush.msra.mxu0 0.0
    %1994 = vmatpush.msra.mxu0 0.0
    %1995 = vmatpush.msra.mxu0 0.0
    %1996 = vmatpush.msra.mxu0 0.0
    %1997 = vmatpush.msra.mxu0 0.0
    %1998 = vmatpush.msra.mxu0 0.0
    %1999 = vmatpush.msra.mxu0 0.0
    %2000 = vmatpush.msra.mxu0 0.0
    %2001 = vmatpush.msra.mxu0 0.0
    %2002 = vmatpush.msra.mxu0 0.0
    %2003 = vmatpush.msra.mxu0 0.0
    %2004 = vmatpush.msra.mxu0 0.0
    %2005 = vmatpush.msra.mxu0 0.0
    %2006 = vmatpush.msra.mxu0 0.0
    %2007 = vmatpush.msra.mxu0 %v186
    %2008 = vmatmul.f32.gmra.mxu0 %v1990
    %v2009 = vpop.f32.mrf.mxu0
    %v2010 = vadd.f32 0.0, %v2009
    %2011 = vdwg.mxu0
    %v2012 = vrot.slane %v1526, 6
    %v2014 = vmul.f32 %v2010, %v2012
    %v2015 = vadd.f32 %v1988, %v2014
    %v2017 = vsel %vm194, %v1801, 0
    %2019 = vmatpush.msra.mxu0 0.0
    %2020 = vmatpush.msra.mxu0 0.0
    %2021 = vmatpush.msra.mxu0 0.0
    %2022 = vmatpush.msra.mxu0 0.0
    %2023 = vmatpush.msra.mxu0 0.0
    %2024 = vmatpush.msra.mxu0 0.0
    %2025 = vmatpush.msra.mxu0 0.0
    %2026 = vmatpush.msra.mxu0 0.0
    %2027 = vmatpush.msra.mxu0 0.0
    %2028 = vmatpush.msra.mxu0 0.0
    %2029 = vmatpush.msra.mxu0 0.0
    %2030 = vmatpush.msra.mxu0 0.0
    %2031 = vmatpush.msra.mxu0 0.0
    %2032 = vmatpush.msra.mxu0 0.0
    %2033 = vmatpush.msra.mxu0 0.0
    %2034 = vmatpush.msra.mxu0 %v186
    %2035 = vmatmul.f32.gmra.mxu0 %v2017
    %v2036 = vpop.f32.mrf.mxu0
    %v2037 = vadd.f32 0.0, %v2036
    %2038 = vdwg.mxu0
    %v2039 = vmul.f32 %v2015, %v2037
    %v2040 = vld [vmem:[%s13] sm:$0xff]
    %v2041 = vld [vmem:[%s13 + $0x8] sm:$0xff]
    %v2042 = vld [vmem:[#allocation11] sm:$0x1]
    %v2044 = vperm.slane %v2042, 0
    %v2047 = vsel %vm286, %v2039, 0
    %2049 = vmatpush.msra.mxu0 0.0
    %2050 = vmatpush.msra.mxu0 0.0
    %2051 = vmatpush.msra.mxu0 0.0
    %2052 = vmatpush.msra.mxu0 0.0
    %2053 = vmatpush.msra.mxu0 0.0
    %2054 = vmatpush.msra.mxu0 0.0
    %2055 = vmatpush.msra.mxu0 0.0
    %2056 = vmatpush.msra.mxu0 0.0
    %2057 = vmatpush.msra.mxu0 0.0
    %2058 = vmatpush.msra.mxu0 0.0
    %2059 = vmatpush.msra.mxu0 0.0
    %2060 = vmatpush.msra.mxu0 0.0
    %2061 = vmatpush.msra.mxu0 0.0
    %2062 = vmatpush.msra.mxu0 0.0
    %2063 = vmatpush.msra.mxu0 %v2041
    %2064 = vmatpush.msra.mxu0 %v2040
    %2065 = vmatmul.f32.gmra.mxu0 %v2047
    %v2066 = vpop.f32.mrf.mxu0
    %v2067 = vadd.f32 %v2044, %v2066
    %2068 = vdwg.mxu0
    %v2069 = vld [vmem:[#allocation14] sm:$0xff]
    %v2070 = vld [vmem:[#allocation14 + $0x8] sm:$0xff]
    %v2071 = vld [vmem:[%s18] sm:$0x1]
    %v2073 = vperm.slane %v2071, 0
    %v2076 = vsel %vm286, %v2067, 0
    %2078 = vmatpush.msra.mxu0 0.0
    %2079 = vmatpush.msra.mxu0 0.0
    %2080 = vmatpush.msra.mxu0 0.0
    %2081 = vmatpush.msra.mxu0 0.0
    %2082 = vmatpush.msra.mxu0 0.0
    %2083 = vmatpush.msra.mxu0 0.0
    %2084 = vmatpush.msra.mxu0 0.0
    %2085 = vmatpush.msra.mxu0 0.0
    %2086 = vmatpush.msra.mxu0 0.0
    %2087 = vmatpush.msra.mxu0 0.0
    %2088 = vmatpush.msra.mxu0 0.0
    %2089 = vmatpush.msra.mxu0 0.0
    %2090 = vmatpush.msra.mxu0 0.0
    %2091 = vmatpush.msra.mxu0 0.0
    %2092 = vmatpush.msra.mxu0 %v2070
    %2093 = vmatpush.msra.mxu0 %v2069
    %2094 = vmatmul.f32.gmra.mxu0 %v2076
    %v2095 = vpop.f32.mrf.mxu0
    %v2096 = vadd.f32 %v2073, %v2095
    %2097 = vdwg.mxu0
    %v2098 = vmax.f32 %v2096, 0.0
    %v2099 = vld [vmem:[%s19] sm:$0xff]
    %v2100 = vld [vmem:[%s19 + $0x8] sm:$0xff]
    %v2101 = vld [vmem:[%s19 + $0x10] sm:$0xff]
    %v2102 = vld [vmem:[%s19 + $0x18] sm:$0xff]
    %v2103 = vld [vmem:[%s19 + $0x20] sm:$0xff]
    %v2104 = vld [vmem:[%s19 + $0x28] sm:$0xff]
    %v2105 = vld [vmem:[%s19 + $0x30] sm:$0xff]
    %v2106 = vld [vmem:[%s19 + $0x38] sm:$0xff]
    %v2107 = vld [vmem:[%s20] sm:$0x1]
    %v2109 = vperm.slane %v2107, 0
    %vm2111 = vcmask 523264
    %v2113 = vsel %vm2111, %v2098, 0
    %2115 = vmatpush.msra.mxu0 0.0
    %2116 = vmatpush.msra.mxu0 0.0
    %2117 = vmatpush.msra.mxu0 0.0
    %2118 = vmatpush.msra.mxu0 0.0
    %2119 = vmatpush.msra.mxu0 0.0
    %2120 = vmatpush.msra.mxu0 0.0
    %2121 = vmatpush.msra.mxu0 0.0
    %2122 = vmatpush.msra.mxu0 0.0
    %2123 = vmatpush.msra.mxu0 %v2106
    %2124 = vmatpush.msra.mxu0 %v2105
    %2125 = vmatpush.msra.mxu0 %v2104
    %2126 = vmatpush.msra.mxu0 %v2103
    %2127 = vmatpush.msra.mxu0 %v2102
    %2128 = vmatpush.msra.mxu0 %v2101
    %2129 = vmatpush.msra.mxu0 %v2100
    %2130 = vmatpush.msra.mxu0 %v2099
    %2131 = vmatmul.f32.gmra.mxu0 %v2113
    %v2132 = vpop.f32.mrf.mxu0
    %v2133 = vadd.f32 %v2109, %v2132
    %2134 = vdwg.mxu0
    %v2135 = vmax.f32 %v2133, 0.0
    %v2136 = vld [vmem:[%s21] sm:$0xff]
    %v2137 = vld [vmem:[%s21 + $0x8] sm:$0xff]
    %v2138 = vld [vmem:[%s21 + $0x10] sm:$0xff]
    %v2139 = vld [vmem:[%s21 + $0x18] sm:$0xff]
    %v2140 = vld [vmem:[#allocation3] sm:$0x1]
    %v2142 = vperm.slane %v2140, 0
    %v2145 = vsel %vm224, %v2135, 0
    %2147 = vmatpush.msra.mxu0 0.0
    %2148 = vmatpush.msra.mxu0 0.0
    %2149 = vmatpush.msra.mxu0 0.0
    %2150 = vmatpush.msra.mxu0 0.0
    %2151 = vmatpush.msra.mxu0 0.0
    %2152 = vmatpush.msra.mxu0 0.0
    %2153 = vmatpush.msra.mxu0 0.0
    %2154 = vmatpush.msra.mxu0 0.0
    %2155 = vmatpush.msra.mxu0 0.0
    %2156 = vmatpush.msra.mxu0 0.0
    %2157 = vmatpush.msra.mxu0 0.0
    %2158 = vmatpush.msra.mxu0 0.0
    %2159 = vmatpush.msra.mxu0 %v2139
    %2160 = vmatpush.msra.mxu0 %v2138
    %2161 = vmatpush.msra.mxu0 %v2137
    %2162 = vmatpush.msra.mxu0 %v2136
    %2163 = vmatmul.f32.gmra.mxu0 %v2145
    %v2164 = vpop.f32.mrf.mxu0
    %v2165 = vadd.f32 %v2142, %v2164
    %2166 = vdwg.mxu0
    %vm2167 = vcmask 1024
    %2168 = vst.msk [vmem:[%s23] sm:$0x3] %vm2167, %v2165
    // Predicated region
    $region122: #{price_predictor_forward.1} parent=1 // pred_check
      _
    $region123: #{price_predictor_forward.1} parent=1 // pred_check_branch
      %2170 = sbr.rel (0) target = $region125
    $region124: #{price_predictor_forward.1} parent=1 // pred_region
      _
    $region125: #{price_predictor_forward.1} parent=1 // pred_fallthru
      _
    // Predicated region
    $region126: #{price_predictor_forward.1} parent=1 // pred_check
      _
    $region127: #{price_predictor_forward.1} parent=1 // pred_check_branch
      %2172 = sbr.rel (0) target = $region129
    $region128: #{price_predictor_forward.1} parent=1 // pred_region
      _
    $region129: #{price_predictor_forward.1} parent=1 // pred_fallthru
      _
    %2173 = vsyncpa [#allocation5], 1
    %2174 = vsyncpa [#allocation7], 1
    %2175 = vsyncpa [#allocation10], 1
    %2176 = vsyncpa [#allocation13], 1

</llo_original>
